<compile_context>
chip_gen: v7x
topology: tpu7x:2x2x1
jax: 0.10.0
libtpu: 0.0.40
codegen_flags: <defaults>
</compile_context>

<pallas_src>
import functools

import numpy as np
import jax
import jax.numpy as jnp
from jax.experimental import pallas as pl
from jax.experimental.pallas import tpu as pltpu


# --------------------------------------------------------------------------
# Fused Pallas kernel (one grid step == one batch element, all data in VMEM)
# --------------------------------------------------------------------------

def _fused_kernel(x_ref, rs_ref, masks_ref,
                  c1w_ref, c1b_ref, c2w_ref, c2b_ref, gavg_ref,
                  s1_gate_w, s1_gate_b, s1_sq1, s1_sq2,
                  s1_gwcw, s1_gwcb, s1_pw2e,
                  s2_gate_w, s2_gate_b, s2_sq1, s2_sq2,
                  s2_gwcw, s2_gwcb, s2_pw2e,
                  o_ref, *, H, W, gate_threshold=0.5, eps=1e-5):
    f32 = jnp.float32
    HW = H * W
    taps = [(dy, dx) for dy in range(3) for dx in range(3)]

    # Feature layout: (C, H*W)  -> channels on sublanes, pixels on lanes.
    x = x_ref[0].astype(f32)

    def conv3x3(f, w_ref, b_ref):
        # f: (cin, HW);  w_ref: (cout, 9*cin) packed tap-major;  b_ref: (cout,1)
        cin = f.shape[0]
        cout = b_ref.shape[0]
        pieces = []
        for t, (dy, dx) in enumerate(taps):
            off = (dy - 1) * W + (dx - 1)            # flat-spatial source offset
            if off == 0:
                pieces.append(f)                     # center tap: mask is all-ones
            else:
                shifted = pltpu.roll(f, (-off) % HW, axis=1)
                pieces.append(shifted * masks_ref[t])  # zero out-of-image taps
        if cin % 8 == 0:
            # fat-K im2col: one MXU dot with K = 9*cin
            patches = jnp.concatenate(pieces, axis=0)          # (9*cin, HW)
            y = jnp.dot(w_ref[...], patches, preferred_element_type=f32)
        else:
            # tiny channel count (grouped conv path): accumulate per tap
            w = w_ref[...]
            y = jnp.zeros((cout, HW), f32)
            for t in range(9):
                y = y + jnp.dot(w[:, t * cin:(t + 1) * cin], pieces[t],
                                preferred_element_type=f32)
        return y + b_ref[...]

    def scconv(f, gate_w, gate_b, sq1, sq2, gwcw, gwcb, pw2e):
        c = f.shape[0]
        h = c // 2
        # ---------------- SRU: GroupNorm gating + cross reconstruct ----------
        # lane means first (XLU), then one tiny group-average matmul (MXU).
        mc = jnp.mean(f, axis=1, keepdims=True)                 # (c,1) E[x]
        m2c = jnp.mean(f * f, axis=1, keepdims=True)            # (c,1) E[x^2]
        stats = jnp.dot(gavg_ref[...], jnp.concatenate([mc, m2c], axis=1),
                        preferred_element_type=f32)             # (c,2)
        gm = stats[:, 0:1]
        gvar = jnp.maximum(stats[:, 1:2] - gm * gm, 0.0)
        xn = (f - gm) * jax.lax.rsqrt(gvar + eps)
        # gate_w/gate_b already have GroupNorm affine * w_gamma folded in
        rew = 1.0 / (1.0 + jnp.exp(-(xn * gate_w[...] + gate_b[...])))  # sigmoid
        gated = rew * f
        keep = rew > gate_threshold
        x1 = jnp.where(keep, f, gated)
        x2 = jnp.where(keep, 0.0, gated)
        f = jnp.concatenate([x1[:h] + x2[h:], x1[h:] + x2[:h]], axis=0)
        # ---------------- CRU ------------------------------------------------
        up = jnp.dot(sq1[...], f[:h], preferred_element_type=f32)    # (c/4, HW)
        low = jnp.dot(sq2[...], f[h:], preferred_element_type=f32)   # (c/4, HW)
        y1 = conv3x3(up, gwcw, gwcb)                 # pwc1 folded into center tap
        y2 = jnp.dot(pw2e[...], low, preferred_element_type=f32)     # [pwc2 ; I]
        # channel softmax over the (pooled) 2c channels, done on the two halves
        p1 = jnp.mean(y1, axis=1, keepdims=True)                     # (c,1)
        p2 = jnp.mean(y2, axis=1, keepdims=True)
        pmax = jnp.maximum(jnp.max(p1, axis=0, keepdims=True),
                           jnp.max(p2, axis=0, keepdims=True))       # (1,1)
        e1 = jnp.exp(p1 - pmax)
        e2 = jnp.exp(p2 - pmax)
        denom = (jnp.sum(e1, axis=0, keepdims=True)
                 + jnp.sum(e2, axis=0, keepdims=True))
        inv = 1.0 / denom
        return y1 * (e1 * inv) + y2 * (e2 * inv)

    h1 = jnp.maximum(conv3x3(x, c1w_ref, c1b_ref), 0.0)
    h1 = scconv(h1, s1_gate_w, s1_gate_b, s1_sq1, s1_sq2,
                s1_gwcw, s1_gwcb, s1_pw2e)
    h2 = conv3x3(h1, c2w_ref, c2b_ref)
    h2 = scconv(h2, s2_gate_w, s2_gate_b, s2_sq1, s2_sq2,
                s2_gwcw, s2_gwcb, s2_pw2e)

    out = x + h2 * rs_ref[...]                 # residual, res_scale at runtime
    o_ref[0] = out.astype(o_ref.dtype)         # (C, H*W): lane-dense store


# --------------------------------------------------------------------------
# Host-side helpers (weight packing, boundary masks) -- done once, not per step
# --------------------------------------------------------------------------

def _pack_conv3x3(w):
    """(3,3,cin,cout) -> (cout, 9*cin), column index = (dy*3+dx)*cin + c."""
    kh, kw, cin, cout = w.shape
    return jnp.transpose(w, (3, 0, 1, 2)).reshape(cout, kh * kw * cin)


def _group_avg_matrix(C, groups):
    cpg = C // groups
    m = np.zeros((C, C), np.float32)
    for g in range(groups):
        m[g * cpg:(g + 1) * cpg, g * cpg:(g + 1) * cpg] = 1.0 / cpg
    return jnp.asarray(m)


def _conv3x3_masks(H, W):
    """(9, 1, H*W) masks zeroing taps whose source pixel is outside the image."""
    hh = np.arange(H).reshape(H, 1)
    ww = np.arange(W).reshape(1, W)
    masks = np.zeros((9, 1, H * W), np.float32)
    t = 0
    for dy in (-1, 0, 1):
        for dx in (-1, 0, 1):
            valid = ((hh + dy >= 0) & (hh + dy < H) &
                     (ww + dx >= 0) & (ww + dx < W))
            masks[t, 0, :] = valid.astype(np.float32).reshape(-1)
            t += 1
    return jnp.asarray(masks)


def pack_params(p):
    """Convert natural-layout params to the kernel's matmul-ready layouts."""
    C = p['conv1_b'].shape[0]

    def pack_sc(sp):
        g, _, _, gin, gout = sp['gwc_w'].shape
        upq = g * gin
        lowq = sp['sq2_w'].shape[0]
        # block-diagonal grouped 3x3 weight
        wfull = jnp.zeros((3, 3, upq, C), jnp.float32)
        for gi in range(g):
            wfull = wfull.at[:, :, gi * gin:(gi + 1) * gin,
                             gi * gout:(gi + 1) * gout].set(sp['gwc_w'][gi])
        # fold the pwc1 1x1 conv into the center tap (saves one matmul in-kernel)
        wfull = wfull.at[1, 1].add(sp['pwc1_w'].T)
        # fold GroupNorm affine * w_gamma into a single gate affine
        wg = sp['gn_w'] / jnp.sum(sp['gn_w'])
        return {
            'gate_w': (sp['gn_w'] * wg).reshape(C, 1),
            'gate_b': (sp['gn_b'] * wg).reshape(C, 1),
            'sq1_w': sp['sq1_w'],                            # (C/4, C/2)
            'sq2_w': sp['sq2_w'],
            'gwc_w': _pack_conv3x3(wfull),                   # (C, 9*C/4)
            'gwc_b': sp['gwc_b'].reshape(C, 1),
            'pwc2e_w': jnp.concatenate(                      # [pwc2 ; I]  (C, C/4)
                [sp['pwc2_w'], jnp.eye(lowq, dtype=jnp.float32)], axis=0),
        }

    return {
        'conv1_w': _pack_conv3x3(p['conv1_w']), 'conv1_b': p['conv1_b'].reshape(C, 1),
        'conv2_w': _pack_conv3x3(p['conv2_w']), 'conv2_b': p['conv2_b'].reshape(C, 1),
        'gavg': _group_avg_matrix(C, 4),
        'sc1': pack_sc(p['sc1']),
        'sc2': pack_sc(p['sc2']),
    }


# --------------------------------------------------------------------------
# Public forward: NCHW in / NCHW out, one fused pallas_call
# --------------------------------------------------------------------------

def residual_block_no_bn2(x_nchw, packed, res_scale=1.0):
    N, C, H, W = x_nchw.shape
    HW = H * W
    x = x_nchw.reshape(N, C, HW)                       # free, contiguous
    rs = jnp.asarray(res_scale, jnp.float32).reshape(1, 1)
    masks = _conv3x3_masks(H, W)                       # baked constants

    weights = [packed['conv1_w'], packed['conv1_b'],
               packed['conv2_w'], packed['conv2_b'],
               packed['gavg']]
    for sc in (packed['sc1'], packed['sc2']):
        weights += [sc['gate_w'], sc['gate_b'], sc['sq1_w'], sc['sq2_w'],
                    sc['gwc_w'], sc['gwc_b'], sc['pwc2e_w']]

    def rep(shape):
        zeros = (0,) * len(shape)
        return pl.BlockSpec(shape, lambda n, _z=zeros: _z)

    in_specs = ([pl.BlockSpec((1, C, HW), lambda n: (n, 0, 0)),
                 rep((1, 1)),
                 rep(masks.shape)]
                + [rep(w.shape) for w in weights])

    kern = functools.partial(_fused_kernel, H=H, W=W)
    out = pl.pallas_call(
        kern,
        out_shape=jax.ShapeDtypeStruct((N, C, HW), x_nchw.dtype),
        grid=(N,),
        in_specs=in_specs,
        out_specs=pl.BlockSpec((1, C, HW), lambda n: (n, 0, 0)),
        compiler_params=pltpu.CompilerParams(
            dimension_semantics=("parallel",)),
    )(x, rs, masks, *weights)
    return out.reshape(N, C, H, W)


# --------------------------------------------------------------------------
# Parameter init (natural layouts, mirrors the PyTorch module's init scheme)
# --------------------------------------------------------------------------

def _init_scconv(key, C):
    ks = jax.random.split(key, 8)
    up = C // 2
    low = C - up
    upq = up // 2
    lowq = low // 2
    groups = 2
    n = jax.random.normal
    return {
        'gn_w': 1.0 + 0.1 * n(ks[0], (C,), jnp.float32),
        'gn_b': 0.01 * n(ks[1], (C,), jnp.float32),
        'sq1_w': 0.1 * n(ks[2], (upq, up), jnp.float32),      # (cout, cin)
        'sq2_w': 0.1 * n(ks[3], (lowq, low), jnp.float32),
        'gwc_w': 0.1 * n(ks[4], (groups, 3, 3, upq // groups, C // groups),
                         jnp.float32),
        'gwc_b': 0.01 * n(ks[5], (C,), jnp.float32),
        'pwc1_w': 0.1 * n(ks[6], (C, upq), jnp.float32),      # (cout, cin)
        'pwc2_w': 0.1 * n(ks[7], (C - lowq, lowq), jnp.float32),
    }


def init_params(key, C):
    k1, k2, k3, k4, k5, k6 = jax.random.split(key, 6)
    fan_in = C * 9
    kstd = (2.0 / fan_in) ** 0.5                    # kaiming, then *0.1 (init_weights)
    bbound = 1.0 / (fan_in ** 0.5)
    return {
        'conv1_w': 0.1 * kstd * jax.random.normal(k1, (3, 3, C, C), jnp.float32),
        'conv1_b': jax.random.uniform(k2, (C,), jnp.float32, -bbound, bbound),
        'conv2_w': 0.1 * kstd * jax.random.normal(k3, (3, 3, C, C), jnp.float32),
        'conv2_b': jax.random.uniform(k4, (C,), jnp.float32, -bbound, bbound),
        'sc1': _init_scconv(k5, C),
        'sc2': _init_scconv(k6, C),
    }


# --------------------------------------------------------------------------
# Pure-JAX reference (same math, NCHW like PyTorch) -- used only to verify
# --------------------------------------------------------------------------

def _gn_ref(x, w, b, groups, eps=1e-5):
    N, C, H, W = x.shape
    xg = x.reshape(N, groups, C // groups, H, W)
    mean = jnp.mean(xg, axis=(2, 3, 4), keepdims=True)
    var = jnp.mean((xg - mean) ** 2, axis=(2, 3, 4), keepdims=True)
    xn = ((xg - mean) / jnp.sqrt(var + eps)).reshape(N, C, H, W)
    return xn * w.reshape(1, C, 1, 1) + b.reshape(1, C, 1, 1)


def _conv3x3_ref(x, w_nat, b):
    N, cin, H, W = x.shape
    cout = w_nat.shape[-1]
    xp = jnp.pad(x, ((0, 0), (0, 0), (1, 1), (1, 1)))
    out = jnp.zeros((N, cout, H, W), jnp.float32)
    for i in range(3):
        for j in range(3):
            out = out + jnp.einsum('nchw,co->nohw',
                                   xp[:, :, i:i + H, j:j + W], w_nat[i, j])
    if b is not None:
        out = out + b.reshape(1, cout, 1, 1)
    return out


def _conv1x1_ref(x, w):                       # w: (cout, cin)
    return jnp.einsum('oc,nchw->nohw', w, x)


def _scconv_ref(x, p, groups=4, gate_threshold=0.5):
    N, C, H, W = x.shape
    gn = _gn_ref(x, p['gn_w'], p['gn_b'], groups)
    wg = (p['gn_w'] / jnp.sum(p['gn_w'])).reshape(1, C, 1, 1)
    rew = jax.nn.sigmoid(gn * wg)
    w1 = jnp.where(rew > gate_threshold, 1.0, rew)
    w2 = jnp.where(rew > gate_threshold, 0.0, rew)
    x1, x2 = w1 * x, w2 * x
    h = C // 2
    xs = jnp.concatenate([x1[:, :h] + x2[:, h:], x1[:, h:] + x2[:, :h]], axis=1)
    up, low = xs[:, :h], xs[:, h:]
    up = _conv1x1_ref(up, p['sq1_w'])
    low = _conv1x1_ref(low, p['sq2_w'])
    g = p['gwc_w'].shape[0]
    gin = p['gwc_w'].shape[3]
    outs = [_conv3x3_ref(up[:, gi * gin:(gi + 1) * gin], p['gwc_w'][gi], None)
            for gi in range(g)]
    y1 = jnp.concatenate(outs, axis=1) + p['gwc_b'].reshape(1, C, 1, 1) \
        + _conv1x1_ref(up, p['pwc1_w'])
    y2 = jnp.concatenate([_conv1x1_ref(low, p['pwc2_w']), low], axis=1)
    out = jnp.concatenate([y1, y2], axis=1)
    pooled = jnp.mean(out, axis=(2, 3), keepdims=True)
    out = out * jax.nn.softmax(pooled, axis=1)
    return out[:, :C] + out[:, C:]


def residual_block_ref(x, p, res_scale=1.0):
    out = jnp.maximum(_conv3x3_ref(x, p['conv1_w'], p['conv1_b']), 0.0)
    out = _scconv_ref(out, p['sc1'])
    out = _conv3x3_ref(out, p['conv2_w'], p['conv2_b'])
    out = _scconv_ref(out, p['sc2'])
    return x + out * res_scale


# --------------------------------------------------------------------------
# main
# --------------------------------------------------------------------------

if __name__ == "__main__":
    N, C, H, W = 2, 16, 16, 16            # small mid_channels -> 16
    key = jax.random.PRNGKey(0)
    kx, kp = jax.random.split(key)
    x = jax.random.normal(kx, (N, C, H, W), jnp.float32)     # NCHW like PyTorch
    params = init_params(kp, C)
    packed = pack_params(params)          # one-time weight packing

    fwd = jax.jit(functools.partial(residual_block_no_bn2, res_scale=1.0))
    y = fwd(x, packed)
    jax.block_until_ready(y)
    assert y.shape == (N, C, H, W) and y.dtype == jnp.float32
    assert bool(jnp.all(jnp.isfinite(y)))

    # verify against the pure-JAX reference (allow rare gate-threshold flips
    # from fp reordering; a real kernel bug corrupts essentially every element)
    y_ref = jax.jit(functools.partial(residual_block_ref, res_scale=1.0))(x, params)
    frac_bad = float(jnp.mean((jnp.abs(y - y_ref) > 1e-3).astype(jnp.float32)))
    assert frac_bad < 0.01, f"kernel/reference mismatch fraction: {frac_bad}"

    print("KERNEL_OK")
</pallas_src>

<mosaic_0001>
module attributes {stable_mosaic.version = 11 : i64} {
  func.func @_fused_kernel(%arg0: i32, %arg1: memref<1x16x256xf32, #tpu.memory_space<vmem>>, %arg2: memref<1x1xf32, #tpu.memory_space<vmem>>, %arg3: memref<9x1x256xf32, #tpu.memory_space<vmem>>, %arg4: memref<16x144xf32, #tpu.memory_space<vmem>>, %arg5: memref<16x1xf32, #tpu.memory_space<vmem>>, %arg6: memref<16x144xf32, #tpu.memory_space<vmem>>, %arg7: memref<16x1xf32, #tpu.memory_space<vmem>>, %arg8: memref<16x16xf32, #tpu.memory_space<vmem>>, %arg9: memref<16x1xf32, #tpu.memory_space<vmem>>, %arg10: memref<16x1xf32, #tpu.memory_space<vmem>>, %arg11: memref<4x8xf32, #tpu.memory_space<vmem>>, %arg12: memref<4x8xf32, #tpu.memory_space<vmem>>, %arg13: memref<16x36xf32, #tpu.memory_space<vmem>>, %arg14: memref<16x1xf32, #tpu.memory_space<vmem>>, %arg15: memref<16x4xf32, #tpu.memory_space<vmem>>, %arg16: memref<16x1xf32, #tpu.memory_space<vmem>>, %arg17: memref<16x1xf32, #tpu.memory_space<vmem>>, %arg18: memref<4x8xf32, #tpu.memory_space<vmem>>, %arg19: memref<4x8xf32, #tpu.memory_space<vmem>>, %arg20: memref<16x36xf32, #tpu.memory_space<vmem>>, %arg21: memref<16x1xf32, #tpu.memory_space<vmem>>, %arg22: memref<16x4xf32, #tpu.memory_space<vmem>>, %arg23: memref<1x16x256xf32, #tpu.memory_space<vmem>>) attributes {dimension_semantics = [#tpu.dimension_semantics<parallel>], iteration_bounds = array<i64: 2>, scalar_prefetch = 0 : i64, scratch_operands = 0 : i64, tpu.core_type = #tpu.core_type<tc>, window_params = [{transform_indices = @transform_0, window_bounds = array<i64: 1, 16, 256>}, {pipeline_mode = #tpu.pipeline_mode<synchronous>, transform_indices = @transform_1, window_bounds = array<i64: 1, 1>}, {pipeline_mode = #tpu.pipeline_mode<synchronous>, transform_indices = @transform_2, window_bounds = array<i64: 9, 1, 256>}, {pipeline_mode = #tpu.pipeline_mode<synchronous>, transform_indices = @transform_3, window_bounds = array<i64: 16, 144>}, {pipeline_mode = #tpu.pipeline_mode<synchronous>, transform_indices = @transform_4, window_bounds = array<i64: 16, 1>}, {pipeline_mode = #tpu.pipeline_mode<synchronous>, transform_indices = @transform_5, window_bounds = array<i64: 16, 144>}, {pipeline_mode = #tpu.pipeline_mode<synchronous>, transform_indices = @transform_6, window_bounds = array<i64: 16, 1>}, {pipeline_mode = #tpu.pipeline_mode<synchronous>, transform_indices = @transform_7, window_bounds = array<i64: 16, 16>}, {pipeline_mode = #tpu.pipeline_mode<synchronous>, transform_indices = @transform_8, window_bounds = array<i64: 16, 1>}, {pipeline_mode = #tpu.pipeline_mode<synchronous>, transform_indices = @transform_9, window_bounds = array<i64: 16, 1>}, {pipeline_mode = #tpu.pipeline_mode<synchronous>, transform_indices = @transform_10, window_bounds = array<i64: 4, 8>}, {pipeline_mode = #tpu.pipeline_mode<synchronous>, transform_indices = @transform_11, window_bounds = array<i64: 4, 8>}, {pipeline_mode = #tpu.pipeline_mode<synchronous>, transform_indices = @transform_12, window_bounds = array<i64: 16, 36>}, {pipeline_mode = #tpu.pipeline_mode<synchronous>, transform_indices = @transform_13, window_bounds = array<i64: 16, 1>}, {pipeline_mode = #tpu.pipeline_mode<synchronous>, transform_indices = @transform_14, window_bounds = array<i64: 16, 4>}, {pipeline_mode = #tpu.pipeline_mode<synchronous>, transform_indices = @transform_15, window_bounds = array<i64: 16, 1>}, {pipeline_mode = #tpu.pipeline_mode<synchronous>, transform_indices = @transform_16, window_bounds = array<i64: 16, 1>}, {pipeline_mode = #tpu.pipeline_mode<synchronous>, transform_indices = @transform_17, window_bounds = array<i64: 4, 8>}, {pipeline_mode = #tpu.pipeline_mode<synchronous>, transform_indices = @transform_18, window_bounds = array<i64: 4, 8>}, {pipeline_mode = #tpu.pipeline_mode<synchronous>, transform_indices = @transform_19, window_bounds = array<i64: 16, 36>}, {pipeline_mode = #tpu.pipeline_mode<synchronous>, transform_indices = @transform_20, window_bounds = array<i64: 16, 1>}, {pipeline_mode = #tpu.pipeline_mode<synchronous>, transform_indices = @transform_21, window_bounds = array<i64: 16, 4>}, {transform_indices = @transform_22, window_bounds = array<i64: 1, 16, 256>}]} {
    %c0 = arith.constant 0 : index
    %c0_0 = arith.constant 0 : index
    %c0_1 = arith.constant 0 : index
    %0 = vector.load %arg1[%c0, %c0_0, %c0_1] : memref<1x16x256xf32, #tpu.memory_space<vmem>>, vector<1x16x256xf32>
    %1 = vector.shape_cast %0 : vector<1x16x256xf32> to vector<16x256xf32>
    %c17_i32 = arith.constant 17 : i32
    %2 = tpu.dynamic_rotate %1 by %c17_i32 dim 1 : vector<16x256xf32>, i32 -> vector<16x256xf32>
    %c0_2 = arith.constant 0 : index
    %c0_3 = arith.constant 0 : index
    %c0_4 = arith.constant 0 : index
    %3 = vector.load %arg3[%c0_2, %c0_3, %c0_4] : memref<9x1x256xf32, #tpu.memory_space<vmem>>, vector<1x1x256xf32>
    %4 = vector.shape_cast %3 : vector<1x1x256xf32> to vector<1x256xf32>
    %5 = vector.broadcast %4 : vector<1x256xf32> to vector<16x256xf32>
    %6 = arith.mulf %2, %5 : vector<16x256xf32>
    %c16_i32 = arith.constant 16 : i32
    %7 = tpu.dynamic_rotate %1 by %c16_i32 dim 1 : vector<16x256xf32>, i32 -> vector<16x256xf32>
    %c1 = arith.constant 1 : index
    %c0_5 = arith.constant 0 : index
    %c0_6 = arith.constant 0 : index
    %8 = vector.load %arg3[%c1, %c0_5, %c0_6] : memref<9x1x256xf32, #tpu.memory_space<vmem>>, vector<1x1x256xf32>
    %9 = vector.shape_cast %8 : vector<1x1x256xf32> to vector<1x256xf32>
    %10 = vector.broadcast %9 : vector<1x256xf32> to vector<16x256xf32>
    %11 = arith.mulf %7, %10 : vector<16x256xf32>
    %c15_i32 = arith.constant 15 : i32
    %12 = tpu.dynamic_rotate %1 by %c15_i32 dim 1 : vector<16x256xf32>, i32 -> vector<16x256xf32>
    %c2 = arith.constant 2 : index
    %c0_7 = arith.constant 0 : index
    %c0_8 = arith.constant 0 : index
    %13 = vector.load %arg3[%c2, %c0_7, %c0_8] : memref<9x1x256xf32, #tpu.memory_space<vmem>>, vector<1x1x256xf32>
    %14 = vector.shape_cast %13 : vector<1x1x256xf32> to vector<1x256xf32>
    %15 = vector.broadcast %14 : vector<1x256xf32> to vector<16x256xf32>
    %16 = arith.mulf %12, %15 : vector<16x256xf32>
    %c1_i32 = arith.constant 1 : i32
    %17 = tpu.dynamic_rotate %1 by %c1_i32 dim 1 : vector<16x256xf32>, i32 -> vector<16x256xf32>
    %c3 = arith.constant 3 : index
    %c0_9 = arith.constant 0 : index
    %c0_10 = arith.constant 0 : index
    %18 = vector.load %arg3[%c3, %c0_9, %c0_10] : memref<9x1x256xf32, #tpu.memory_space<vmem>>, vector<1x1x256xf32>
    %19 = vector.shape_cast %18 : vector<1x1x256xf32> to vector<1x256xf32>
    %20 = vector.broadcast %19 : vector<1x256xf32> to vector<16x256xf32>
    %21 = arith.mulf %17, %20 : vector<16x256xf32>
    %c255_i32 = arith.constant 255 : i32
    %22 = tpu.dynamic_rotate %1 by %c255_i32 dim 1 : vector<16x256xf32>, i32 -> vector<16x256xf32>
    %c5 = arith.constant 5 : index
    %c0_11 = arith.constant 0 : index
    %c0_12 = arith.constant 0 : index
    %23 = vector.load %arg3[%c5, %c0_11, %c0_12] : memref<9x1x256xf32, #tpu.memory_space<vmem>>, vector<1x1x256xf32>
    %24 = vector.shape_cast %23 : vector<1x1x256xf32> to vector<1x256xf32>
    %25 = vector.broadcast %24 : vector<1x256xf32> to vector<16x256xf32>
    %26 = arith.mulf %22, %25 : vector<16x256xf32>
    %c241_i32 = arith.constant 241 : i32
    %27 = tpu.dynamic_rotate %1 by %c241_i32 dim 1 : vector<16x256xf32>, i32 -> vector<16x256xf32>
    %c6 = arith.constant 6 : index
    %c0_13 = arith.constant 0 : index
    %c0_14 = arith.constant 0 : index
    %28 = vector.load %arg3[%c6, %c0_13, %c0_14] : memref<9x1x256xf32, #tpu.memory_space<vmem>>, vector<1x1x256xf32>
    %29 = vector.shape_cast %28 : vector<1x1x256xf32> to vector<1x256xf32>
    %30 = vector.broadcast %29 : vector<1x256xf32> to vector<16x256xf32>
    %31 = arith.mulf %27, %30 : vector<16x256xf32>
    %c240_i32 = arith.constant 240 : i32
    %32 = tpu.dynamic_rotate %1 by %c240_i32 dim 1 : vector<16x256xf32>, i32 -> vector<16x256xf32>
    %c7 = arith.constant 7 : index
    %c0_15 = arith.constant 0 : index
    %c0_16 = arith.constant 0 : index
    %33 = vector.load %arg3[%c7, %c0_15, %c0_16] : memref<9x1x256xf32, #tpu.memory_space<vmem>>, vector<1x1x256xf32>
    %34 = vector.shape_cast %33 : vector<1x1x256xf32> to vector<1x256xf32>
    %35 = vector.broadcast %34 : vector<1x256xf32> to vector<16x256xf32>
    %36 = arith.mulf %32, %35 : vector<16x256xf32>
    %c239_i32 = arith.constant 239 : i32
    %37 = tpu.dynamic_rotate %1 by %c239_i32 dim 1 : vector<16x256xf32>, i32 -> vector<16x256xf32>
    %c8 = arith.constant 8 : index
    %c0_17 = arith.constant 0 : index
    %c0_18 = arith.constant 0 : index
    %38 = vector.load %arg3[%c8, %c0_17, %c0_18] : memref<9x1x256xf32, #tpu.memory_space<vmem>>, vector<1x1x256xf32>
    %39 = vector.shape_cast %38 : vector<1x1x256xf32> to vector<1x256xf32>
    %40 = vector.broadcast %39 : vector<1x256xf32> to vector<16x256xf32>
    %41 = arith.mulf %37, %40 : vector<16x256xf32>
    %42 = tpu.concatenate %6, %11, %16, %21, %1, %26, %31, %36, %41 in 0 : vector<16x256xf32>, vector<16x256xf32>, vector<16x256xf32>, vector<16x256xf32>, vector<16x256xf32>, vector<16x256xf32>, vector<16x256xf32>, vector<16x256xf32>, vector<16x256xf32> -> vector<144x256xf32>
    %c0_19 = arith.constant 0 : index
    %c0_20 = arith.constant 0 : index
    %43 = vector.load %arg4[%c0_19, %c0_20] : memref<16x144xf32, #tpu.memory_space<vmem>>, vector<16x144xf32>
    %cst = arith.constant dense<0.000000e+00> : vector<16x256xf32>
    %44 = tpu.matmul %43, %42, %cst {dimension_numbers = #tpu.dot_dimension_numbers<[1], [0], [0], [1], [0, 0, 1, 1], [], []>} : vector<16x144xf32>, vector<144x256xf32>, vector<16x256xf32> -> vector<16x256xf32>
    %c0_21 = arith.constant 0 : index
    %c0_22 = arith.constant 0 : index
    %45 = vector.load %arg5[%c0_21, %c0_22] : memref<16x1xf32, #tpu.memory_space<vmem>>, vector<16x1xf32>
    %46 = vector.broadcast %45 : vector<16x1xf32> to vector<16x256xf32>
    %47 = arith.addf %44, %46 : vector<16x256xf32>
    %cst_23 = arith.constant 0.000000e+00 : f32
    %48 = vector.broadcast %cst_23 : f32 to vector<16x256xf32>
    %49 = arith.maximumf %47, %48 : vector<16x256xf32>
    %cst_24 = arith.constant dense<0.000000e+00> : vector<16xf32>
    %50 = vector.multi_reduction <add>, %49, %cst_24 [1] : vector<16x256xf32> to vector<16xf32>
    %51 = vector.shape_cast %50 : vector<16xf32> to vector<16x1xf32>
    %cst_25 = arith.constant 2.560000e+02 : f32
    %52 = vector.broadcast %cst_25 : f32 to vector<16x1xf32>
    %53 = arith.divf %51, %52 : vector<16x1xf32>
    %54 = arith.mulf %49, %49 : vector<16x256xf32>
    %cst_26 = arith.constant dense<0.000000e+00> : vector<16xf32>
    %55 = vector.multi_reduction <add>, %54, %cst_26 [1] : vector<16x256xf32> to vector<16xf32>
    %56 = vector.shape_cast %55 : vector<16xf32> to vector<16x1xf32>
    %cst_27 = arith.constant 2.560000e+02 : f32
    %57 = vector.broadcast %cst_27 : f32 to vector<16x1xf32>
    %58 = arith.divf %56, %57 : vector<16x1xf32>
    %c0_28 = arith.constant 0 : index
    %c0_29 = arith.constant 0 : index
    %59 = vector.load %arg8[%c0_28, %c0_29] : memref<16x16xf32, #tpu.memory_space<vmem>>, vector<16x16xf32>
    %60 = tpu.concatenate %53, %58 in 1 : vector<16x1xf32>, vector<16x1xf32> -> vector<16x2xf32>
    %cst_30 = arith.constant dense<0.000000e+00> : vector<16x2xf32>
    %61 = tpu.matmul %59, %60, %cst_30 {dimension_numbers = #tpu.dot_dimension_numbers<[1], [0], [0], [1], [0, 0, 1, 1], [], []>} : vector<16x16xf32>, vector<16x2xf32>, vector<16x2xf32> -> vector<16x2xf32>
    %62 = vector.extract_strided_slice %61 {offsets = [0, 0], sizes = [16, 1], strides = [1, 1]} : vector<16x2xf32> to vector<16x1xf32>
    %63 = vector.extract_strided_slice %61 {offsets = [0, 1], sizes = [16, 1], strides = [1, 1]} : vector<16x2xf32> to vector<16x1xf32>
    %64 = arith.mulf %62, %62 : vector<16x1xf32>
    %65 = arith.subf %63, %64 : vector<16x1xf32>
    %cst_31 = arith.constant 0.000000e+00 : f32
    %66 = vector.broadcast %cst_31 : f32 to vector<16x1xf32>
    %67 = arith.maximumf %65, %66 : vector<16x1xf32>
    %68 = vector.broadcast %62 : vector<16x1xf32> to vector<16x256xf32>
    %69 = arith.subf %49, %68 : vector<16x256xf32>
    %cst_32 = arith.constant 9.99999974E-6 : f32
    %70 = vector.broadcast %cst_32 : f32 to vector<16x1xf32>
    %71 = arith.addf %67, %70 : vector<16x1xf32>
    %72 = math.rsqrt %71 : vector<16x1xf32>
    %73 = vector.broadcast %72 : vector<16x1xf32> to vector<16x256xf32>
    %74 = arith.mulf %69, %73 : vector<16x256xf32>
    %c0_33 = arith.constant 0 : index
    %c0_34 = arith.constant 0 : index
    %75 = vector.load %arg9[%c0_33, %c0_34] : memref<16x1xf32, #tpu.memory_space<vmem>>, vector<16x1xf32>
    %76 = vector.broadcast %75 : vector<16x1xf32> to vector<16x256xf32>
    %77 = arith.mulf %74, %76 : vector<16x256xf32>
    %c0_35 = arith.constant 0 : index
    %c0_36 = arith.constant 0 : index
    %78 = vector.load %arg10[%c0_35, %c0_36] : memref<16x1xf32, #tpu.memory_space<vmem>>, vector<16x1xf32>
    %79 = vector.broadcast %78 : vector<16x1xf32> to vector<16x256xf32>
    %80 = arith.addf %77, %79 : vector<16x256xf32>
    %cst_37 = arith.constant 0.000000e+00 : f32
    %81 = vector.broadcast %cst_37 : f32 to vector<16x256xf32>
    %82 = arith.subf %81, %80 : vector<16x256xf32>
    %83 = math.exp %82 : vector<16x256xf32>
    %cst_38 = arith.constant 1.000000e+00 : f32
    %84 = vector.broadcast %cst_38 : f32 to vector<16x256xf32>
    %85 = arith.addf %84, %83 : vector<16x256xf32>
    %cst_39 = arith.constant 1.000000e+00 : f32
    %86 = vector.broadcast %cst_39 : f32 to vector<16x256xf32>
    %87 = arith.divf %86, %85 : vector<16x256xf32>
    %88 = arith.mulf %87, %49 : vector<16x256xf32>
    %cst_40 = arith.constant 5.000000e-01 : f32
    %89 = vector.broadcast %cst_40 : f32 to vector<16x256xf32>
    %90 = arith.cmpf ogt, %87, %89 : vector<16x256xf32>
    %91 = arith.select %90, %49, %88 : vector<16x256xi1>, vector<16x256xf32>
    %cst_41 = arith.constant 0.000000e+00 : f32
    %92 = vector.broadcast %cst_41 : f32 to vector<16x256xf32>
    %93 = arith.select %90, %92, %88 : vector<16x256xi1>, vector<16x256xf32>
    %94 = vector.extract_strided_slice %91 {offsets = [0, 0], sizes = [8, 256], strides = [1, 1]} : vector<16x256xf32> to vector<8x256xf32>
    %95 = vector.extract_strided_slice %93 {offsets = [8, 0], sizes = [8, 256], strides = [1, 1]} : vector<16x256xf32> to vector<8x256xf32>
    %96 = arith.addf %94, %95 : vector<8x256xf32>
    %97 = vector.extract_strided_slice %91 {offsets = [8, 0], sizes = [8, 256], strides = [1, 1]} : vector<16x256xf32> to vector<8x256xf32>
    %98 = vector.extract_strided_slice %93 {offsets = [0, 0], sizes = [8, 256], strides = [1, 1]} : vector<16x256xf32> to vector<8x256xf32>
    %99 = arith.addf %97, %98 : vector<8x256xf32>
    %100 = tpu.concatenate %96, %99 in 0 : vector<8x256xf32>, vector<8x256xf32> -> vector<16x256xf32>
    %c0_42 = arith.constant 0 : index
    %c0_43 = arith.constant 0 : index
    %101 = vector.load %arg11[%c0_42, %c0_43] : memref<4x8xf32, #tpu.memory_space<vmem>>, vector<4x8xf32>
    %102 = vector.extract_strided_slice %100 {offsets = [0, 0], sizes = [8, 256], strides = [1, 1]} : vector<16x256xf32> to vector<8x256xf32>
    %cst_44 = arith.constant dense<0.000000e+00> : vector<4x256xf32>
    %103 = tpu.matmul %101, %102, %cst_44 {dimension_numbers = #tpu.dot_dimension_numbers<[1], [0], [0], [1], [0, 0, 1, 1], [], []>} : vector<4x8xf32>, vector<8x256xf32>, vector<4x256xf32> -> vector<4x256xf32>
    %c0_45 = arith.constant 0 : index
    %c0_46 = arith.constant 0 : index
    %104 = vector.load %arg12[%c0_45, %c0_46] : memref<4x8xf32, #tpu.memory_space<vmem>>, vector<4x8xf32>
    %105 = vector.extract_strided_slice %100 {offsets = [8, 0], sizes = [8, 256], strides = [1, 1]} : vector<16x256xf32> to vector<8x256xf32>
    %cst_47 = arith.constant dense<0.000000e+00> : vector<4x256xf32>
    %106 = tpu.matmul %104, %105, %cst_47 {dimension_numbers = #tpu.dot_dimension_numbers<[1], [0], [0], [1], [0, 0, 1, 1], [], []>} : vector<4x8xf32>, vector<8x256xf32>, vector<4x256xf32> -> vector<4x256xf32>
    %c17_i32_48 = arith.constant 17 : i32
    %107 = tpu.dynamic_rotate %103 by %c17_i32_48 dim 1 : vector<4x256xf32>, i32 -> vector<4x256xf32>
    %c0_49 = arith.constant 0 : index
    %c0_50 = arith.constant 0 : index
    %c0_51 = arith.constant 0 : index
    %108 = vector.load %arg3[%c0_49, %c0_50, %c0_51] : memref<9x1x256xf32, #tpu.memory_space<vmem>>, vector<1x1x256xf32>
    %109 = vector.shape_cast %108 : vector<1x1x256xf32> to vector<1x256xf32>
    %110 = vector.broadcast %109 : vector<1x256xf32> to vector<4x256xf32>
    %111 = arith.mulf %107, %110 : vector<4x256xf32>
    %c16_i32_52 = arith.constant 16 : i32
    %112 = tpu.dynamic_rotate %103 by %c16_i32_52 dim 1 : vector<4x256xf32>, i32 -> vector<4x256xf32>
    %c1_53 = arith.constant 1 : index
    %c0_54 = arith.constant 0 : index
    %c0_55 = arith.constant 0 : index
    %113 = vector.load %arg3[%c1_53, %c0_54, %c0_55] : memref<9x1x256xf32, #tpu.memory_space<vmem>>, vector<1x1x256xf32>
    %114 = vector.shape_cast %113 : vector<1x1x256xf32> to vector<1x256xf32>
    %115 = vector.broadcast %114 : vector<1x256xf32> to vector<4x256xf32>
    %116 = arith.mulf %112, %115 : vector<4x256xf32>
    %c15_i32_56 = arith.constant 15 : i32
    %117 = tpu.dynamic_rotate %103 by %c15_i32_56 dim 1 : vector<4x256xf32>, i32 -> vector<4x256xf32>
    %c2_57 = arith.constant 2 : index
    %c0_58 = arith.constant 0 : index
    %c0_59 = arith.constant 0 : index
    %118 = vector.load %arg3[%c2_57, %c0_58, %c0_59] : memref<9x1x256xf32, #tpu.memory_space<vmem>>, vector<1x1x256xf32>
    %119 = vector.shape_cast %118 : vector<1x1x256xf32> to vector<1x256xf32>
    %120 = vector.broadcast %119 : vector<1x256xf32> to vector<4x256xf32>
    %121 = arith.mulf %117, %120 : vector<4x256xf32>
    %c1_i32_60 = arith.constant 1 : i32
    %122 = tpu.dynamic_rotate %103 by %c1_i32_60 dim 1 : vector<4x256xf32>, i32 -> vector<4x256xf32>
    %c3_61 = arith.constant 3 : index
    %c0_62 = arith.constant 0 : index
    %c0_63 = arith.constant 0 : index
    %123 = vector.load %arg3[%c3_61, %c0_62, %c0_63] : memref<9x1x256xf32, #tpu.memory_space<vmem>>, vector<1x1x256xf32>
    %124 = vector.shape_cast %123 : vector<1x1x256xf32> to vector<1x256xf32>
    %125 = vector.broadcast %124 : vector<1x256xf32> to vector<4x256xf32>
    %126 = arith.mulf %122, %125 : vector<4x256xf32>
    %c255_i32_64 = arith.constant 255 : i32
    %127 = tpu.dynamic_rotate %103 by %c255_i32_64 dim 1 : vector<4x256xf32>, i32 -> vector<4x256xf32>
    %c5_65 = arith.constant 5 : index
    %c0_66 = arith.constant 0 : index
    %c0_67 = arith.constant 0 : index
    %128 = vector.load %arg3[%c5_65, %c0_66, %c0_67] : memref<9x1x256xf32, #tpu.memory_space<vmem>>, vector<1x1x256xf32>
    %129 = vector.shape_cast %128 : vector<1x1x256xf32> to vector<1x256xf32>
    %130 = vector.broadcast %129 : vector<1x256xf32> to vector<4x256xf32>
    %131 = arith.mulf %127, %130 : vector<4x256xf32>
    %c241_i32_68 = arith.constant 241 : i32
    %132 = tpu.dynamic_rotate %103 by %c241_i32_68 dim 1 : vector<4x256xf32>, i32 -> vector<4x256xf32>
    %c6_69 = arith.constant 6 : index
    %c0_70 = arith.constant 0 : index
    %c0_71 = arith.constant 0 : index
    %133 = vector.load %arg3[%c6_69, %c0_70, %c0_71] : memref<9x1x256xf32, #tpu.memory_space<vmem>>, vector<1x1x256xf32>
    %134 = vector.shape_cast %133 : vector<1x1x256xf32> to vector<1x256xf32>
    %135 = vector.broadcast %134 : vector<1x256xf32> to vector<4x256xf32>
    %136 = arith.mulf %132, %135 : vector<4x256xf32>
    %c240_i32_72 = arith.constant 240 : i32
    %137 = tpu.dynamic_rotate %103 by %c240_i32_72 dim 1 : vector<4x256xf32>, i32 -> vector<4x256xf32>
    %c7_73 = arith.constant 7 : index
    %c0_74 = arith.constant 0 : index
    %c0_75 = arith.constant 0 : index
    %138 = vector.load %arg3[%c7_73, %c0_74, %c0_75] : memref<9x1x256xf32, #tpu.memory_space<vmem>>, vector<1x1x256xf32>
    %139 = vector.shape_cast %138 : vector<1x1x256xf32> to vector<1x256xf32>
    %140 = vector.broadcast %139 : vector<1x256xf32> to vector<4x256xf32>
    %141 = arith.mulf %137, %140 : vector<4x256xf32>
    %c239_i32_76 = arith.constant 239 : i32
    %142 = tpu.dynamic_rotate %103 by %c239_i32_76 dim 1 : vector<4x256xf32>, i32 -> vector<4x256xf32>
    %c8_77 = arith.constant 8 : index
    %c0_78 = arith.constant 0 : index
    %c0_79 = arith.constant 0 : index
    %143 = vector.load %arg3[%c8_77, %c0_78, %c0_79] : memref<9x1x256xf32, #tpu.memory_space<vmem>>, vector<1x1x256xf32>
    %144 = vector.shape_cast %143 : vector<1x1x256xf32> to vector<1x256xf32>
    %145 = vector.broadcast %144 : vector<1x256xf32> to vector<4x256xf32>
    %146 = arith.mulf %142, %145 : vector<4x256xf32>
    %c0_80 = arith.constant 0 : index
    %c0_81 = arith.constant 0 : index
    %147 = vector.load %arg13[%c0_80, %c0_81] : memref<16x36xf32, #tpu.memory_space<vmem>>, vector<16x36xf32>
    %cst_82 = arith.constant 0.000000e+00 : f32
    %148 = vector.broadcast %cst_82 : f32 to vector<16x256xf32>
    %149 = vector.extract_strided_slice %147 {offsets = [0, 0], sizes = [16, 4], strides = [1, 1]} : vector<16x36xf32> to vector<16x4xf32>
    %cst_83 = arith.constant dense<0.000000e+00> : vector<16x256xf32>
    %150 = tpu.matmul %149, %111, %cst_83 {dimension_numbers = #tpu.dot_dimension_numbers<[1], [0], [0], [1], [0, 0, 1, 1], [], []>} : vector<16x4xf32>, vector<4x256xf32>, vector<16x256xf32> -> vector<16x256xf32>
    %151 = arith.addf %148, %150 : vector<16x256xf32>
    %152 = vector.extract_strided_slice %147 {offsets = [0, 4], sizes = [16, 4], strides = [1, 1]} : vector<16x36xf32> to vector<16x4xf32>
    %cst_84 = arith.constant dense<0.000000e+00> : vector<16x256xf32>
    %153 = tpu.matmul %152, %116, %cst_84 {dimension_numbers = #tpu.dot_dimension_numbers<[1], [0], [0], [1], [0, 0, 1, 1], [], []>} : vector<16x4xf32>, vector<4x256xf32>, vector<16x256xf32> -> vector<16x256xf32>
    %154 = arith.addf %151, %153 : vector<16x256xf32>
    %155 = vector.extract_strided_slice %147 {offsets = [0, 8], sizes = [16, 4], strides = [1, 1]} : vector<16x36xf32> to vector<16x4xf32>
    %cst_85 = arith.constant dense<0.000000e+00> : vector<16x256xf32>
    %156 = tpu.matmul %155, %121, %cst_85 {dimension_numbers = #tpu.dot_dimension_numbers<[1], [0], [0], [1], [0, 0, 1, 1], [], []>} : vector<16x4xf32>, vector<4x256xf32>, vector<16x256xf32> -> vector<16x256xf32>
    %157 = arith.addf %154, %156 : vector<16x256xf32>
    %158 = vector.extract_strided_slice %147 {offsets = [0, 12], sizes = [16, 4], strides = [1, 1]} : vector<16x36xf32> to vector<16x4xf32>
    %cst_86 = arith.constant dense<0.000000e+00> : vector<16x256xf32>
    %159 = tpu.matmul %158, %126, %cst_86 {dimension_numbers = #tpu.dot_dimension_numbers<[1], [0], [0], [1], [0, 0, 1, 1], [], []>} : vector<16x4xf32>, vector<4x256xf32>, vector<16x256xf32> -> vector<16x256xf32>
    %160 = arith.addf %157, %159 : vector<16x256xf32>
    %161 = vector.extract_strided_slice %147 {offsets = [0, 16], sizes = [16, 4], strides = [1, 1]} : vector<16x36xf32> to vector<16x4xf32>
    %cst_87 = arith.constant dense<0.000000e+00> : vector<16x256xf32>
    %162 = tpu.matmul %161, %103, %cst_87 {dimension_numbers = #tpu.dot_dimension_numbers<[1], [0], [0], [1], [0, 0, 1, 1], [], []>} : vector<16x4xf32>, vector<4x256xf32>, vector<16x256xf32> -> vector<16x256xf32>
    %163 = arith.addf %160, %162 : vector<16x256xf32>
    %164 = vector.extract_strided_slice %147 {offsets = [0, 20], sizes = [16, 4], strides = [1, 1]} : vector<16x36xf32> to vector<16x4xf32>
    %cst_88 = arith.constant dense<0.000000e+00> : vector<16x256xf32>
    %165 = tpu.matmul %164, %131, %cst_88 {dimension_numbers = #tpu.dot_dimension_numbers<[1], [0], [0], [1], [0, 0, 1, 1], [], []>} : vector<16x4xf32>, vector<4x256xf32>, vector<16x256xf32> -> vector<16x256xf32>
    %166 = arith.addf %163, %165 : vector<16x256xf32>
    %167 = vector.extract_strided_slice %147 {offsets = [0, 24], sizes = [16, 4], strides = [1, 1]} : vector<16x36xf32> to vector<16x4xf32>
    %cst_89 = arith.constant dense<0.000000e+00> : vector<16x256xf32>
    %168 = tpu.matmul %167, %136, %cst_89 {dimension_numbers = #tpu.dot_dimension_numbers<[1], [0], [0], [1], [0, 0, 1, 1], [], []>} : vector<16x4xf32>, vector<4x256xf32>, vector<16x256xf32> -> vector<16x256xf32>
    %169 = arith.addf %166, %168 : vector<16x256xf32>
    %170 = vector.extract_strided_slice %147 {offsets = [0, 28], sizes = [16, 4], strides = [1, 1]} : vector<16x36xf32> to vector<16x4xf32>
    %cst_90 = arith.constant dense<0.000000e+00> : vector<16x256xf32>
    %171 = tpu.matmul %170, %141, %cst_90 {dimension_numbers = #tpu.dot_dimension_numbers<[1], [0], [0], [1], [0, 0, 1, 1], [], []>} : vector<16x4xf32>, vector<4x256xf32>, vector<16x256xf32> -> vector<16x256xf32>
    %172 = arith.addf %169, %171 : vector<16x256xf32>
    %173 = vector.extract_strided_slice %147 {offsets = [0, 32], sizes = [16, 4], strides = [1, 1]} : vector<16x36xf32> to vector<16x4xf32>
    %cst_91 = arith.constant dense<0.000000e+00> : vector<16x256xf32>
    %174 = tpu.matmul %173, %146, %cst_91 {dimension_numbers = #tpu.dot_dimension_numbers<[1], [0], [0], [1], [0, 0, 1, 1], [], []>} : vector<16x4xf32>, vector<4x256xf32>, vector<16x256xf32> -> vector<16x256xf32>
    %175 = arith.addf %172, %174 : vector<16x256xf32>
    %c0_92 = arith.constant 0 : index
    %c0_93 = arith.constant 0 : index
    %176 = vector.load %arg14[%c0_92, %c0_93] : memref<16x1xf32, #tpu.memory_space<vmem>>, vector<16x1xf32>
    %177 = vector.broadcast %176 : vector<16x1xf32> to vector<16x256xf32>
    %178 = arith.addf %175, %177 : vector<16x256xf32>
    %c0_94 = arith.constant 0 : index
    %c0_95 = arith.constant 0 : index
    %179 = vector.load %arg15[%c0_94, %c0_95] : memref<16x4xf32, #tpu.memory_space<vmem>>, vector<16x4xf32>
    %cst_96 = arith.constant dense<0.000000e+00> : vector<16x256xf32>
    %180 = tpu.matmul %179, %106, %cst_96 {dimension_numbers = #tpu.dot_dimension_numbers<[1], [0], [0], [1], [0, 0, 1, 1], [], []>} : vector<16x4xf32>, vector<4x256xf32>, vector<16x256xf32> -> vector<16x256xf32>
    %cst_97 = arith.constant dense<0.000000e+00> : vector<16xf32>
    %181 = vector.multi_reduction <add>, %178, %cst_97 [1] : vector<16x256xf32> to vector<16xf32>
    %182 = vector.shape_cast %181 : vector<16xf32> to vector<16x1xf32>
    %cst_98 = arith.constant 2.560000e+02 : f32
    %183 = vector.broadcast %cst_98 : f32 to vector<16x1xf32>
    %184 = arith.divf %182, %183 : vector<16x1xf32>
    %cst_99 = arith.constant dense<0.000000e+00> : vector<16xf32>
    %185 = vector.multi_reduction <add>, %180, %cst_99 [1] : vector<16x256xf32> to vector<16xf32>
    %186 = vector.shape_cast %185 : vector<16xf32> to vector<16x1xf32>
    %cst_100 = arith.constant 2.560000e+02 : f32
    %187 = vector.broadcast %cst_100 : f32 to vector<16x1xf32>
    %188 = arith.divf %186, %187 : vector<16x1xf32>
    %cst_101 = arith.constant dense<0xFF800000> : vector<1xf32>
    %189 = vector.multi_reduction <maximumf>, %184, %cst_101 [0] : vector<16x1xf32> to vector<1xf32>
    %190 = vector.shape_cast %189 : vector<1xf32> to vector<1x1xf32>
    %cst_102 = arith.constant dense<0xFF800000> : vector<1xf32>
    %191 = vector.multi_reduction <maximumf>, %188, %cst_102 [0] : vector<16x1xf32> to vector<1xf32>
    %192 = vector.shape_cast %191 : vector<1xf32> to vector<1x1xf32>
    %193 = arith.maximumf %190, %192 : vector<1x1xf32>
    %194 = vector.broadcast %193 : vector<1x1xf32> to vector<16x1xf32>
    %195 = arith.subf %184, %194 : vector<16x1xf32>
    %196 = math.exp %195 : vector<16x1xf32>
    %197 = vector.broadcast %193 : vector<1x1xf32> to vector<16x1xf32>
    %198 = arith.subf %188, %197 : vector<16x1xf32>
    %199 = math.exp %198 : vector<16x1xf32>
    %cst_103 = arith.constant dense<0.000000e+00> : vector<1xf32>
    %200 = vector.multi_reduction <add>, %196, %cst_103 [0] : vector<16x1xf32> to vector<1xf32>
    %201 = vector.shape_cast %200 : vector<1xf32> to vector<1x1xf32>
    %cst_104 = arith.constant dense<0.000000e+00> : vector<1xf32>
    %202 = vector.multi_reduction <add>, %199, %cst_104 [0] : vector<16x1xf32> to vector<1xf32>
    %203 = vector.shape_cast %202 : vector<1xf32> to vector<1x1xf32>
    %204 = arith.addf %201, %203 : vector<1x1xf32>
    %cst_105 = arith.constant 1.000000e+00 : f32
    %205 = vector.broadcast %cst_105 : f32 to vector<1x1xf32>
    %206 = arith.divf %205, %204 : vector<1x1xf32>
    %207 = vector.broadcast %206 : vector<1x1xf32> to vector<16x1xf32>
    %208 = arith.mulf %196, %207 : vector<16x1xf32>
    %209 = vector.broadcast %208 : vector<16x1xf32> to vector<16x256xf32>
    %210 = arith.mulf %178, %209 : vector<16x256xf32>
    %211 = vector.broadcast %206 : vector<1x1xf32> to vector<16x1xf32>
    %212 = arith.mulf %199, %211 : vector<16x1xf32>
    %213 = vector.broadcast %212 : vector<16x1xf32> to vector<16x256xf32>
    %214 = arith.mulf %180, %213 : vector<16x256xf32>
    %215 = arith.addf %210, %214 : vector<16x256xf32>
    %c17_i32_106 = arith.constant 17 : i32
    %216 = tpu.dynamic_rotate %215 by %c17_i32_106 dim 1 : vector<16x256xf32>, i32 -> vector<16x256xf32>
    %c0_107 = arith.constant 0 : index
    %c0_108 = arith.constant 0 : index
    %c0_109 = arith.constant 0 : index
    %217 = vector.load %arg3[%c0_107, %c0_108, %c0_109] : memref<9x1x256xf32, #tpu.memory_space<vmem>>, vector<1x1x256xf32>
    %218 = vector.shape_cast %217 : vector<1x1x256xf32> to vector<1x256xf32>
    %219 = vector.broadcast %218 : vector<1x256xf32> to vector<16x256xf32>
    %220 = arith.mulf %216, %219 : vector<16x256xf32>
    %c16_i32_110 = arith.constant 16 : i32
    %221 = tpu.dynamic_rotate %215 by %c16_i32_110 dim 1 : vector<16x256xf32>, i32 -> vector<16x256xf32>
    %c1_111 = arith.constant 1 : index
    %c0_112 = arith.constant 0 : index
    %c0_113 = arith.constant 0 : index
    %222 = vector.load %arg3[%c1_111, %c0_112, %c0_113] : memref<9x1x256xf32, #tpu.memory_space<vmem>>, vector<1x1x256xf32>
    %223 = vector.shape_cast %222 : vector<1x1x256xf32> to vector<1x256xf32>
    %224 = vector.broadcast %223 : vector<1x256xf32> to vector<16x256xf32>
    %225 = arith.mulf %221, %224 : vector<16x256xf32>
    %c15_i32_114 = arith.constant 15 : i32
    %226 = tpu.dynamic_rotate %215 by %c15_i32_114 dim 1 : vector<16x256xf32>, i32 -> vector<16x256xf32>
    %c2_115 = arith.constant 2 : index
    %c0_116 = arith.constant 0 : index
    %c0_117 = arith.constant 0 : index
    %227 = vector.load %arg3[%c2_115, %c0_116, %c0_117] : memref<9x1x256xf32, #tpu.memory_space<vmem>>, vector<1x1x256xf32>
    %228 = vector.shape_cast %227 : vector<1x1x256xf32> to vector<1x256xf32>
    %229 = vector.broadcast %228 : vector<1x256xf32> to vector<16x256xf32>
    %230 = arith.mulf %226, %229 : vector<16x256xf32>
    %c1_i32_118 = arith.constant 1 : i32
    %231 = tpu.dynamic_rotate %215 by %c1_i32_118 dim 1 : vector<16x256xf32>, i32 -> vector<16x256xf32>
    %c3_119 = arith.constant 3 : index
    %c0_120 = arith.constant 0 : index
    %c0_121 = arith.constant 0 : index
    %232 = vector.load %arg3[%c3_119, %c0_120, %c0_121] : memref<9x1x256xf32, #tpu.memory_space<vmem>>, vector<1x1x256xf32>
    %233 = vector.shape_cast %232 : vector<1x1x256xf32> to vector<1x256xf32>
    %234 = vector.broadcast %233 : vector<1x256xf32> to vector<16x256xf32>
    %235 = arith.mulf %231, %234 : vector<16x256xf32>
    %c255_i32_122 = arith.constant 255 : i32
    %236 = tpu.dynamic_rotate %215 by %c255_i32_122 dim 1 : vector<16x256xf32>, i32 -> vector<16x256xf32>
    %c5_123 = arith.constant 5 : index
    %c0_124 = arith.constant 0 : index
    %c0_125 = arith.constant 0 : index
    %237 = vector.load %arg3[%c5_123, %c0_124, %c0_125] : memref<9x1x256xf32, #tpu.memory_space<vmem>>, vector<1x1x256xf32>
    %238 = vector.shape_cast %237 : vector<1x1x256xf32> to vector<1x256xf32>
    %239 = vector.broadcast %238 : vector<1x256xf32> to vector<16x256xf32>
    %240 = arith.mulf %236, %239 : vector<16x256xf32>
    %c241_i32_126 = arith.constant 241 : i32
    %241 = tpu.dynamic_rotate %215 by %c241_i32_126 dim 1 : vector<16x256xf32>, i32 -> vector<16x256xf32>
    %c6_127 = arith.constant 6 : index
    %c0_128 = arith.constant 0 : index
    %c0_129 = arith.constant 0 : index
    %242 = vector.load %arg3[%c6_127, %c0_128, %c0_129] : memref<9x1x256xf32, #tpu.memory_space<vmem>>, vector<1x1x256xf32>
    %243 = vector.shape_cast %242 : vector<1x1x256xf32> to vector<1x256xf32>
    %244 = vector.broadcast %243 : vector<1x256xf32> to vector<16x256xf32>
    %245 = arith.mulf %241, %244 : vector<16x256xf32>
    %c240_i32_130 = arith.constant 240 : i32
    %246 = tpu.dynamic_rotate %215 by %c240_i32_130 dim 1 : vector<16x256xf32>, i32 -> vector<16x256xf32>
    %c7_131 = arith.constant 7 : index
    %c0_132 = arith.constant 0 : index
    %c0_133 = arith.constant 0 : index
    %247 = vector.load %arg3[%c7_131, %c0_132, %c0_133] : memref<9x1x256xf32, #tpu.memory_space<vmem>>, vector<1x1x256xf32>
    %248 = vector.shape_cast %247 : vector<1x1x256xf32> to vector<1x256xf32>
    %249 = vector.broadcast %248 : vector<1x256xf32> to vector<16x256xf32>
    %250 = arith.mulf %246, %249 : vector<16x256xf32>
    %c239_i32_134 = arith.constant 239 : i32
    %251 = tpu.dynamic_rotate %215 by %c239_i32_134 dim 1 : vector<16x256xf32>, i32 -> vector<16x256xf32>
    %c8_135 = arith.constant 8 : index
    %c0_136 = arith.constant 0 : index
    %c0_137 = arith.constant 0 : index
    %252 = vector.load %arg3[%c8_135, %c0_136, %c0_137] : memref<9x1x256xf32, #tpu.memory_space<vmem>>, vector<1x1x256xf32>
    %253 = vector.shape_cast %252 : vector<1x1x256xf32> to vector<1x256xf32>
    %254 = vector.broadcast %253 : vector<1x256xf32> to vector<16x256xf32>
    %255 = arith.mulf %251, %254 : vector<16x256xf32>
    %256 = tpu.concatenate %220, %225, %230, %235, %215, %240, %245, %250, %255 in 0 : vector<16x256xf32>, vector<16x256xf32>, vector<16x256xf32>, vector<16x256xf32>, vector<16x256xf32>, vector<16x256xf32>, vector<16x256xf32>, vector<16x256xf32>, vector<16x256xf32> -> vector<144x256xf32>
    %c0_138 = arith.constant 0 : index
    %c0_139 = arith.constant 0 : index
    %257 = vector.load %arg6[%c0_138, %c0_139] : memref<16x144xf32, #tpu.memory_space<vmem>>, vector<16x144xf32>
    %cst_140 = arith.constant dense<0.000000e+00> : vector<16x256xf32>
    %258 = tpu.matmul %257, %256, %cst_140 {dimension_numbers = #tpu.dot_dimension_numbers<[1], [0], [0], [1], [0, 0, 1, 1], [], []>} : vector<16x144xf32>, vector<144x256xf32>, vector<16x256xf32> -> vector<16x256xf32>
    %c0_141 = arith.constant 0 : index
    %c0_142 = arith.constant 0 : index
    %259 = vector.load %arg7[%c0_141, %c0_142] : memref<16x1xf32, #tpu.memory_space<vmem>>, vector<16x1xf32>
    %260 = vector.broadcast %259 : vector<16x1xf32> to vector<16x256xf32>
    %261 = arith.addf %258, %260 : vector<16x256xf32>
    %cst_143 = arith.constant dense<0.000000e+00> : vector<16xf32>
    %262 = vector.multi_reduction <add>, %261, %cst_143 [1] : vector<16x256xf32> to vector<16xf32>
    %263 = vector.shape_cast %262 : vector<16xf32> to vector<16x1xf32>
    %cst_144 = arith.constant 2.560000e+02 : f32
    %264 = vector.broadcast %cst_144 : f32 to vector<16x1xf32>
    %265 = arith.divf %263, %264 : vector<16x1xf32>
    %266 = arith.mulf %261, %261 : vector<16x256xf32>
    %cst_145 = arith.constant dense<0.000000e+00> : vector<16xf32>
    %267 = vector.multi_reduction <add>, %266, %cst_145 [1] : vector<16x256xf32> to vector<16xf32>
    %268 = vector.shape_cast %267 : vector<16xf32> to vector<16x1xf32>
    %cst_146 = arith.constant 2.560000e+02 : f32
    %269 = vector.broadcast %cst_146 : f32 to vector<16x1xf32>
    %270 = arith.divf %268, %269 : vector<16x1xf32>
    %c0_147 = arith.constant 0 : index
    %c0_148 = arith.constant 0 : index
    %271 = vector.load %arg8[%c0_147, %c0_148] : memref<16x16xf32, #tpu.memory_space<vmem>>, vector<16x16xf32>
    %272 = tpu.concatenate %265, %270 in 1 : vector<16x1xf32>, vector<16x1xf32> -> vector<16x2xf32>
    %cst_149 = arith.constant dense<0.000000e+00> : vector<16x2xf32>
    %273 = tpu.matmul %271, %272, %cst_149 {dimension_numbers = #tpu.dot_dimension_numbers<[1], [0], [0], [1], [0, 0, 1, 1], [], []>} : vector<16x16xf32>, vector<16x2xf32>, vector<16x2xf32> -> vector<16x2xf32>
    %274 = vector.extract_strided_slice %273 {offsets = [0, 0], sizes = [16, 1], strides = [1, 1]} : vector<16x2xf32> to vector<16x1xf32>
    %275 = vector.extract_strided_slice %273 {offsets = [0, 1], sizes = [16, 1], strides = [1, 1]} : vector<16x2xf32> to vector<16x1xf32>
    %276 = arith.mulf %274, %274 : vector<16x1xf32>
    %277 = arith.subf %275, %276 : vector<16x1xf32>
    %cst_150 = arith.constant 0.000000e+00 : f32
    %278 = vector.broadcast %cst_150 : f32 to vector<16x1xf32>
    %279 = arith.maximumf %277, %278 : vector<16x1xf32>
    %280 = vector.broadcast %274 : vector<16x1xf32> to vector<16x256xf32>
    %281 = arith.subf %261, %280 : vector<16x256xf32>
    %cst_151 = arith.constant 9.99999974E-6 : f32
    %282 = vector.broadcast %cst_151 : f32 to vector<16x1xf32>
    %283 = arith.addf %279, %282 : vector<16x1xf32>
    %284 = math.rsqrt %283 : vector<16x1xf32>
    %285 = vector.broadcast %284 : vector<16x1xf32> to vector<16x256xf32>
    %286 = arith.mulf %281, %285 : vector<16x256xf32>
    %c0_152 = arith.constant 0 : index
    %c0_153 = arith.constant 0 : index
    %287 = vector.load %arg16[%c0_152, %c0_153] : memref<16x1xf32, #tpu.memory_space<vmem>>, vector<16x1xf32>
    %288 = vector.broadcast %287 : vector<16x1xf32> to vector<16x256xf32>
    %289 = arith.mulf %286, %288 : vector<16x256xf32>
    %c0_154 = arith.constant 0 : index
    %c0_155 = arith.constant 0 : index
    %290 = vector.load %arg17[%c0_154, %c0_155] : memref<16x1xf32, #tpu.memory_space<vmem>>, vector<16x1xf32>
    %291 = vector.broadcast %290 : vector<16x1xf32> to vector<16x256xf32>
    %292 = arith.addf %289, %291 : vector<16x256xf32>
    %cst_156 = arith.constant 0.000000e+00 : f32
    %293 = vector.broadcast %cst_156 : f32 to vector<16x256xf32>
    %294 = arith.subf %293, %292 : vector<16x256xf32>
    %295 = math.exp %294 : vector<16x256xf32>
    %cst_157 = arith.constant 1.000000e+00 : f32
    %296 = vector.broadcast %cst_157 : f32 to vector<16x256xf32>
    %297 = arith.addf %296, %295 : vector<16x256xf32>
    %cst_158 = arith.constant 1.000000e+00 : f32
    %298 = vector.broadcast %cst_158 : f32 to vector<16x256xf32>
    %299 = arith.divf %298, %297 : vector<16x256xf32>
    %300 = arith.mulf %299, %261 : vector<16x256xf32>
    %cst_159 = arith.constant 5.000000e-01 : f32
    %301 = vector.broadcast %cst_159 : f32 to vector<16x256xf32>
    %302 = arith.cmpf ogt, %299, %301 : vector<16x256xf32>
    %303 = arith.select %302, %261, %300 : vector<16x256xi1>, vector<16x256xf32>
    %cst_160 = arith.constant 0.000000e+00 : f32
    %304 = vector.broadcast %cst_160 : f32 to vector<16x256xf32>
    %305 = arith.select %302, %304, %300 : vector<16x256xi1>, vector<16x256xf32>
    %306 = vector.extract_strided_slice %303 {offsets = [0, 0], sizes = [8, 256], strides = [1, 1]} : vector<16x256xf32> to vector<8x256xf32>
    %307 = vector.extract_strided_slice %305 {offsets = [8, 0], sizes = [8, 256], strides = [1, 1]} : vector<16x256xf32> to vector<8x256xf32>
    %308 = arith.addf %306, %307 : vector<8x256xf32>
    %309 = vector.extract_strided_slice %303 {offsets = [8, 0], sizes = [8, 256], strides = [1, 1]} : vector<16x256xf32> to vector<8x256xf32>
    %310 = vector.extract_strided_slice %305 {offsets = [0, 0], sizes = [8, 256], strides = [1, 1]} : vector<16x256xf32> to vector<8x256xf32>
    %311 = arith.addf %309, %310 : vector<8x256xf32>
    %312 = tpu.concatenate %308, %311 in 0 : vector<8x256xf32>, vector<8x256xf32> -> vector<16x256xf32>
    %c0_161 = arith.constant 0 : index
    %c0_162 = arith.constant 0 : index
    %313 = vector.load %arg18[%c0_161, %c0_162] : memref<4x8xf32, #tpu.memory_space<vmem>>, vector<4x8xf32>
    %314 = vector.extract_strided_slice %312 {offsets = [0, 0], sizes = [8, 256], strides = [1, 1]} : vector<16x256xf32> to vector<8x256xf32>
    %cst_163 = arith.constant dense<0.000000e+00> : vector<4x256xf32>
    %315 = tpu.matmul %313, %314, %cst_163 {dimension_numbers = #tpu.dot_dimension_numbers<[1], [0], [0], [1], [0, 0, 1, 1], [], []>} : vector<4x8xf32>, vector<8x256xf32>, vector<4x256xf32> -> vector<4x256xf32>
    %c0_164 = arith.constant 0 : index
    %c0_165 = arith.constant 0 : index
    %316 = vector.load %arg19[%c0_164, %c0_165] : memref<4x8xf32, #tpu.memory_space<vmem>>, vector<4x8xf32>
    %317 = vector.extract_strided_slice %312 {offsets = [8, 0], sizes = [8, 256], strides = [1, 1]} : vector<16x256xf32> to vector<8x256xf32>
    %cst_166 = arith.constant dense<0.000000e+00> : vector<4x256xf32>
    %318 = tpu.matmul %316, %317, %cst_166 {dimension_numbers = #tpu.dot_dimension_numbers<[1], [0], [0], [1], [0, 0, 1, 1], [], []>} : vector<4x8xf32>, vector<8x256xf32>, vector<4x256xf32> -> vector<4x256xf32>
    %c17_i32_167 = arith.constant 17 : i32
    %319 = tpu.dynamic_rotate %315 by %c17_i32_167 dim 1 : vector<4x256xf32>, i32 -> vector<4x256xf32>
    %c0_168 = arith.constant 0 : index
    %c0_169 = arith.constant 0 : index
    %c0_170 = arith.constant 0 : index
    %320 = vector.load %arg3[%c0_168, %c0_169, %c0_170] : memref<9x1x256xf32, #tpu.memory_space<vmem>>, vector<1x1x256xf32>
    %321 = vector.shape_cast %320 : vector<1x1x256xf32> to vector<1x256xf32>
    %322 = vector.broadcast %321 : vector<1x256xf32> to vector<4x256xf32>
    %323 = arith.mulf %319, %322 : vector<4x256xf32>
    %c16_i32_171 = arith.constant 16 : i32
    %324 = tpu.dynamic_rotate %315 by %c16_i32_171 dim 1 : vector<4x256xf32>, i32 -> vector<4x256xf32>
    %c1_172 = arith.constant 1 : index
    %c0_173 = arith.constant 0 : index
    %c0_174 = arith.constant 0 : index
    %325 = vector.load %arg3[%c1_172, %c0_173, %c0_174] : memref<9x1x256xf32, #tpu.memory_space<vmem>>, vector<1x1x256xf32>
    %326 = vector.shape_cast %325 : vector<1x1x256xf32> to vector<1x256xf32>
    %327 = vector.broadcast %326 : vector<1x256xf32> to vector<4x256xf32>
    %328 = arith.mulf %324, %327 : vector<4x256xf32>
    %c15_i32_175 = arith.constant 15 : i32
    %329 = tpu.dynamic_rotate %315 by %c15_i32_175 dim 1 : vector<4x256xf32>, i32 -> vector<4x256xf32>
    %c2_176 = arith.constant 2 : index
    %c0_177 = arith.constant 0 : index
    %c0_178 = arith.constant 0 : index
    %330 = vector.load %arg3[%c2_176, %c0_177, %c0_178] : memref<9x1x256xf32, #tpu.memory_space<vmem>>, vector<1x1x256xf32>
    %331 = vector.shape_cast %330 : vector<1x1x256xf32> to vector<1x256xf32>
    %332 = vector.broadcast %331 : vector<1x256xf32> to vector<4x256xf32>
    %333 = arith.mulf %329, %332 : vector<4x256xf32>
    %c1_i32_179 = arith.constant 1 : i32
    %334 = tpu.dynamic_rotate %315 by %c1_i32_179 dim 1 : vector<4x256xf32>, i32 -> vector<4x256xf32>
    %c3_180 = arith.constant 3 : index
    %c0_181 = arith.constant 0 : index
    %c0_182 = arith.constant 0 : index
    %335 = vector.load %arg3[%c3_180, %c0_181, %c0_182] : memref<9x1x256xf32, #tpu.memory_space<vmem>>, vector<1x1x256xf32>
    %336 = vector.shape_cast %335 : vector<1x1x256xf32> to vector<1x256xf32>
    %337 = vector.broadcast %336 : vector<1x256xf32> to vector<4x256xf32>
    %338 = arith.mulf %334, %337 : vector<4x256xf32>
    %c255_i32_183 = arith.constant 255 : i32
    %339 = tpu.dynamic_rotate %315 by %c255_i32_183 dim 1 : vector<4x256xf32>, i32 -> vector<4x256xf32>
    %c5_184 = arith.constant 5 : index
    %c0_185 = arith.constant 0 : index
    %c0_186 = arith.constant 0 : index
    %340 = vector.load %arg3[%c5_184, %c0_185, %c0_186] : memref<9x1x256xf32, #tpu.memory_space<vmem>>, vector<1x1x256xf32>
    %341 = vector.shape_cast %340 : vector<1x1x256xf32> to vector<1x256xf32>
    %342 = vector.broadcast %341 : vector<1x256xf32> to vector<4x256xf32>
    %343 = arith.mulf %339, %342 : vector<4x256xf32>
    %c241_i32_187 = arith.constant 241 : i32
    %344 = tpu.dynamic_rotate %315 by %c241_i32_187 dim 1 : vector<4x256xf32>, i32 -> vector<4x256xf32>
    %c6_188 = arith.constant 6 : index
    %c0_189 = arith.constant 0 : index
    %c0_190 = arith.constant 0 : index
    %345 = vector.load %arg3[%c6_188, %c0_189, %c0_190] : memref<9x1x256xf32, #tpu.memory_space<vmem>>, vector<1x1x256xf32>
    %346 = vector.shape_cast %345 : vector<1x1x256xf32> to vector<1x256xf32>
    %347 = vector.broadcast %346 : vector<1x256xf32> to vector<4x256xf32>
    %348 = arith.mulf %344, %347 : vector<4x256xf32>
    %c240_i32_191 = arith.constant 240 : i32
    %349 = tpu.dynamic_rotate %315 by %c240_i32_191 dim 1 : vector<4x256xf32>, i32 -> vector<4x256xf32>
    %c7_192 = arith.constant 7 : index
    %c0_193 = arith.constant 0 : index
    %c0_194 = arith.constant 0 : index
    %350 = vector.load %arg3[%c7_192, %c0_193, %c0_194] : memref<9x1x256xf32, #tpu.memory_space<vmem>>, vector<1x1x256xf32>
    %351 = vector.shape_cast %350 : vector<1x1x256xf32> to vector<1x256xf32>
    %352 = vector.broadcast %351 : vector<1x256xf32> to vector<4x256xf32>
    %353 = arith.mulf %349, %352 : vector<4x256xf32>
    %c239_i32_195 = arith.constant 239 : i32
    %354 = tpu.dynamic_rotate %315 by %c239_i32_195 dim 1 : vector<4x256xf32>, i32 -> vector<4x256xf32>
    %c8_196 = arith.constant 8 : index
    %c0_197 = arith.constant 0 : index
    %c0_198 = arith.constant 0 : index
    %355 = vector.load %arg3[%c8_196, %c0_197, %c0_198] : memref<9x1x256xf32, #tpu.memory_space<vmem>>, vector<1x1x256xf32>
    %356 = vector.shape_cast %355 : vector<1x1x256xf32> to vector<1x256xf32>
    %357 = vector.broadcast %356 : vector<1x256xf32> to vector<4x256xf32>
    %358 = arith.mulf %354, %357 : vector<4x256xf32>
    %c0_199 = arith.constant 0 : index
    %c0_200 = arith.constant 0 : index
    %359 = vector.load %arg20[%c0_199, %c0_200] : memref<16x36xf32, #tpu.memory_space<vmem>>, vector<16x36xf32>
    %cst_201 = arith.constant 0.000000e+00 : f32
    %360 = vector.broadcast %cst_201 : f32 to vector<16x256xf32>
    %361 = vector.extract_strided_slice %359 {offsets = [0, 0], sizes = [16, 4], strides = [1, 1]} : vector<16x36xf32> to vector<16x4xf32>
    %cst_202 = arith.constant dense<0.000000e+00> : vector<16x256xf32>
    %362 = tpu.matmul %361, %323, %cst_202 {dimension_numbers = #tpu.dot_dimension_numbers<[1], [0], [0], [1], [0, 0, 1, 1], [], []>} : vector<16x4xf32>, vector<4x256xf32>, vector<16x256xf32> -> vector<16x256xf32>
    %363 = arith.addf %360, %362 : vector<16x256xf32>
    %364 = vector.extract_strided_slice %359 {offsets = [0, 4], sizes = [16, 4], strides = [1, 1]} : vector<16x36xf32> to vector<16x4xf32>
    %cst_203 = arith.constant dense<0.000000e+00> : vector<16x256xf32>
    %365 = tpu.matmul %364, %328, %cst_203 {dimension_numbers = #tpu.dot_dimension_numbers<[1], [0], [0], [1], [0, 0, 1, 1], [], []>} : vector<16x4xf32>, vector<4x256xf32>, vector<16x256xf32> -> vector<16x256xf32>
    %366 = arith.addf %363, %365 : vector<16x256xf32>
    %367 = vector.extract_strided_slice %359 {offsets = [0, 8], sizes = [16, 4], strides = [1, 1]} : vector<16x36xf32> to vector<16x4xf32>
    %cst_204 = arith.constant dense<0.000000e+00> : vector<16x256xf32>
    %368 = tpu.matmul %367, %333, %cst_204 {dimension_numbers = #tpu.dot_dimension_numbers<[1], [0], [0], [1], [0, 0, 1, 1], [], []>} : vector<16x4xf32>, vector<4x256xf32>, vector<16x256xf32> -> vector<16x256xf32>
    %369 = arith.addf %366, %368 : vector<16x256xf32>
    %370 = vector.extract_strided_slice %359 {offsets = [0, 12], sizes = [16, 4], strides = [1, 1]} : vector<16x36xf32> to vector<16x4xf32>
    %cst_205 = arith.constant dense<0.000000e+00> : vector<16x256xf32>
    %371 = tpu.matmul %370, %338, %cst_205 {dimension_numbers = #tpu.dot_dimension_numbers<[1], [0], [0], [1], [0, 0, 1, 1], [], []>} : vector<16x4xf32>, vector<4x256xf32>, vector<16x256xf32> -> vector<16x256xf32>
    %372 = arith.addf %369, %371 : vector<16x256xf32>
    %373 = vector.extract_strided_slice %359 {offsets = [0, 16], sizes = [16, 4], strides = [1, 1]} : vector<16x36xf32> to vector<16x4xf32>
    %cst_206 = arith.constant dense<0.000000e+00> : vector<16x256xf32>
    %374 = tpu.matmul %373, %315, %cst_206 {dimension_numbers = #tpu.dot_dimension_numbers<[1], [0], [0], [1], [0, 0, 1, 1], [], []>} : vector<16x4xf32>, vector<4x256xf32>, vector<16x256xf32> -> vector<16x256xf32>
    %375 = arith.addf %372, %374 : vector<16x256xf32>
    %376 = vector.extract_strided_slice %359 {offsets = [0, 20], sizes = [16, 4], strides = [1, 1]} : vector<16x36xf32> to vector<16x4xf32>
    %cst_207 = arith.constant dense<0.000000e+00> : vector<16x256xf32>
    %377 = tpu.matmul %376, %343, %cst_207 {dimension_numbers = #tpu.dot_dimension_numbers<[1], [0], [0], [1], [0, 0, 1, 1], [], []>} : vector<16x4xf32>, vector<4x256xf32>, vector<16x256xf32> -> vector<16x256xf32>
    %378 = arith.addf %375, %377 : vector<16x256xf32>
    %379 = vector.extract_strided_slice %359 {offsets = [0, 24], sizes = [16, 4], strides = [1, 1]} : vector<16x36xf32> to vector<16x4xf32>
    %cst_208 = arith.constant dense<0.000000e+00> : vector<16x256xf32>
    %380 = tpu.matmul %379, %348, %cst_208 {dimension_numbers = #tpu.dot_dimension_numbers<[1], [0], [0], [1], [0, 0, 1, 1], [], []>} : vector<16x4xf32>, vector<4x256xf32>, vector<16x256xf32> -> vector<16x256xf32>
    %381 = arith.addf %378, %380 : vector<16x256xf32>
    %382 = vector.extract_strided_slice %359 {offsets = [0, 28], sizes = [16, 4], strides = [1, 1]} : vector<16x36xf32> to vector<16x4xf32>
    %cst_209 = arith.constant dense<0.000000e+00> : vector<16x256xf32>
    %383 = tpu.matmul %382, %353, %cst_209 {dimension_numbers = #tpu.dot_dimension_numbers<[1], [0], [0], [1], [0, 0, 1, 1], [], []>} : vector<16x4xf32>, vector<4x256xf32>, vector<16x256xf32> -> vector<16x256xf32>
    %384 = arith.addf %381, %383 : vector<16x256xf32>
    %385 = vector.extract_strided_slice %359 {offsets = [0, 32], sizes = [16, 4], strides = [1, 1]} : vector<16x36xf32> to vector<16x4xf32>
    %cst_210 = arith.constant dense<0.000000e+00> : vector<16x256xf32>
    %386 = tpu.matmul %385, %358, %cst_210 {dimension_numbers = #tpu.dot_dimension_numbers<[1], [0], [0], [1], [0, 0, 1, 1], [], []>} : vector<16x4xf32>, vector<4x256xf32>, vector<16x256xf32> -> vector<16x256xf32>
    %387 = arith.addf %384, %386 : vector<16x256xf32>
    %c0_211 = arith.constant 0 : index
    %c0_212 = arith.constant 0 : index
    %388 = vector.load %arg21[%c0_211, %c0_212] : memref<16x1xf32, #tpu.memory_space<vmem>>, vector<16x1xf32>
    %389 = vector.broadcast %388 : vector<16x1xf32> to vector<16x256xf32>
    %390 = arith.addf %387, %389 : vector<16x256xf32>
    %c0_213 = arith.constant 0 : index
    %c0_214 = arith.constant 0 : index
    %391 = vector.load %arg22[%c0_213, %c0_214] : memref<16x4xf32, #tpu.memory_space<vmem>>, vector<16x4xf32>
    %cst_215 = arith.constant dense<0.000000e+00> : vector<16x256xf32>
    %392 = tpu.matmul %391, %318, %cst_215 {dimension_numbers = #tpu.dot_dimension_numbers<[1], [0], [0], [1], [0, 0, 1, 1], [], []>} : vector<16x4xf32>, vector<4x256xf32>, vector<16x256xf32> -> vector<16x256xf32>
    %cst_216 = arith.constant dense<0.000000e+00> : vector<16xf32>
    %393 = vector.multi_reduction <add>, %390, %cst_216 [1] : vector<16x256xf32> to vector<16xf32>
    %394 = vector.shape_cast %393 : vector<16xf32> to vector<16x1xf32>
    %cst_217 = arith.constant 2.560000e+02 : f32
    %395 = vector.broadcast %cst_217 : f32 to vector<16x1xf32>
    %396 = arith.divf %394, %395 : vector<16x1xf32>
    %cst_218 = arith.constant dense<0.000000e+00> : vector<16xf32>
    %397 = vector.multi_reduction <add>, %392, %cst_218 [1] : vector<16x256xf32> to vector<16xf32>
    %398 = vector.shape_cast %397 : vector<16xf32> to vector<16x1xf32>
    %cst_219 = arith.constant 2.560000e+02 : f32
    %399 = vector.broadcast %cst_219 : f32 to vector<16x1xf32>
    %400 = arith.divf %398, %399 : vector<16x1xf32>
    %cst_220 = arith.constant dense<0xFF800000> : vector<1xf32>
    %401 = vector.multi_reduction <maximumf>, %396, %cst_220 [0] : vector<16x1xf32> to vector<1xf32>
    %402 = vector.shape_cast %401 : vector<1xf32> to vector<1x1xf32>
    %cst_221 = arith.constant dense<0xFF800000> : vector<1xf32>
    %403 = vector.multi_reduction <maximumf>, %400, %cst_221 [0] : vector<16x1xf32> to vector<1xf32>
    %404 = vector.shape_cast %403 : vector<1xf32> to vector<1x1xf32>
    %405 = arith.maximumf %402, %404 : vector<1x1xf32>
    %406 = vector.broadcast %405 : vector<1x1xf32> to vector<16x1xf32>
    %407 = arith.subf %396, %406 : vector<16x1xf32>
    %408 = math.exp %407 : vector<16x1xf32>
    %409 = vector.broadcast %405 : vector<1x1xf32> to vector<16x1xf32>
    %410 = arith.subf %400, %409 : vector<16x1xf32>
    %411 = math.exp %410 : vector<16x1xf32>
    %cst_222 = arith.constant dense<0.000000e+00> : vector<1xf32>
    %412 = vector.multi_reduction <add>, %408, %cst_222 [0] : vector<16x1xf32> to vector<1xf32>
    %413 = vector.shape_cast %412 : vector<1xf32> to vector<1x1xf32>
    %cst_223 = arith.constant dense<0.000000e+00> : vector<1xf32>
    %414 = vector.multi_reduction <add>, %411, %cst_223 [0] : vector<16x1xf32> to vector<1xf32>
    %415 = vector.shape_cast %414 : vector<1xf32> to vector<1x1xf32>
    %416 = arith.addf %413, %415 : vector<1x1xf32>
    %cst_224 = arith.constant 1.000000e+00 : f32
    %417 = vector.broadcast %cst_224 : f32 to vector<1x1xf32>
    %418 = arith.divf %417, %416 : vector<1x1xf32>
    %419 = vector.broadcast %418 : vector<1x1xf32> to vector<16x1xf32>
    %420 = arith.mulf %408, %419 : vector<16x1xf32>
    %421 = vector.broadcast %420 : vector<16x1xf32> to vector<16x256xf32>
    %422 = arith.mulf %390, %421 : vector<16x256xf32>
    %423 = vector.broadcast %418 : vector<1x1xf32> to vector<16x1xf32>
    %424 = arith.mulf %411, %423 : vector<16x1xf32>
    %425 = vector.broadcast %424 : vector<16x1xf32> to vector<16x256xf32>
    %426 = arith.mulf %392, %425 : vector<16x256xf32>
    %427 = arith.addf %422, %426 : vector<16x256xf32>
    %c0_225 = arith.constant 0 : index
    %c0_226 = arith.constant 0 : index
    %428 = vector.load %arg2[%c0_225, %c0_226] : memref<1x1xf32, #tpu.memory_space<vmem>>, vector<1x1xf32>
    %429 = vector.broadcast %428 : vector<1x1xf32> to vector<16x256xf32>
    %430 = arith.mulf %427, %429 : vector<16x256xf32>
    %431 = arith.addf %1, %430 : vector<16x256xf32>
    %c0_227 = arith.constant 0 : index
    %c0_228 = arith.constant 0 : index
    %c0_229 = arith.constant 0 : index
    %432 = vector.load %arg23[%c0_227, %c0_228, %c0_229] : memref<1x16x256xf32, #tpu.memory_space<vmem>>, vector<1x16x256xf32>
    %433 = vector.shape_cast %432 : vector<1x16x256xf32> to vector<16x256xf32>
    %434 = vector.shape_cast %431 : vector<16x256xf32> to vector<1x16x256xf32>
    tpu.vector_store %arg23[%c0_227, %c0_228, %c0_229], %434 {strides = array<i32>} : memref<1x16x256xf32, #tpu.memory_space<vmem>>, vector<1x16x256xf32>,
    return
  }
  func.func @transform_0(%arg0: i32) -> (i32, i32, i32) {
    %c0_i32 = arith.constant 0 : i32
    %c0_i32_0 = arith.constant 0 : i32
    %c0_i32_1 = arith.constant 0 : i32
    return %arg0, %c0_i32, %c0_i32_0 : i32, i32, i32
  }
  func.func @transform_1(%arg0: i32) -> (i32, i32) {
    %c0_i32 = arith.constant 0 : i32
    %c0_i32_0 = arith.constant 0 : i32
    %c0_i32_1 = arith.constant 0 : i32
    return %c0_i32, %c0_i32_0 : i32, i32
  }
  func.func @transform_2(%arg0: i32) -> (i32, i32, i32) {
    %c0_i32 = arith.constant 0 : i32
    %c0_i32_0 = arith.constant 0 : i32
    %c0_i32_1 = arith.constant 0 : i32
    %c0_i32_2 = arith.constant 0 : i32
    return %c0_i32, %c0_i32_0, %c0_i32_1 : i32, i32, i32
  }
  func.func @transform_3(%arg0: i32) -> (i32, i32) {
    %c0_i32 = arith.constant 0 : i32
    %c0_i32_0 = arith.constant 0 : i32
    %c0_i32_1 = arith.constant 0 : i32
    return %c0_i32, %c0_i32_0 : i32, i32
  }
  func.func @transform_4(%arg0: i32) -> (i32, i32) {
    %c0_i32 = arith.constant 0 : i32
    %c0_i32_0 = arith.constant 0 : i32
    %c0_i32_1 = arith.constant 0 : i32
    return %c0_i32, %c0_i32_0 : i32, i32
  }
  func.func @transform_5(%arg0: i32) -> (i32, i32) {
    %c0_i32 = arith.constant 0 : i32
    %c0_i32_0 = arith.constant 0 : i32
    %c0_i32_1 = arith.constant 0 : i32
    return %c0_i32, %c0_i32_0 : i32, i32
  }
  func.func @transform_6(%arg0: i32) -> (i32, i32) {
    %c0_i32 = arith.constant 0 : i32
    %c0_i32_0 = arith.constant 0 : i32
    %c0_i32_1 = arith.constant 0 : i32
    return %c0_i32, %c0_i32_0 : i32, i32
  }
  func.func @transform_7(%arg0: i32) -> (i32, i32) {
    %c0_i32 = arith.constant 0 : i32
    %c0_i32_0 = arith.constant 0 : i32
    %c0_i32_1 = arith.constant 0 : i32
    return %c0_i32, %c0_i32_0 : i32, i32
  }
  func.func @transform_8(%arg0: i32) -> (i32, i32) {
    %c0_i32 = arith.constant 0 : i32
    %c0_i32_0 = arith.constant 0 : i32
    %c0_i32_1 = arith.constant 0 : i32
    return %c0_i32, %c0_i32_0 : i32, i32
  }
  func.func @transform_9(%arg0: i32) -> (i32, i32) {
    %c0_i32 = arith.constant 0 : i32
    %c0_i32_0 = arith.constant 0 : i32
    %c0_i32_1 = arith.constant 0 : i32
    return %c0_i32, %c0_i32_0 : i32, i32
  }
  func.func @transform_10(%arg0: i32) -> (i32, i32) {
    %c0_i32 = arith.constant 0 : i32
    %c0_i32_0 = arith.constant 0 : i32
    %c0_i32_1 = arith.constant 0 : i32
    return %c0_i32, %c0_i32_0 : i32, i32
  }
  func.func @transform_11(%arg0: i32) -> (i32, i32) {
    %c0_i32 = arith.constant 0 : i32
    %c0_i32_0 = arith.constant 0 : i32
    %c0_i32_1 = arith.constant 0 : i32
    return %c0_i32, %c0_i32_0 : i32, i32
  }
  func.func @transform_12(%arg0: i32) -> (i32, i32) {
    %c0_i32 = arith.constant 0 : i32
    %c0_i32_0 = arith.constant 0 : i32
    %c0_i32_1 = arith.constant 0 : i32
    return %c0_i32, %c0_i32_0 : i32, i32
  }
  func.func @transform_13(%arg0: i32) -> (i32, i32) {
    %c0_i32 = arith.constant 0 : i32
    %c0_i32_0 = arith.constant 0 : i32
    %c0_i32_1 = arith.constant 0 : i32
    return %c0_i32, %c0_i32_0 : i32, i32
  }
  func.func @transform_14(%arg0: i32) -> (i32, i32) {
    %c0_i32 = arith.constant 0 : i32
    %c0_i32_0 = arith.constant 0 : i32
    %c0_i32_1 = arith.constant 0 : i32
    return %c0_i32, %c0_i32_0 : i32, i32
  }
  func.func @transform_15(%arg0: i32) -> (i32, i32) {
    %c0_i32 = arith.constant 0 : i32
    %c0_i32_0 = arith.constant 0 : i32
    %c0_i32_1 = arith.constant 0 : i32
    return %c0_i32, %c0_i32_0 : i32, i32
  }
  func.func @transform_16(%arg0: i32) -> (i32, i32) {
    %c0_i32 = arith.constant 0 : i32
    %c0_i32_0 = arith.constant 0 : i32
    %c0_i32_1 = arith.constant 0 : i32
    return %c0_i32, %c0_i32_0 : i32, i32
  }
  func.func @transform_17(%arg0: i32) -> (i32, i32) {
    %c0_i32 = arith.constant 0 : i32
    %c0_i32_0 = arith.constant 0 : i32
    %c0_i32_1 = arith.constant 0 : i32
    return %c0_i32, %c0_i32_0 : i32, i32
  }
  func.func @transform_18(%arg0: i32) -> (i32, i32) {
    %c0_i32 = arith.constant 0 : i32
    %c0_i32_0 = arith.constant 0 : i32
    %c0_i32_1 = arith.constant 0 : i32
    return %c0_i32, %c0_i32_0 : i32, i32
  }
  func.func @transform_19(%arg0: i32) -> (i32, i32) {
    %c0_i32 = arith.constant 0 : i32
    %c0_i32_0 = arith.constant 0 : i32
    %c0_i32_1 = arith.constant 0 : i32
    return %c0_i32, %c0_i32_0 : i32, i32
  }
  func.func @transform_20(%arg0: i32) -> (i32, i32) {
    %c0_i32 = arith.constant 0 : i32
    %c0_i32_0 = arith.constant 0 : i32
    %c0_i32_1 = arith.constant 0 : i32
    return %c0_i32, %c0_i32_0 : i32, i32
  }
  func.func @transform_21(%arg0: i32) -> (i32, i32) {
    %c0_i32 = arith.constant 0 : i32
    %c0_i32_0 = arith.constant 0 : i32
    %c0_i32_1 = arith.constant 0 : i32
    return %c0_i32, %c0_i32_0 : i32, i32
  }
  func.func @transform_22(%arg0: i32) -> (i32, i32, i32) {
    %c0_i32 = arith.constant 0 : i32
    %c0_i32_0 = arith.constant 0 : i32
    %c0_i32_1 = arith.constant 0 : i32
    return %arg0, %c0_i32, %c0_i32_0 : i32, i32, i32
  }
}

</mosaic_0001>

<llo_original>
// kernel: residual_block_no_bn2.1
$region0: #{residual_block_no_bn2.1}
  #allocation0 [shape = 'u32[]', space=smem, size = 0x4, offset = 0x4, fixed_abs, tag = 'smem constant byte address 0x4 - core index']
  #allocation1 [shape = 'u32[144,128]{1,0:T(1,128)}', space=vmem, size = 0x12000, scoped, tag = 'internal scratch']
  #allocation2 [shape = 'f32[1,1]{1,0:T(1,128)S(1)}', space=vmem, size = 0x200, scoped, tag = 'scoped memory for residual_block_no_bn2.1']
  %s0 = inlined_call_operand.vmem [shape: f32[2,16,256], index: 0, kind: input, shape index: {}]
  %s1 = inlined_call_operand.<no memory space> [shape: f32[1,1], index: 1, kind: input, shape index: {}]
  %s2 = inlined_call_operand.vmem [shape: f32[9,1,256], index: 2, kind: input, shape index: {}]
  %s3 = inlined_call_operand.vmem [shape: f32[16,144], index: 3, kind: input, shape index: {}]
  %s4 = inlined_call_operand.vmem [shape: f32[16,1], index: 4, kind: input, shape index: {}]
  %s5 = inlined_call_operand.vmem [shape: f32[16,144], index: 5, kind: input, shape index: {}]
  %s6 = inlined_call_operand.vmem [shape: f32[16,1], index: 6, kind: input, shape index: {}]
  %s7 = inlined_call_operand.vmem [shape: f32[16,16], index: 7, kind: input, shape index: {}]
  %s8 = inlined_call_operand.vmem [shape: f32[16,1], index: 8, kind: input, shape index: {}]
  %s9 = inlined_call_operand.vmem [shape: f32[16,1], index: 9, kind: input, shape index: {}]
  %s10 = inlined_call_operand.vmem [shape: f32[4,8], index: 10, kind: input, shape index: {}]
  %s11 = inlined_call_operand.vmem [shape: f32[4,8], index: 11, kind: input, shape index: {}]
  %s12 = inlined_call_operand.vmem [shape: f32[16,36], index: 12, kind: input, shape index: {}]
  %s13 = inlined_call_operand.vmem [shape: f32[16,1], index: 13, kind: input, shape index: {}]
  %s14 = inlined_call_operand.vmem [shape: f32[16,4], index: 14, kind: input, shape index: {}]
  %s15 = inlined_call_operand.vmem [shape: f32[16,1], index: 15, kind: input, shape index: {}]
  %s16 = inlined_call_operand.vmem [shape: f32[16,1], index: 16, kind: input, shape index: {}]
  %s17 = inlined_call_operand.vmem [shape: f32[4,8], index: 17, kind: input, shape index: {}]
  %s18 = inlined_call_operand.vmem [shape: f32[4,8], index: 18, kind: input, shape index: {}]
  %s19 = inlined_call_operand.vmem [shape: f32[16,36], index: 19, kind: input, shape index: {}]
  %s20 = inlined_call_operand.vmem [shape: f32[16,1], index: 20, kind: input, shape index: {}]
  %s21 = inlined_call_operand.vmem [shape: f32[16,4], index: 21, kind: input, shape index: {}]
  %s22 = inlined_call_operand.vmem [shape: f32[2,16,256], index: 22, kind: output, shape index: {}]
  %s23 = sld [smem:[#allocation0]]
  $region121: #{residual_block_no_bn2.1} parent=0
    _
  %s25 = ssub.s32 1, %s23
  %s26 = scalar_select 0, %s25, %s23
  %v27 = vstv %s1
  %28 = vst [vmem:[#allocation2] sm:$0x1] %v27
  loop: start=0, step=1, limit=4
  $region2: #{residual_block_no_bn2.1} parent=0 // loop_pre_header
    _
  $region3: #{residual_block_no_bn2.1} parent=0 // loop_header
    %s30 = sphi 0, %s34
    %p31 = scmp.ge.s32.totalorder %s30, 4
    %s40 = sphi 0, %s42
    %s43 = sphi 0, %s40
    %s44 = sphi 0, %s43
    %s60 = sphi 0, %s44
    %s64 = sphi 0, %s64
    %s66 = sphi 0, %s64
    %s67 = sphi 0, %s66
    %s81 = sphi 0, %s67
    %s85 = sphi 0, %s85
    %s87 = sphi 0, %s85
    %s88 = sphi 0, %s87
    %s102 = sphi 0, %s88
    %s106 = sphi 0, %s106
    %s108 = sphi 0, %s106
    %s109 = sphi 0, %s108
    %s123 = sphi 0, %s109
    %s127 = sphi 0, %s127
    %s129 = sphi 0, %s127
    %s130 = sphi 0, %s129
    %s144 = sphi 0, %s130
    %s148 = sphi 0, %s148
    %s150 = sphi 0, %s148
    %s151 = sphi 0, %s150
    %s165 = sphi 0, %s151
    %s169 = sphi 0, %s169
    %s171 = sphi 0, %s169
    %s172 = sphi 0, %s171
    %s186 = sphi 0, %s172
    %s190 = sphi 0, %s190
    %s192 = sphi 0, %s190
    %s193 = sphi 0, %s192
    %s207 = sphi 0, %s193
    %s211 = sphi 0, %s211
    %s213 = sphi 0, %s211
    %s214 = sphi 0, %s213
    %s228 = sphi 0, %s214
    %s232 = sphi 0, %s232
    %s234 = sphi 0, %s232
    %s235 = sphi 0, %s234
    %s249 = sphi 0, %s235
    %s253 = sphi 0, %s253
    %s255 = sphi 0, %s253
    %s256 = sphi 0, %s255
    %s270 = sphi 0, %s256
    %s274 = sphi 0, %s274
    %s276 = sphi 0, %s274
    %s277 = sphi 0, %s276
    %s291 = sphi 0, %s277
    %s295 = sphi 0, %s295
    %s297 = sphi 0, %s295
    %s298 = sphi 0, %s297
    %s312 = sphi 0, %s298
    %s316 = sphi 0, %s316
    %s318 = sphi 0, %s316
    %s319 = sphi 0, %s318
    %s333 = sphi 0, %s319
    %s337 = sphi 0, %s337
    %s339 = sphi 0, %s337
    %s340 = sphi 0, %s339
    %s354 = sphi 0, %s340
    %s358 = sphi 0, %s358
    %s360 = sphi 0, %s358
    %s361 = sphi 0, %s360
    %s375 = sphi 0, %s361
    %s379 = sphi 0, %s379
    %s381 = sphi 0, %s379
    %s382 = sphi 0, %s381
    %s396 = sphi 0, %s382
    %s400 = sphi 0, %s400
    %s402 = sphi 0, %s400
    %s403 = sphi 0, %s402
    %s417 = sphi 0, %s403
    %s421 = sphi 0, %s421
    %s423 = sphi 0, %s421
    %s424 = sphi 0, %s423
    %s438 = sphi 0, %s424
    %s442 = sphi 0, %s442
    %s444 = sphi 0, %s442
    %s445 = sphi 0, %s444
    %s459 = sphi 0, %s445
    %s463 = sphi 0, %s463
    %s465 = sphi 0, %s463
    %s466 = sphi 0, %s465
    %s480 = sphi 0, %s466
    %s484 = sphi 0, %s484
    %s486 = sphi 0, %s484
    %s487 = sphi 0, %s486
    %s501 = sphi 0, %s487
    %s507 = sphi 0, %s509
    %s510 = sphi 0, %s507
    %s511 = sphi 0, %s510
    %s527 = sphi 0, %s511
  $region4: #{residual_block_no_bn2.1} parent=0 // loop_header_branch
    %33 = sbr.rel (%p31) target = $region8
  $region5: #{residual_block_no_bn2.1} parent=0 // loop_body
    %s35 = ssub.s32 %s30, 1
    %s36 = ssub.s32 %s30, 2
    %s37 = sadd.s32 %s30, 1
    %s38 = ssub.s32 %s30, %s37
    %p39 = scmp.eq.s32.totalorder %s38, 0
    %s41 = sadd.s32 %s40, 1
    %s42 = scalar_select %p39, %s40, %s41
    %p45 = pneg %p39
    %p46 = scmp.eq.s32.totalorder %s30, 1
    %p47 = por %p45, %p46
    %p48 = scmp.ne.s32.totalorder %s40, %s43
    %p49 = scmp.eq.s32.totalorder %s30, 0
    %p50 = por %p48, %p49
    %p51 = scmp.ne.s32.totalorder %s40, %s43
    %p52 = scmp.eq.s32.totalorder %s35, 1
    %p53 = por %p51, %p52
    %p54 = scmp.ne.s32.totalorder %s43, %s44
    %p55 = scmp.eq.s32.totalorder %s35, 0
    %p56 = por %p54, %p55
    %p57 = scmp.ne.s32.totalorder %s43, %s44
    %p58 = scmp.eq.s32.totalorder %s36, 1
    %p59 = por %p57, %p58
    %p61 = scmp.ne.s32.totalorder %s44, %s60
    %p62 = scmp.eq.s32.totalorder %s36, 0
    %p63 = por %p61, %p62
    %s65 = sadd.s32 %s64, 1
    %p68 = scmp.eq.s32.totalorder %s30, 1
    %p69 = scmp.ne.s32.totalorder %s64, %s66
    %p70 = scmp.eq.s32.totalorder %s30, 0
    %p71 = por %p69, %p70
    %p72 = scmp.ne.s32.totalorder %s64, %s66
    %p73 = scmp.eq.s32.totalorder %s35, 1
    %p74 = por %p72, %p73
    %p75 = scmp.ne.s32.totalorder %s66, %s67
    %p76 = scmp.eq.s32.totalorder %s35, 0
    %p77 = por %p75, %p76
    %p78 = scmp.ne.s32.totalorder %s66, %s67
    %p79 = scmp.eq.s32.totalorder %s36, 1
    %p80 = por %p78, %p79
    %p82 = scmp.ne.s32.totalorder %s67, %s81
    %p83 = scmp.eq.s32.totalorder %s36, 0
    %p84 = por %p82, %p83
    %s86 = sadd.s32 %s85, 1
    %p89 = scmp.eq.s32.totalorder %s30, 1
    %p90 = scmp.ne.s32.totalorder %s85, %s87
    %p91 = scmp.eq.s32.totalorder %s30, 0
    %p92 = por %p90, %p91
    %p93 = scmp.ne.s32.totalorder %s85, %s87
    %p94 = scmp.eq.s32.totalorder %s35, 1
    %p95 = por %p93, %p94
    %p96 = scmp.ne.s32.totalorder %s87, %s88
    %p97 = scmp.eq.s32.totalorder %s35, 0
    %p98 = por %p96, %p97
    %p99 = scmp.ne.s32.totalorder %s87, %s88
    %p100 = scmp.eq.s32.totalorder %s36, 1
    %p101 = por %p99, %p100
    %p103 = scmp.ne.s32.totalorder %s88, %s102
    %p104 = scmp.eq.s32.totalorder %s36, 0
    %p105 = por %p103, %p104
    %s107 = sadd.s32 %s106, 1
    %p110 = scmp.eq.s32.totalorder %s30, 1
    %p111 = scmp.ne.s32.totalorder %s106, %s108
    %p112 = scmp.eq.s32.totalorder %s30, 0
    %p113 = por %p111, %p112
    %p114 = scmp.ne.s32.totalorder %s106, %s108
    %p115 = scmp.eq.s32.totalorder %s35, 1
    %p116 = por %p114, %p115
    %p117 = scmp.ne.s32.totalorder %s108, %s109
    %p118 = scmp.eq.s32.totalorder %s35, 0
    %p119 = por %p117, %p118
    %p120 = scmp.ne.s32.totalorder %s108, %s109
    %p121 = scmp.eq.s32.totalorder %s36, 1
    %p122 = por %p120, %p121
    %p124 = scmp.ne.s32.totalorder %s109, %s123
    %p125 = scmp.eq.s32.totalorder %s36, 0
    %p126 = por %p124, %p125
    %s128 = sadd.s32 %s127, 1
    %p131 = scmp.eq.s32.totalorder %s30, 1
    %p132 = scmp.ne.s32.totalorder %s127, %s129
    %p133 = scmp.eq.s32.totalorder %s30, 0
    %p134 = por %p132, %p133
    %p135 = scmp.ne.s32.totalorder %s127, %s129
    %p136 = scmp.eq.s32.totalorder %s35, 1
    %p137 = por %p135, %p136
    %p138 = scmp.ne.s32.totalorder %s129, %s130
    %p139 = scmp.eq.s32.totalorder %s35, 0
    %p140 = por %p138, %p139
    %p141 = scmp.ne.s32.totalorder %s129, %s130
    %p142 = scmp.eq.s32.totalorder %s36, 1
    %p143 = por %p141, %p142
    %p145 = scmp.ne.s32.totalorder %s130, %s144
    %p146 = scmp.eq.s32.totalorder %s36, 0
    %p147 = por %p145, %p146
    %s149 = sadd.s32 %s148, 1
    %p152 = scmp.eq.s32.totalorder %s30, 1
    %p153 = scmp.ne.s32.totalorder %s148, %s150
    %p154 = scmp.eq.s32.totalorder %s30, 0
    %p155 = por %p153, %p154
    %p156 = scmp.ne.s32.totalorder %s148, %s150
    %p157 = scmp.eq.s32.totalorder %s35, 1
    %p158 = por %p156, %p157
    %p159 = scmp.ne.s32.totalorder %s150, %s151
    %p160 = scmp.eq.s32.totalorder %s35, 0
    %p161 = por %p159, %p160
    %p162 = scmp.ne.s32.totalorder %s150, %s151
    %p163 = scmp.eq.s32.totalorder %s36, 1
    %p164 = por %p162, %p163
    %p166 = scmp.ne.s32.totalorder %s151, %s165
    %p167 = scmp.eq.s32.totalorder %s36, 0
    %p168 = por %p166, %p167
    %s170 = sadd.s32 %s169, 1
    %p173 = scmp.eq.s32.totalorder %s30, 1
    %p174 = scmp.ne.s32.totalorder %s169, %s171
    %p175 = scmp.eq.s32.totalorder %s30, 0
    %p176 = por %p174, %p175
    %p177 = scmp.ne.s32.totalorder %s169, %s171
    %p178 = scmp.eq.s32.totalorder %s35, 1
    %p179 = por %p177, %p178
    %p180 = scmp.ne.s32.totalorder %s171, %s172
    %p181 = scmp.eq.s32.totalorder %s35, 0
    %p182 = por %p180, %p181
    %p183 = scmp.ne.s32.totalorder %s171, %s172
    %p184 = scmp.eq.s32.totalorder %s36, 1
    %p185 = por %p183, %p184
    %p187 = scmp.ne.s32.totalorder %s172, %s186
    %p188 = scmp.eq.s32.totalorder %s36, 0
    %p189 = por %p187, %p188
    %s191 = sadd.s32 %s190, 1
    %p194 = scmp.eq.s32.totalorder %s30, 1
    %p195 = scmp.ne.s32.totalorder %s190, %s192
    %p196 = scmp.eq.s32.totalorder %s30, 0
    %p197 = por %p195, %p196
    %p198 = scmp.ne.s32.totalorder %s190, %s192
    %p199 = scmp.eq.s32.totalorder %s35, 1
    %p200 = por %p198, %p199
    %p201 = scmp.ne.s32.totalorder %s192, %s193
    %p202 = scmp.eq.s32.totalorder %s35, 0
    %p203 = por %p201, %p202
    %p204 = scmp.ne.s32.totalorder %s192, %s193
    %p205 = scmp.eq.s32.totalorder %s36, 1
    %p206 = por %p204, %p205
    %p208 = scmp.ne.s32.totalorder %s193, %s207
    %p209 = scmp.eq.s32.totalorder %s36, 0
    %p210 = por %p208, %p209
    %s212 = sadd.s32 %s211, 1
    %p215 = scmp.eq.s32.totalorder %s30, 1
    %p216 = scmp.ne.s32.totalorder %s211, %s213
    %p217 = scmp.eq.s32.totalorder %s30, 0
    %p218 = por %p216, %p217
    %p219 = scmp.ne.s32.totalorder %s211, %s213
    %p220 = scmp.eq.s32.totalorder %s35, 1
    %p221 = por %p219, %p220
    %p222 = scmp.ne.s32.totalorder %s213, %s214
    %p223 = scmp.eq.s32.totalorder %s35, 0
    %p224 = por %p222, %p223
    %p225 = scmp.ne.s32.totalorder %s213, %s214
    %p226 = scmp.eq.s32.totalorder %s36, 1
    %p227 = por %p225, %p226
    %p229 = scmp.ne.s32.totalorder %s214, %s228
    %p230 = scmp.eq.s32.totalorder %s36, 0
    %p231 = por %p229, %p230
    %s233 = sadd.s32 %s232, 1
    %p236 = scmp.eq.s32.totalorder %s30, 1
    %p237 = scmp.ne.s32.totalorder %s232, %s234
    %p238 = scmp.eq.s32.totalorder %s30, 0
    %p239 = por %p237, %p238
    %p240 = scmp.ne.s32.totalorder %s232, %s234
    %p241 = scmp.eq.s32.totalorder %s35, 1
    %p242 = por %p240, %p241
    %p243 = scmp.ne.s32.totalorder %s234, %s235
    %p244 = scmp.eq.s32.totalorder %s35, 0
    %p245 = por %p243, %p244
    %p246 = scmp.ne.s32.totalorder %s234, %s235
    %p247 = scmp.eq.s32.totalorder %s36, 1
    %p248 = por %p246, %p247
    %p250 = scmp.ne.s32.totalorder %s235, %s249
    %p251 = scmp.eq.s32.totalorder %s36, 0
    %p252 = por %p250, %p251
    %s254 = sadd.s32 %s253, 1
    %p257 = scmp.eq.s32.totalorder %s30, 1
    %p258 = scmp.ne.s32.totalorder %s253, %s255
    %p259 = scmp.eq.s32.totalorder %s30, 0
    %p260 = por %p258, %p259
    %p261 = scmp.ne.s32.totalorder %s253, %s255
    %p262 = scmp.eq.s32.totalorder %s35, 1
    %p263 = por %p261, %p262
    %p264 = scmp.ne.s32.totalorder %s255, %s256
    %p265 = scmp.eq.s32.totalorder %s35, 0
    %p266 = por %p264, %p265
    %p267 = scmp.ne.s32.totalorder %s255, %s256
    %p268 = scmp.eq.s32.totalorder %s36, 1
    %p269 = por %p267, %p268
    %p271 = scmp.ne.s32.totalorder %s256, %s270
    %p272 = scmp.eq.s32.totalorder %s36, 0
    %p273 = por %p271, %p272
    %s275 = sadd.s32 %s274, 1
    %p278 = scmp.eq.s32.totalorder %s30, 1
    %p279 = scmp.ne.s32.totalorder %s274, %s276
    %p280 = scmp.eq.s32.totalorder %s30, 0
    %p281 = por %p279, %p280
    %p282 = scmp.ne.s32.totalorder %s274, %s276
    %p283 = scmp.eq.s32.totalorder %s35, 1
    %p284 = por %p282, %p283
    %p285 = scmp.ne.s32.totalorder %s276, %s277
    %p286 = scmp.eq.s32.totalorder %s35, 0
    %p287 = por %p285, %p286
    %p288 = scmp.ne.s32.totalorder %s276, %s277
    %p289 = scmp.eq.s32.totalorder %s36, 1
    %p290 = por %p288, %p289
    %p292 = scmp.ne.s32.totalorder %s277, %s291
    %p293 = scmp.eq.s32.totalorder %s36, 0
    %p294 = por %p292, %p293
    %s296 = sadd.s32 %s295, 1
    %p299 = scmp.eq.s32.totalorder %s30, 1
    %p300 = scmp.ne.s32.totalorder %s295, %s297
    %p301 = scmp.eq.s32.totalorder %s30, 0
    %p302 = por %p300, %p301
    %p303 = scmp.ne.s32.totalorder %s295, %s297
    %p304 = scmp.eq.s32.totalorder %s35, 1
    %p305 = por %p303, %p304
    %p306 = scmp.ne.s32.totalorder %s297, %s298
    %p307 = scmp.eq.s32.totalorder %s35, 0
    %p308 = por %p306, %p307
    %p309 = scmp.ne.s32.totalorder %s297, %s298
    %p310 = scmp.eq.s32.totalorder %s36, 1
    %p311 = por %p309, %p310
    %p313 = scmp.ne.s32.totalorder %s298, %s312
    %p314 = scmp.eq.s32.totalorder %s36, 0
    %p315 = por %p313, %p314
    %s317 = sadd.s32 %s316, 1
    %p320 = scmp.eq.s32.totalorder %s30, 1
    %p321 = scmp.ne.s32.totalorder %s316, %s318
    %p322 = scmp.eq.s32.totalorder %s30, 0
    %p323 = por %p321, %p322
    %p324 = scmp.ne.s32.totalorder %s316, %s318
    %p325 = scmp.eq.s32.totalorder %s35, 1
    %p326 = por %p324, %p325
    %p327 = scmp.ne.s32.totalorder %s318, %s319
    %p328 = scmp.eq.s32.totalorder %s35, 0
    %p329 = por %p327, %p328
    %p330 = scmp.ne.s32.totalorder %s318, %s319
    %p331 = scmp.eq.s32.totalorder %s36, 1
    %p332 = por %p330, %p331
    %p334 = scmp.ne.s32.totalorder %s319, %s333
    %p335 = scmp.eq.s32.totalorder %s36, 0
    %p336 = por %p334, %p335
    %s338 = sadd.s32 %s337, 1
    %p341 = scmp.eq.s32.totalorder %s30, 1
    %p342 = scmp.ne.s32.totalorder %s337, %s339
    %p343 = scmp.eq.s32.totalorder %s30, 0
    %p344 = por %p342, %p343
    %p345 = scmp.ne.s32.totalorder %s337, %s339
    %p346 = scmp.eq.s32.totalorder %s35, 1
    %p347 = por %p345, %p346
    %p348 = scmp.ne.s32.totalorder %s339, %s340
    %p349 = scmp.eq.s32.totalorder %s35, 0
    %p350 = por %p348, %p349
    %p351 = scmp.ne.s32.totalorder %s339, %s340
    %p352 = scmp.eq.s32.totalorder %s36, 1
    %p353 = por %p351, %p352
    %p355 = scmp.ne.s32.totalorder %s340, %s354
    %p356 = scmp.eq.s32.totalorder %s36, 0
    %p357 = por %p355, %p356
    %s359 = sadd.s32 %s358, 1
    %p362 = scmp.eq.s32.totalorder %s30, 1
    %p363 = scmp.ne.s32.totalorder %s358, %s360
    %p364 = scmp.eq.s32.totalorder %s30, 0
    %p365 = por %p363, %p364
    %p366 = scmp.ne.s32.totalorder %s358, %s360
    %p367 = scmp.eq.s32.totalorder %s35, 1
    %p368 = por %p366, %p367
    %p369 = scmp.ne.s32.totalorder %s360, %s361
    %p370 = scmp.eq.s32.totalorder %s35, 0
    %p371 = por %p369, %p370
    %p372 = scmp.ne.s32.totalorder %s360, %s361
    %p373 = scmp.eq.s32.totalorder %s36, 1
    %p374 = por %p372, %p373
    %p376 = scmp.ne.s32.totalorder %s361, %s375
    %p377 = scmp.eq.s32.totalorder %s36, 0
    %p378 = por %p376, %p377
    %s380 = sadd.s32 %s379, 1
    %p383 = scmp.eq.s32.totalorder %s30, 1
    %p384 = scmp.ne.s32.totalorder %s379, %s381
    %p385 = scmp.eq.s32.totalorder %s30, 0
    %p386 = por %p384, %p385
    %p387 = scmp.ne.s32.totalorder %s379, %s381
    %p388 = scmp.eq.s32.totalorder %s35, 1
    %p389 = por %p387, %p388
    %p390 = scmp.ne.s32.totalorder %s381, %s382
    %p391 = scmp.eq.s32.totalorder %s35, 0
    %p392 = por %p390, %p391
    %p393 = scmp.ne.s32.totalorder %s381, %s382
    %p394 = scmp.eq.s32.totalorder %s36, 1
    %p395 = por %p393, %p394
    %p397 = scmp.ne.s32.totalorder %s382, %s396
    %p398 = scmp.eq.s32.totalorder %s36, 0
    %p399 = por %p397, %p398
    %s401 = sadd.s32 %s400, 1
    %p404 = scmp.eq.s32.totalorder %s30, 1
    %p405 = scmp.ne.s32.totalorder %s400, %s402
    %p406 = scmp.eq.s32.totalorder %s30, 0
    %p407 = por %p405, %p406
    %p408 = scmp.ne.s32.totalorder %s400, %s402
    %p409 = scmp.eq.s32.totalorder %s35, 1
    %p410 = por %p408, %p409
    %p411 = scmp.ne.s32.totalorder %s402, %s403
    %p412 = scmp.eq.s32.totalorder %s35, 0
    %p413 = por %p411, %p412
    %p414 = scmp.ne.s32.totalorder %s402, %s403
    %p415 = scmp.eq.s32.totalorder %s36, 1
    %p416 = por %p414, %p415
    %p418 = scmp.ne.s32.totalorder %s403, %s417
    %p419 = scmp.eq.s32.totalorder %s36, 0
    %p420 = por %p418, %p419
    %s422 = sadd.s32 %s421, 1
    %p425 = scmp.eq.s32.totalorder %s30, 1
    %p426 = scmp.ne.s32.totalorder %s421, %s423
    %p427 = scmp.eq.s32.totalorder %s30, 0
    %p428 = por %p426, %p427
    %p429 = scmp.ne.s32.totalorder %s421, %s423
    %p430 = scmp.eq.s32.totalorder %s35, 1
    %p431 = por %p429, %p430
    %p432 = scmp.ne.s32.totalorder %s423, %s424
    %p433 = scmp.eq.s32.totalorder %s35, 0
    %p434 = por %p432, %p433
    %p435 = scmp.ne.s32.totalorder %s423, %s424
    %p436 = scmp.eq.s32.totalorder %s36, 1
    %p437 = por %p435, %p436
    %p439 = scmp.ne.s32.totalorder %s424, %s438
    %p440 = scmp.eq.s32.totalorder %s36, 0
    %p441 = por %p439, %p440
    %s443 = sadd.s32 %s442, 1
    %p446 = scmp.eq.s32.totalorder %s30, 1
    %p447 = scmp.ne.s32.totalorder %s442, %s444
    %p448 = scmp.eq.s32.totalorder %s30, 0
    %p449 = por %p447, %p448
    %p450 = scmp.ne.s32.totalorder %s442, %s444
    %p451 = scmp.eq.s32.totalorder %s35, 1
    %p452 = por %p450, %p451
    %p453 = scmp.ne.s32.totalorder %s444, %s445
    %p454 = scmp.eq.s32.totalorder %s35, 0
    %p455 = por %p453, %p454
    %p456 = scmp.ne.s32.totalorder %s444, %s445
    %p457 = scmp.eq.s32.totalorder %s36, 1
    %p458 = por %p456, %p457
    %p460 = scmp.ne.s32.totalorder %s445, %s459
    %p461 = scmp.eq.s32.totalorder %s36, 0
    %p462 = por %p460, %p461
    %s464 = sadd.s32 %s463, 1
    %p467 = scmp.eq.s32.totalorder %s30, 1
    %p468 = scmp.ne.s32.totalorder %s463, %s465
    %p469 = scmp.eq.s32.totalorder %s30, 0
    %p470 = por %p468, %p469
    %p471 = scmp.ne.s32.totalorder %s463, %s465
    %p472 = scmp.eq.s32.totalorder %s35, 1
    %p473 = por %p471, %p472
    %p474 = scmp.ne.s32.totalorder %s465, %s466
    %p475 = scmp.eq.s32.totalorder %s35, 0
    %p476 = por %p474, %p475
    %p477 = scmp.ne.s32.totalorder %s465, %s466
    %p478 = scmp.eq.s32.totalorder %s36, 1
    %p479 = por %p477, %p478
    %p481 = scmp.ne.s32.totalorder %s466, %s480
    %p482 = scmp.eq.s32.totalorder %s36, 0
    %p483 = por %p481, %p482
    %s485 = sadd.s32 %s484, 1
    %p488 = scmp.eq.s32.totalorder %s30, 1
    %p489 = scmp.ne.s32.totalorder %s484, %s486
    %p490 = scmp.eq.s32.totalorder %s30, 0
    %p491 = por %p489, %p490
    %p492 = scmp.ne.s32.totalorder %s484, %s486
    %p493 = scmp.eq.s32.totalorder %s35, 1
    %p494 = por %p492, %p493
    %p495 = scmp.ne.s32.totalorder %s486, %s487
    %p496 = scmp.eq.s32.totalorder %s35, 0
    %p497 = por %p495, %p496
    %p498 = scmp.ne.s32.totalorder %s486, %s487
    %p499 = scmp.eq.s32.totalorder %s36, 1
    %p500 = por %p498, %p499
    %p502 = scmp.ne.s32.totalorder %s487, %s501
    %p503 = scmp.eq.s32.totalorder %s36, 0
    %p504 = por %p502, %p503
    %s505 = ssub.s32 %s30, %s37
    %p506 = scmp.eq.s32.totalorder %s505, 0
    %s508 = sadd.s32 %s507, 1
    %s509 = scalar_select %p506, %s507, %s508
    %p512 = pneg %p506
    %p513 = scmp.eq.s32.totalorder %s30, 1
    %p514 = por %p512, %p513
    %p515 = scmp.ne.s32.totalorder %s507, %s510
    %p516 = scmp.eq.s32.totalorder %s30, 0
    %p517 = por %p515, %p516
    %p518 = scmp.ne.s32.totalorder %s507, %s510
    %p519 = scmp.eq.s32.totalorder %s35, 1
    %p520 = por %p518, %p519
    %p521 = scmp.ne.s32.totalorder %s510, %s511
    %p522 = scmp.eq.s32.totalorder %s35, 0
    %p523 = por %p521, %p522
    %p524 = scmp.ne.s32.totalorder %s510, %s511
    %p525 = scmp.eq.s32.totalorder %s36, 1
    %p526 = por %p524, %p525
    %p528 = scmp.ne.s32.totalorder %s511, %s527
    %p529 = scmp.eq.s32.totalorder %s36, 0
    %p530 = por %p528, %p529
    %p531 = scmp.le.s32.totalorder 1, %s30
    %p532 = scmp.lt.s32.totalorder %s30, 3
    %p533 = pnand %p531, %p532
    %p534 = pneg %p533
    // Predicated region
    $region9: #{residual_block_no_bn2.1} parent=5 // pred_check
      _
    $region10: #{residual_block_no_bn2.1} parent=5 // pred_check_branch
      %536 = sbr.rel (%p533) target = $region12
    $region11: #{residual_block_no_bn2.1} parent=5 // pred_region
      %s537 = ssub.s32 %s30, 1
      // Predicated region
      $region13: #{residual_block_no_bn2.1} parent=11 // pred_check
        %p538 = pneg %p77
      $region14: #{residual_block_no_bn2.1} parent=11 // pred_check_branch
        %540 = sbr.rel (%p538) target = $region16
      $region15: #{residual_block_no_bn2.1} parent=11 // pred_region
        _
      $region16: #{residual_block_no_bn2.1} parent=11 // pred_fallthru
        _
      // Predicated region
      $region17: #{residual_block_no_bn2.1} parent=11 // pred_check
        %p541 = pneg %p98
      $region18: #{residual_block_no_bn2.1} parent=11 // pred_check_branch
        %543 = sbr.rel (%p541) target = $region20
      $region19: #{residual_block_no_bn2.1} parent=11 // pred_region
        _
      $region20: #{residual_block_no_bn2.1} parent=11 // pred_fallthru
        _
      // Predicated region
      $region21: #{residual_block_no_bn2.1} parent=11 // pred_check
        %p544 = pneg %p119
      $region22: #{residual_block_no_bn2.1} parent=11 // pred_check_branch
        %546 = sbr.rel (%p544) target = $region24
      $region23: #{residual_block_no_bn2.1} parent=11 // pred_region
        _
      $region24: #{residual_block_no_bn2.1} parent=11 // pred_fallthru
        _
      // Predicated region
      $region25: #{residual_block_no_bn2.1} parent=11 // pred_check
        %p547 = pneg %p140
      $region26: #{residual_block_no_bn2.1} parent=11 // pred_check_branch
        %549 = sbr.rel (%p547) target = $region28
      $region27: #{residual_block_no_bn2.1} parent=11 // pred_region
        _
      $region28: #{residual_block_no_bn2.1} parent=11 // pred_fallthru
        _
      // Predicated region
      $region29: #{residual_block_no_bn2.1} parent=11 // pred_check
        %p550 = pneg %p161
      $region30: #{residual_block_no_bn2.1} parent=11 // pred_check_branch
        %552 = sbr.rel (%p550) target = $region32
      $region31: #{residual_block_no_bn2.1} parent=11 // pred_region
        _
      $region32: #{residual_block_no_bn2.1} parent=11 // pred_fallthru
        _
      // Predicated region
      $region33: #{residual_block_no_bn2.1} parent=11 // pred_check
        %p553 = pneg %p182
      $region34: #{residual_block_no_bn2.1} parent=11 // pred_check_branch
        %555 = sbr.rel (%p553) target = $region36
      $region35: #{residual_block_no_bn2.1} parent=11 // pred_region
        _
      $region36: #{residual_block_no_bn2.1} parent=11 // pred_fallthru
        _
      // Predicated region
      $region37: #{residual_block_no_bn2.1} parent=11 // pred_check
        %p556 = pneg %p203
      $region38: #{residual_block_no_bn2.1} parent=11 // pred_check_branch
        %558 = sbr.rel (%p556) target = $region40
      $region39: #{residual_block_no_bn2.1} parent=11 // pred_region
        _
      $region40: #{residual_block_no_bn2.1} parent=11 // pred_fallthru
        _
      // Predicated region
      $region41: #{residual_block_no_bn2.1} parent=11 // pred_check
        %p559 = pneg %p224
      $region42: #{residual_block_no_bn2.1} parent=11 // pred_check_branch
        %561 = sbr.rel (%p559) target = $region44
      $region43: #{residual_block_no_bn2.1} parent=11 // pred_region
        _
      $region44: #{residual_block_no_bn2.1} parent=11 // pred_fallthru
        _
      // Predicated region
      $region45: #{residual_block_no_bn2.1} parent=11 // pred_check
        %p562 = pneg %p245
      $region46: #{residual_block_no_bn2.1} parent=11 // pred_check_branch
        %564 = sbr.rel (%p562) target = $region48
      $region47: #{residual_block_no_bn2.1} parent=11 // pred_region
        _
      $region48: #{residual_block_no_bn2.1} parent=11 // pred_fallthru
        _
      // Predicated region
      $region49: #{residual_block_no_bn2.1} parent=11 // pred_check
        %p565 = pneg %p266
      $region50: #{residual_block_no_bn2.1} parent=11 // pred_check_branch
        %567 = sbr.rel (%p565) target = $region52
      $region51: #{residual_block_no_bn2.1} parent=11 // pred_region
        _
      $region52: #{residual_block_no_bn2.1} parent=11 // pred_fallthru
        _
      // Predicated region
      $region53: #{residual_block_no_bn2.1} parent=11 // pred_check
        %p568 = pneg %p287
      $region54: #{residual_block_no_bn2.1} parent=11 // pred_check_branch
        %570 = sbr.rel (%p568) target = $region56
      $region55: #{residual_block_no_bn2.1} parent=11 // pred_region
        _
      $region56: #{residual_block_no_bn2.1} parent=11 // pred_fallthru
        _
      // Predicated region
      $region57: #{residual_block_no_bn2.1} parent=11 // pred_check
        %p571 = pneg %p308
      $region58: #{residual_block_no_bn2.1} parent=11 // pred_check_branch
        %573 = sbr.rel (%p571) target = $region60
      $region59: #{residual_block_no_bn2.1} parent=11 // pred_region
        _
      $region60: #{residual_block_no_bn2.1} parent=11 // pred_fallthru
        _
      // Predicated region
      $region61: #{residual_block_no_bn2.1} parent=11 // pred_check
        %p574 = pneg %p329
      $region62: #{residual_block_no_bn2.1} parent=11 // pred_check_branch
        %576 = sbr.rel (%p574) target = $region64
      $region63: #{residual_block_no_bn2.1} parent=11 // pred_region
        _
      $region64: #{residual_block_no_bn2.1} parent=11 // pred_fallthru
        _
      // Predicated region
      $region65: #{residual_block_no_bn2.1} parent=11 // pred_check
        %p577 = pneg %p350
      $region66: #{residual_block_no_bn2.1} parent=11 // pred_check_branch
        %579 = sbr.rel (%p577) target = $region68
      $region67: #{residual_block_no_bn2.1} parent=11 // pred_region
        _
      $region68: #{residual_block_no_bn2.1} parent=11 // pred_fallthru
        _
      // Predicated region
      $region69: #{residual_block_no_bn2.1} parent=11 // pred_check
        %p580 = pneg %p371
      $region70: #{residual_block_no_bn2.1} parent=11 // pred_check_branch
        %582 = sbr.rel (%p580) target = $region72
      $region71: #{residual_block_no_bn2.1} parent=11 // pred_region
        _
      $region72: #{residual_block_no_bn2.1} parent=11 // pred_fallthru
        _
      // Predicated region
      $region73: #{residual_block_no_bn2.1} parent=11 // pred_check
        %p583 = pneg %p392
      $region74: #{residual_block_no_bn2.1} parent=11 // pred_check_branch
        %585 = sbr.rel (%p583) target = $region76
      $region75: #{residual_block_no_bn2.1} parent=11 // pred_region
        _
      $region76: #{residual_block_no_bn2.1} parent=11 // pred_fallthru
        _
      // Predicated region
      $region77: #{residual_block_no_bn2.1} parent=11 // pred_check
        %p586 = pneg %p413
      $region78: #{residual_block_no_bn2.1} parent=11 // pred_check_branch
        %588 = sbr.rel (%p586) target = $region80
      $region79: #{residual_block_no_bn2.1} parent=11 // pred_region
        _
      $region80: #{residual_block_no_bn2.1} parent=11 // pred_fallthru
        _
      // Predicated region
      $region81: #{residual_block_no_bn2.1} parent=11 // pred_check
        %p589 = pneg %p434
      $region82: #{residual_block_no_bn2.1} parent=11 // pred_check_branch
        %591 = sbr.rel (%p589) target = $region84
      $region83: #{residual_block_no_bn2.1} parent=11 // pred_region
        _
      $region84: #{residual_block_no_bn2.1} parent=11 // pred_fallthru
        _
      // Predicated region
      $region85: #{residual_block_no_bn2.1} parent=11 // pred_check
        %p592 = pneg %p455
      $region86: #{residual_block_no_bn2.1} parent=11 // pred_check_branch
        %594 = sbr.rel (%p592) target = $region88
      $region87: #{residual_block_no_bn2.1} parent=11 // pred_region
        _
      $region88: #{residual_block_no_bn2.1} parent=11 // pred_fallthru
        _
      // Predicated region
      $region89: #{residual_block_no_bn2.1} parent=11 // pred_check
        %p595 = pneg %p476
      $region90: #{residual_block_no_bn2.1} parent=11 // pred_check_branch
        %597 = sbr.rel (%p595) target = $region92
      $region91: #{residual_block_no_bn2.1} parent=11 // pred_region
        _
      $region92: #{residual_block_no_bn2.1} parent=11 // pred_fallthru
        _
      // Predicated region
      $region93: #{residual_block_no_bn2.1} parent=11 // pred_check
        %p598 = pneg %p497
      $region94: #{residual_block_no_bn2.1} parent=11 // pred_check_branch
        %600 = sbr.rel (%p598) target = $region96
      $region95: #{residual_block_no_bn2.1} parent=11 // pred_region
        _
      $region96: #{residual_block_no_bn2.1} parent=11 // pred_fallthru
        _
    $region12: #{residual_block_no_bn2.1} parent=5 // pred_fallthru
      _
    %p601 = scmp.lt.s32.totalorder %s30, 2
    // Predicated region
    $region97: #{residual_block_no_bn2.1} parent=5 // pred_check
      %p602 = pneg %p601
    $region98: #{residual_block_no_bn2.1} parent=5 // pred_check_branch
      %604 = sbr.rel (%p602) target = $region100
    $region99: #{residual_block_no_bn2.1} parent=5 // pred_region
      // Predicated region
      $region101: #{residual_block_no_bn2.1} parent=99 // pred_check
        %p605 = pneg %p50
      $region102: #{residual_block_no_bn2.1} parent=99 // pred_check_branch
        %607 = sbr.rel (%p605) target = $region104
      $region103: #{residual_block_no_bn2.1} parent=99 // pred_region
        %p608 = scmp.lt.s32.totalorder %s30, 1
        %s609 = scalar_select %p608, %s30, 1
        %s610 = smul.addr %s609, 4
        %s611 = smul.addr %s610, 8
        %s612 = scalar_lea.vmem %s0, %s611
      $region104: #{residual_block_no_bn2.1} parent=99 // pred_fallthru
        _
    $region100: #{residual_block_no_bn2.1} parent=5 // pred_fallthru
      _
    %p613 = scmp.le.s32.totalorder 1, %s30
    %p614 = scmp.lt.s32.totalorder %s30, 3
    %p615 = pnand %p613, %p614
    %p616 = pneg %p615
    // Predicated region
    $region105: #{residual_block_no_bn2.1} parent=5 // pred_check
      _
    $region106: #{residual_block_no_bn2.1} parent=5 // pred_check_branch
      %618 = sbr.rel (%p615) target = $region108
    $region107: #{residual_block_no_bn2.1} parent=5 // pred_region
      %s619 = ssub.s32 %s30, 1
      %p620 = scmp.lt.s32.totalorder %s35, 1
      %s621 = scalar_select %p620, %s35, 1
      %s622 = smul.addr %s621, 4
      %s623 = smul.addr %s622, 8
      %s624 = scalar_lea.vmem %s0, %s623
      %p625 = pneg %p56
      %p626 = pneg %p53
      %p627 = pneg %p77
      %p628 = pneg %p74
      %p629 = pneg %p98
      %p630 = pneg %p95
      %p631 = pneg %p119
      %p632 = pneg %p116
      %p633 = pneg %p140
      %p634 = pneg %p137
      %p635 = pneg %p161
      %p636 = pneg %p158
      %p637 = pneg %p182
      %p638 = pneg %p179
      %p639 = pneg %p203
      %p640 = pneg %p200
      %p641 = pneg %p224
      %p642 = pneg %p221
      %p643 = pneg %p245
      %p644 = pneg %p242
      %p645 = pneg %p266
      %p646 = pneg %p263
      %p647 = pneg %p287
      %p648 = pneg %p284
      %p649 = pneg %p308
      %p650 = pneg %p305
      %p651 = pneg %p329
      %p652 = pneg %p326
      %p653 = pneg %p350
      %p654 = pneg %p347
      %p655 = pneg %p371
      %p656 = pneg %p368
      %p657 = pneg %p392
      %p658 = pneg %p389
      %p659 = pneg %p413
      %p660 = pneg %p410
      %p661 = pneg %p434
      %p662 = pneg %p431
      %p663 = pneg %p455
      %p664 = pneg %p452
      %p665 = pneg %p476
      %p666 = pneg %p473
      %p667 = pneg %p497
      %p668 = pneg %p494
      %p669 = pneg %p523
      %p670 = pneg %p520
      %p671 = scmp.lt.s32.totalorder %s35, 1
      %s672 = scalar_select %p671, %s35, 1
      %s673 = smul.addr %s672, 4
      %s674 = smul.addr %s673, 8
      %s675 = scalar_lea.vmem %s22, %s674
      %p676 = scmp.lt.s32.totalorder %s35, 1
      %s677 = scalar_select %p676, %s35, 1
      %s678 = smul.addr %s677, 4
      %s679 = smul.addr %s678, 8
      %s680 = scalar_lea.vmem %s0, %s679
      %p681 = scmp.lt.s32.totalorder %s35, 1
      %s682 = scalar_select %p681, %s35, 1
      %s683 = smul.addr %s682, 4
      %s684 = smul.addr %s683, 8
      %s685 = scalar_lea.vmem %s22, %s684
      %v686 = vld [vmem:[%s680] sm:$0xff]
      %v687 = vld [vmem:[%s680 + $0x8] sm:$0xff]
      %v688 = vld [vmem:[%s680 + $0x10] sm:$0xff]
      %v689 = vld [vmem:[%s680 + $0x18] sm:$0xff]
      %690 = vrot.lane.b32.xlu0 %v686, 17
      %v691 = vpop.permute.xlu0 %690
      %692 = vrot.lane.b32.xlu0 %v688, 17
      %v693 = vpop.permute.xlu0 %692
      %694 = vrot.lane.b32.xlu0 %v687, 17
      %v695 = vpop.permute.xlu0 %694
      %696 = vrot.lane.b32.xlu0 %v689, 17
      %v697 = vpop.permute.xlu0 %696
      %v698 = vlaneseq
      %v699 = vand.u32 %v698, 127
      %vm700 = vcmp.lt.s32.totalorder %v699, 17
      %v701 = vsel %vm700, %v691, %v695
      %v702 = vsel %vm700, %v693, %v697
      %v703 = vsel %vm700, %v695, %v691
      %v704 = vsel %vm700, %v697, %v693
      %v705 = vld [vmem:[%s2] sm:$0x3]
      %v707 = vlaneseq
      %v708 = vshrl.u32 %v707, 7
      %v709 = vsub.s32 0, %v708
      %v710 = vrot.slane %v705, %v709
      %v711 = vlaneseq
      %v712 = vshrl.u32 %v711, 7
      %v713 = vsub.s32 1, %v712
      %v714 = vrot.slane %v705, %v713
      %v717 = vmul.f32 %v703, %v710
      %v718 = vmul.f32 %v701, %v714
      %v719 = vmul.f32 %v704, %v710
      %v720 = vmul.f32 %v702, %v714
      %721 = vrot.lane.b32.xlu0 %v686, 16
      %v722 = vpop.permute.xlu0 %721
      %723 = vrot.lane.b32.xlu0 %v688, 16
      %v724 = vpop.permute.xlu0 %723
      %725 = vrot.lane.b32.xlu0 %v687, 16
      %v726 = vpop.permute.xlu0 %725
      %727 = vrot.lane.b32.xlu0 %v689, 16
      %v728 = vpop.permute.xlu0 %727
      %vm729 = vcmp.lt.s32.totalorder %v699, 16
      %v730 = vsel %vm729, %v722, %v726
      %v731 = vsel %vm729, %v724, %v728
      %v732 = vsel %vm729, %v726, %v722
      %v733 = vsel %vm729, %v728, %v724
      %s734 = scalar_lea.vmem %s2, 2
      %v735 = vld [vmem:[%s734] sm:$0x3]
      %v737 = vlaneseq
      %v738 = vshrl.u32 %v737, 7
      %v739 = vsub.s32 0, %v738
      %v740 = vrot.slane %v735, %v739
      %v741 = vlaneseq
      %v742 = vshrl.u32 %v741, 7
      %v743 = vsub.s32 1, %v742
      %v744 = vrot.slane %v735, %v743
      %v747 = vmul.f32 %v732, %v740
      %v748 = vmul.f32 %v730, %v744
      %v749 = vmul.f32 %v733, %v740
      %v750 = vmul.f32 %v731, %v744
      %751 = vrot.lane.b32.xlu0 %v686, 15
      %v752 = vpop.permute.xlu0 %751
      %753 = vrot.lane.b32.xlu0 %v688, 15
      %v754 = vpop.permute.xlu0 %753
      %755 = vrot.lane.b32.xlu0 %v687, 15
      %v756 = vpop.permute.xlu0 %755
      %757 = vrot.lane.b32.xlu0 %v689, 15
      %v758 = vpop.permute.xlu0 %757
      %vm759 = vcmp.lt.s32.totalorder %v699, 15
      %v760 = vsel %vm759, %v752, %v756
      %v761 = vsel %vm759, %v754, %v758
      %v762 = vsel %vm759, %v756, %v752
      %v763 = vsel %vm759, %v758, %v754
      %s764 = scalar_lea.vmem %s2, 4
      %v765 = vld [vmem:[%s764] sm:$0x3]
      %v767 = vlaneseq
      %v768 = vshrl.u32 %v767, 7
      %v769 = vsub.s32 0, %v768
      %v770 = vrot.slane %v765, %v769
      %v771 = vlaneseq
      %v772 = vshrl.u32 %v771, 7
      %v773 = vsub.s32 1, %v772
      %v774 = vrot.slane %v765, %v773
      %v777 = vmul.f32 %v762, %v770
      %v778 = vmul.f32 %v760, %v774
      %v779 = vmul.f32 %v763, %v770
      %v780 = vmul.f32 %v761, %v774
      %781 = vrot.lane.b32.xlu0 %v686, 1
      %v782 = vpop.permute.xlu0 %781
      %783 = vrot.lane.b32.xlu0 %v688, 1
      %v784 = vpop.permute.xlu0 %783
      %785 = vrot.lane.b32.xlu0 %v687, 1
      %v786 = vpop.permute.xlu0 %785
      %787 = vrot.lane.b32.xlu0 %v689, 1
      %v788 = vpop.permute.xlu0 %787
      %vm789 = vcmp.lt.s32.totalorder %v699, 1
      %v790 = vsel %vm789, %v782, %v786
      %v791 = vsel %vm789, %v784, %v788
      %v792 = vsel %vm789, %v786, %v782
      %v793 = vsel %vm789, %v788, %v784
      %s794 = scalar_lea.vmem %s2, 6
      %v795 = vld [vmem:[%s794] sm:$0x3]
      %v797 = vlaneseq
      %v798 = vshrl.u32 %v797, 7
      %v799 = vsub.s32 0, %v798
      %v800 = vrot.slane %v795, %v799
      %v801 = vlaneseq
      %v802 = vshrl.u32 %v801, 7
      %v803 = vsub.s32 1, %v802
      %v804 = vrot.slane %v795, %v803
      %v807 = vmul.f32 %v792, %v800
      %v808 = vmul.f32 %v790, %v804
      %v809 = vmul.f32 %v793, %v800
      %v810 = vmul.f32 %v791, %v804
      %811 = vrot.lane.b32.xlu0 %v686, 127
      %v812 = vpop.permute.xlu0 %811
      %813 = vrot.lane.b32.xlu0 %v688, 127
      %v814 = vpop.permute.xlu0 %813
      %815 = vrot.lane.b32.xlu0 %v687, 127
      %v816 = vpop.permute.xlu0 %815
      %817 = vrot.lane.b32.xlu0 %v689, 127
      %v818 = vpop.permute.xlu0 %817
      %vm819 = vcmp.lt.s32.totalorder %v699, 127
      %v820 = vsel %vm819, %v812, %v816
      %v821 = vsel %vm819, %v814, %v818
      %v822 = vsel %vm819, %v816, %v812
      %v823 = vsel %vm819, %v818, %v814
      %s824 = scalar_lea.vmem %s2, 10
      %v825 = vld [vmem:[%s824] sm:$0x3]
      %v827 = vlaneseq
      %v828 = vshrl.u32 %v827, 7
      %v829 = vsub.s32 0, %v828
      %v830 = vrot.slane %v825, %v829
      %v831 = vlaneseq
      %v832 = vshrl.u32 %v831, 7
      %v833 = vsub.s32 1, %v832
      %v834 = vrot.slane %v825, %v833
      %v837 = vmul.f32 %v820, %v830
      %v838 = vmul.f32 %v822, %v834
      %v839 = vmul.f32 %v821, %v830
      %v840 = vmul.f32 %v823, %v834
      %841 = vrot.lane.b32.xlu0 %v686, 113
      %v842 = vpop.permute.xlu0 %841
      %843 = vrot.lane.b32.xlu0 %v688, 113
      %v844 = vpop.permute.xlu0 %843
      %845 = vrot.lane.b32.xlu0 %v687, 113
      %v846 = vpop.permute.xlu0 %845
      %847 = vrot.lane.b32.xlu0 %v689, 113
      %v848 = vpop.permute.xlu0 %847
      %vm849 = vcmp.lt.s32.totalorder %v699, 113
      %v850 = vsel %vm849, %v842, %v846
      %v851 = vsel %vm849, %v844, %v848
      %v852 = vsel %vm849, %v846, %v842
      %v853 = vsel %vm849, %v848, %v844
      %s854 = scalar_lea.vmem %s2, 12
      %v855 = vld [vmem:[%s854] sm:$0x3]
      %v857 = vlaneseq
      %v858 = vshrl.u32 %v857, 7
      %v859 = vsub.s32 0, %v858
      %v860 = vrot.slane %v855, %v859
      %v861 = vlaneseq
      %v862 = vshrl.u32 %v861, 7
      %v863 = vsub.s32 1, %v862
      %v864 = vrot.slane %v855, %v863
      %v867 = vmul.f32 %v850, %v860
      %v868 = vmul.f32 %v852, %v864
      %v869 = vmul.f32 %v851, %v860
      %v870 = vmul.f32 %v853, %v864
      %871 = vrot.lane.b32.xlu0 %v686, 112
      %v872 = vpop.permute.xlu0 %871
      %873 = vrot.lane.b32.xlu0 %v688, 112
      %v874 = vpop.permute.xlu0 %873
      %875 = vrot.lane.b32.xlu0 %v687, 112
      %v876 = vpop.permute.xlu0 %875
      %877 = vrot.lane.b32.xlu0 %v689, 112
      %v878 = vpop.permute.xlu0 %877
      %vm879 = vcmp.lt.s32.totalorder %v699, 112
      %v880 = vsel %vm879, %v872, %v876
      %v881 = vsel %vm879, %v874, %v878
      %v882 = vsel %vm879, %v876, %v872
      %v883 = vsel %vm879, %v878, %v874
      %s884 = scalar_lea.vmem %s2, 14
      %v885 = vld [vmem:[%s884] sm:$0x3]
      %v887 = vlaneseq
      %v888 = vshrl.u32 %v887, 7
      %v889 = vsub.s32 0, %v888
      %v890 = vrot.slane %v885, %v889
      %v891 = vlaneseq
      %v892 = vshrl.u32 %v891, 7
      %v893 = vsub.s32 1, %v892
      %v894 = vrot.slane %v885, %v893
      %v897 = vmul.f32 %v880, %v890
      %v898 = vmul.f32 %v882, %v894
      %v899 = vmul.f32 %v881, %v890
      %v900 = vmul.f32 %v883, %v894
      %901 = vrot.lane.b32.xlu0 %v686, 111
      %v902 = vpop.permute.xlu0 %901
      %903 = vrot.lane.b32.xlu0 %v688, 111
      %v904 = vpop.permute.xlu0 %903
      %905 = vrot.lane.b32.xlu0 %v687, 111
      %v906 = vpop.permute.xlu0 %905
      %907 = vrot.lane.b32.xlu0 %v689, 111
      %v908 = vpop.permute.xlu0 %907
      %vm909 = vcmp.lt.s32.totalorder %v699, 111
      %v910 = vsel %vm909, %v902, %v906
      %v911 = vsel %vm909, %v904, %v908
      %v912 = vsel %vm909, %v906, %v902
      %v913 = vsel %vm909, %v908, %v904
      %s914 = scalar_lea.vmem %s2, 16
      %v915 = vld [vmem:[%s914] sm:$0x3]
      %v917 = vlaneseq
      %v918 = vshrl.u32 %v917, 7
      %v919 = vsub.s32 0, %v918
      %v920 = vrot.slane %v915, %v919
      %v921 = vlaneseq
      %v922 = vshrl.u32 %v921, 7
      %v923 = vsub.s32 1, %v922
      %v924 = vrot.slane %v915, %v923
      %v927 = vmul.f32 %v910, %v920
      %v928 = vmul.f32 %v912, %v924
      %v929 = vmul.f32 %v911, %v920
      %v930 = vmul.f32 %v913, %v924
      %v931 = vld [vmem:[%s3] sm:$0xff]
      %v932 = vld [vmem:[%s3 + $0x8] sm:$0xff]
      %v933 = vld [vmem:[%s3 + $0x10] sm:$0xff]
      %v934 = vld [vmem:[%s3 + $0x18] sm:$0xff]
      %v935 = vld [vmem:[%s4] sm:$0xff]
      %v936 = vld [vmem:[%s4 + $0x8] sm:$0xff]
      %938 = vset.pattern.permute.xlu0 0
      %939 = vperm.xlu0 %938, %v935
      %v940 = vpop.permute.xlu0 %939
      %943 = vset.pattern.permute.xlu0 0
      %944 = vperm.xlu0 %943, %v936
      %v945 = vpop.permute.xlu0 %944
      %vm947 = vcmask 130048
      %v949 = vsel %vm947, %v932, 0
      %v952 = vsel %vm947, %v934, 0
      %954 = vmatprep.subr.mxu0 %v718
      %955 = vmatpush1.msra.mxu0 %v717
      %956 = vmatprep.subr.mxu0 %v720
      %957 = vmatpush1.msra.mxu0 %v719
      %958 = vmatprep.subr.mxu0 %v748
      %959 = vmatpush1.msra.mxu0 %v747
      %960 = vmatprep.subr.mxu0 %v750
      %961 = vmatpush1.msra.mxu0 %v749
      %962 = vmatprep.subr.mxu0 %v778
      %963 = vmatpush1.msra.mxu0 %v777
      %964 = vmatprep.subr.mxu0 %v780
      %965 = vmatpush1.msra.mxu0 %v779
      %966 = vmatprep.subr.mxu0 %v808
      %967 = vmatpush1.msra.mxu0 %v807
      %968 = vmatprep.subr.mxu0 %v810
      %969 = vmatpush1.msra.mxu0 %v809
      %970 = vmatprep.subr.mxu0 %v687
      %971 = vmatpush1.msra.mxu0 %v686
      %972 = vmatprep.subr.mxu0 %v689
      %973 = vmatpush1.msra.mxu0 %v688
      %974 = vmatprep.subr.mxu0 %v838
      %975 = vmatpush1.msra.mxu0 %v837
      %976 = vmatprep.subr.mxu0 %v840
      %977 = vmatpush1.msra.mxu0 %v839
      %978 = vmatprep.subr.mxu0 %v868
      %979 = vmatpush1.msra.mxu0 %v867
      %980 = vmatprep.subr.mxu0 %v870
      %981 = vmatpush1.msra.mxu0 %v869
      %982 = vmatprep.subr.mxu0 %v898
      %983 = vmatpush1.msra.mxu0 %v897
      %984 = vmatprep.subr.mxu0 %v900
      %985 = vmatpush1.msra.mxu0 %v899
      %986 = vmatprep.subr.mxu0 %v928
      %987 = vmatpush1.msra.mxu0 %v927
      %988 = vmatprep.subr.mxu0 %v930
      %989 = vmatpush1.msra.mxu0 %v929
      %990 = vmatprep.subr.mxu0 0.0
      %991 = vmatpush1.msra.mxu0 0.0
      %992 = vmatprep.subr.mxu0 0.0
      %993 = vmatpush1.msra.mxu0 0.0
      %994 = vmatprep.subr.mxu0 0.0
      %995 = vmatpush1.msra.mxu0 0.0
      %996 = vmatprep.subr.mxu0 0.0
      %997 = vmatpush1.msra.mxu0 0.0
      %998 = vmatprep.subr.mxu0 0.0
      %999 = vmatpush1.msra.mxu0 0.0
      %1000 = vmatprep.subr.mxu0 0.0
      %1001 = vmatpush1.msra.mxu0 0.0
      %1002 = vmatprep.subr.mxu0 0.0
      %1003 = vmatpush1.msra.mxu0 0.0
      %1004 = vmatprep.subr.mxu0 0.0
      %1005 = vmatpush1.msra.mxu0 0.0
      %1006 = vmatprep.subr.mxu0 0.0
      %1007 = vmatpush1.msra.mxu0 0.0
      %1008 = vmatprep.subr.mxu0 0.0
      %1009 = vmatpush1.msra.mxu0 0.0
      %1010 = vmatprep.subr.mxu0 0.0
      %1011 = vmatpush1.msra.mxu0 0.0
      %1012 = vmatprep.subr.mxu0 0.0
      %1013 = vmatpush1.msra.mxu0 0.0
      %1014 = vmatprep.subr.mxu0 0.0
      %1015 = vmatpush1.msra.mxu0 0.0
      %1016 = vmatprep.subr.mxu0 0.0
      %1017 = vmatpush1.msra.mxu0 0.0
      %1018 = vmatprep.mubr.f32.mxu0 %v949
      %1019 = vmatmul.mubr.f32.gmra.mrb[0].mxu0 %v931
      %v1020 = vpop.f32.mrb[0].mxu0
      %v1021 = vadd.f32 %v940, %v1020
      %v1022 = vpop.f32.mrb[0].mxu0
      %v1023 = vadd.f32 %v940, %v1022
      %1024 = vmatprep.mubr.f32.mxu0 %v952
      %1025 = vmatmul.mubr.f32.gmra.mrb[0].mxu0 %v933
      %v1026 = vpop.f32.mrb[0].mxu0
      %v1027 = vadd.f32 %v945, %v1026
      %v1028 = vpop.f32.mrb[0].mxu0
      %v1029 = vadd.f32 %v945, %v1028
      %1030 = vdwg.mxu0
      %v1031 = vmax.f32 %v1021, 0.0
      %v1032 = vmax.f32 %v1023, 0.0
      %v1033 = vmax.f32 %v1027, 0.0
      %v1034 = vmax.f32 %v1029, 0.0
      %v1035 = vadd.f32 %v1031, %v1032
      %1036 = vadd.xlane.f32.xlu0 %v1035
      %v1037 = vpop.xlane.xlu0 %1036
      %v1038 = vadd.f32 %v1033, %v1034
      %1039 = vadd.xlane.f32.xlu0 %v1038
      %v1040 = vpop.xlane.xlu0 %1039
      %v1041 = vrcp.pop 256.0
      %v1042 = vmul.f32 %v1037, %v1041
      %v1043 = vmul.f32 %v1040, %v1041
      %v1044 = vmul.f32 %v1031, %v1031
      %v1045 = vmul.f32 %v1032, %v1032
      %v1046 = vmul.f32 %v1033, %v1033
      %v1047 = vmul.f32 %v1034, %v1034
      %v1048 = vadd.f32 %v1044, %v1045
      %1049 = vadd.xlane.f32.xlu0 %v1048
      %v1050 = vpop.xlane.xlu0 %1049
      %v1051 = vadd.f32 %v1046, %v1047
      %1052 = vadd.xlane.f32.xlu0 %v1051
      %v1053 = vpop.xlane.xlu0 %1052
      %v1054 = vmul.f32 %v1050, %v1041
      %v1055 = vmul.f32 %v1053, %v1041
      %v1056 = vld [vmem:[%s7] sm:$0xff]
      %v1057 = vld [vmem:[%s7 + $0x8] sm:$0xff]
      %vm1058 = vcmask 7168
      %v1059 = vsel %vm1058, %v1042, %v1054
      %v1060 = vsel %vm1058, %v1043, %v1055
      %v1062 = vsel %vm947, %v1056, 0
      %v1065 = vsel %vm947, %v1057, 0
      %1067 = vmatprep.subr.mxu0 0.0
      %1068 = vmatpush1.msra.mxu0 %v1059
      %1069 = vmatprep.subr.mxu0 0.0
      %1070 = vmatpush1.msra.mxu0 %v1060
      %1071 = vmatprep.subr.mxu0 0.0
      %1072 = vmatpush1.msra.mxu0 0.0
      %1073 = vmatprep.subr.mxu0 0.0
      %1074 = vmatpush1.msra.mxu0 0.0
      %1075 = vmatprep.subr.mxu0 0.0
      %1076 = vmatpush1.msra.mxu0 0.0
      %1077 = vmatprep.subr.mxu0 0.0
      %1078 = vmatpush1.msra.mxu0 0.0
      %1079 = vmatprep.subr.mxu0 0.0
      %1080 = vmatpush1.msra.mxu0 0.0
      %1081 = vmatprep.subr.mxu0 0.0
      %1082 = vmatpush1.msra.mxu0 0.0
      %1083 = vmatprep.subr.mxu0 0.0
      %1084 = vmatpush1.msra.mxu0 0.0
      %1085 = vmatprep.subr.mxu0 0.0
      %1086 = vmatpush1.msra.mxu0 0.0
      %1087 = vmatprep.subr.mxu0 0.0
      %1088 = vmatpush1.msra.mxu0 0.0
      %1089 = vmatprep.subr.mxu0 0.0
      %1090 = vmatpush1.msra.mxu0 0.0
      %1091 = vmatprep.subr.mxu0 0.0
      %1092 = vmatpush1.msra.mxu0 0.0
      %1093 = vmatprep.subr.mxu0 0.0
      %1094 = vmatpush1.msra.mxu0 0.0
      %1095 = vmatprep.subr.mxu0 0.0
      %1096 = vmatpush1.msra.mxu0 0.0
      %1097 = vmatprep.subr.mxu0 0.0
      %1098 = vmatpush1.msra.mxu0 0.0
      %1099 = vmatprep.subr.mxu0 0.0
      %1100 = vmatpush1.msra.mxu0 0.0
      %1101 = vmatprep.subr.mxu0 0.0
      %1102 = vmatpush1.msra.mxu0 0.0
      %1103 = vmatprep.subr.mxu0 0.0
      %1104 = vmatpush1.msra.mxu0 0.0
      %1105 = vmatprep.subr.mxu0 0.0
      %1106 = vmatpush1.msra.mxu0 0.0
      %1107 = vmatprep.subr.mxu0 0.0
      %1108 = vmatpush1.msra.mxu0 0.0
      %1109 = vmatprep.subr.mxu0 0.0
      %1110 = vmatpush1.msra.mxu0 0.0
      %1111 = vmatprep.subr.mxu0 0.0
      %1112 = vmatpush1.msra.mxu0 0.0
      %1113 = vmatprep.subr.mxu0 0.0
      %1114 = vmatpush1.msra.mxu0 0.0
      %1115 = vmatprep.subr.mxu0 0.0
      %1116 = vmatpush1.msra.mxu0 0.0
      %1117 = vmatprep.subr.mxu0 0.0
      %1118 = vmatpush1.msra.mxu0 0.0
      %1119 = vmatprep.subr.mxu0 0.0
      %1120 = vmatpush1.msra.mxu0 0.0
      %1121 = vmatprep.subr.mxu0 0.0
      %1122 = vmatpush1.msra.mxu0 0.0
      %1123 = vmatprep.subr.mxu0 0.0
      %1124 = vmatpush1.msra.mxu0 0.0
      %1125 = vmatprep.subr.mxu0 0.0
      %1126 = vmatpush1.msra.mxu0 0.0
      %1127 = vmatprep.subr.mxu0 0.0
      %1128 = vmatpush1.msra.mxu0 0.0
      %1129 = vmatprep.subr.mxu0 0.0
      %1130 = vmatpush1.msra.mxu0 0.0
      %1131 = vmatprep.mubr.f32.mxu0 0.0
      %1132 = vmatmul.mubr.f32.gmra.mrb[0].mxu0 %v1062
      %v1133 = vpop.f32.mrb[0].mxu0
      %v1134 = vadd.f32 0.0, %v1133
      %v1135 = vpop.f32.mrb[0].mxu0
      %1136 = vmatprep.mubr.f32.mxu0 0.0
      %1137 = vmatmul.mubr.f32.gmra.mrb[0].mxu0 %v1065
      %v1138 = vpop.f32.mrb[0].mxu0
      %v1139 = vadd.f32 0.0, %v1138
      %v1140 = vpop.f32.mrb[0].mxu0
      %1141 = vdwg.mxu0
      %v1142 = vmul.f32 %v1134, %v1134
      %v1143 = vmul.f32 %v1139, %v1139
      %1146 = vrot.lane.b32.xlu0 %v1142, 1
      %v1147 = vpop.permute.xlu0 %1146
      %1148 = vrot.lane.b32.xlu0 %v1143, 1
      %v1149 = vpop.permute.xlu0 %1148
      %v1152 = vsub.f32 %v1134, %v1147
      %v1153 = vsub.f32 %v1139, %v1149
      %v1154 = vmax.f32 %v1152, 0.0
      %v1155 = vmax.f32 %v1153, 0.0
      %1157 = vset.pattern.permute.xlu0 0
      %1158 = vperm.xlu0 %1157, %v1134
      %v1159 = vpop.permute.xlu0 %1158
      %1162 = vset.pattern.permute.xlu0 0
      %1163 = vperm.xlu0 %1162, %v1139
      %v1164 = vpop.permute.xlu0 %1163
      %v1166 = vsub.f32 %v1031, %v1159
      %v1167 = vsub.f32 %v1032, %v1159
      %v1168 = vsub.f32 %v1033, %v1164
      %v1169 = vsub.f32 %v1034, %v1164
      %v1170 = vadd.f32 %v1154, 1e-05
      %v1171 = vadd.f32 %v1155, 1e-05
      %v1172 = vrsqrt.pop %v1170
      %v1173 = vrsqrt.pop %v1171
      %1175 = vset.pattern.permute.xlu0 1
      %1176 = vperm.xlu0 %1175, %v1172
      %v1177 = vpop.permute.xlu0 %1176
      %1180 = vset.pattern.permute.xlu0 1
      %1181 = vperm.xlu0 %1180, %v1173
      %v1182 = vpop.permute.xlu0 %1181
      %v1184 = vmul.f32 %v1166, %v1177
      %v1185 = vmul.f32 %v1167, %v1177
      %v1186 = vmul.f32 %v1168, %v1182
      %v1187 = vmul.f32 %v1169, %v1182
      %v1188 = vld [vmem:[%s8] sm:$0xff]
      %v1189 = vld [vmem:[%s8 + $0x8] sm:$0xff]
      %1191 = vset.pattern.permute.xlu0 0
      %1192 = vperm.xlu0 %1191, %v1188
      %v1193 = vpop.permute.xlu0 %1192
      %1196 = vset.pattern.permute.xlu0 0
      %1197 = vperm.xlu0 %1196, %v1189
      %v1198 = vpop.permute.xlu0 %1197
      %v1200 = vmul.f32 %v1184, %v1193
      %v1201 = vmul.f32 %v1185, %v1193
      %v1202 = vmul.f32 %v1186, %v1198
      %v1203 = vmul.f32 %v1187, %v1198
      %v1204 = vld [vmem:[%s9] sm:$0xff]
      %v1205 = vld [vmem:[%s9 + $0x8] sm:$0xff]
      %1207 = vset.pattern.permute.xlu0 0
      %1208 = vperm.xlu0 %1207, %v1204
      %v1209 = vpop.permute.xlu0 %1208
      %1212 = vset.pattern.permute.xlu0 0
      %1213 = vperm.xlu0 %1212, %v1205
      %v1214 = vpop.permute.xlu0 %1213
      %v1216 = vadd.f32 %v1200, %v1209
      %v1217 = vadd.f32 %v1201, %v1209
      %v1218 = vadd.f32 %v1202, %v1214
      %v1219 = vadd.f32 %v1203, %v1214
      %v1220 = vsub.f32 0.0, %v1216
      %v1221 = vsub.f32 0.0, %v1217
      %v1222 = vsub.f32 0.0, %v1218
      %v1223 = vsub.f32 0.0, %v1219
      %v1224 = vmul.f32 %v1220, 1.442695
      %v1225 = vpow.pop %v1224
      %v1226 = vmul.f32 %v1221, 1.442695
      %v1227 = vpow.pop %v1226
      %v1228 = vmul.f32 %v1222, 1.442695
      %v1229 = vpow.pop %v1228
      %v1230 = vmul.f32 %v1223, 1.442695
      %v1231 = vpow.pop %v1230
      %v1232 = vadd.f32 %v1225, 1.0
      %v1233 = vadd.f32 %v1227, 1.0
      %v1234 = vadd.f32 %v1229, 1.0
      %v1235 = vadd.f32 %v1231, 1.0
      %v1236 = vrcp.pop %v1232
      %v1237 = vmul.f32 1.0, %v1236
      %v1238 = vrcp.pop %v1233
      %v1239 = vmul.f32 1.0, %v1238
      %v1240 = vrcp.pop %v1234
      %v1241 = vmul.f32 1.0, %v1240
      %v1242 = vrcp.pop %v1235
      %v1243 = vmul.f32 1.0, %v1242
      %v1244 = vmul.f32 %v1237, %v1031
      %v1245 = vmul.f32 %v1239, %v1032
      %v1246 = vmul.f32 %v1241, %v1033
      %v1247 = vmul.f32 %v1243, %v1034
      %vm1248 = vcmp.gt.f32.partialorder %v1237, 0.5
      %vm1249 = vcmp.gt.f32.partialorder %v1239, 0.5
      %vm1250 = vcmp.gt.f32.partialorder %v1241, 0.5
      %vm1251 = vcmp.gt.f32.partialorder %v1243, 0.5
      %v1252 = vsel %vm1248, %v1031, %v1244
      %v1253 = vsel %vm1249, %v1032, %v1245
      %v1254 = vsel %vm1250, %v1033, %v1246
      %v1255 = vsel %vm1251, %v1034, %v1247
      %v1256 = vsel %vm1248, 0.0, %v1244
      %v1257 = vsel %vm1249, 0.0, %v1245
      %v1258 = vsel %vm1250, 0.0, %v1246
      %v1259 = vsel %vm1251, 0.0, %v1247
      %v1260 = vadd.f32 %v1252, %v1258
      %v1261 = vadd.f32 %v1253, %v1259
      %v1262 = vadd.f32 %v1254, %v1256
      %v1263 = vadd.f32 %v1255, %v1257
      %v1264 = vld [vmem:[%s10] sm:$0xf]
      %vm1265 = vcmask 64512
      %v1267 = vsel %vm1265, %v1264, 0
      %1269 = vmatprep.subr.mxu0 %v1261
      %1270 = vmatpush1.msra.mxu0 %v1260
      %1271 = vmatprep.subr.mxu0 0.0
      %1272 = vmatpush1.msra.mxu0 0.0
      %1273 = vmatprep.subr.mxu0 0.0
      %1274 = vmatpush1.msra.mxu0 0.0
      %1275 = vmatprep.subr.mxu0 0.0
      %1276 = vmatpush1.msra.mxu0 0.0
      %1277 = vmatprep.subr.mxu0 0.0
      %1278 = vmatpush1.msra.mxu0 0.0
      %1279 = vmatprep.subr.mxu0 0.0
      %1280 = vmatpush1.msra.mxu0 0.0
      %1281 = vmatprep.subr.mxu0 0.0
      %1282 = vmatpush1.msra.mxu0 0.0
      %1283 = vmatprep.subr.mxu0 0.0
      %1284 = vmatpush1.msra.mxu0 0.0
      %1285 = vmatprep.subr.mxu0 0.0
      %1286 = vmatpush1.msra.mxu0 0.0
      %1287 = vmatprep.subr.mxu0 0.0
      %1288 = vmatpush1.msra.mxu0 0.0
      %1289 = vmatprep.subr.mxu0 0.0
      %1290 = vmatpush1.msra.mxu0 0.0
      %1291 = vmatprep.subr.mxu0 0.0
      %1292 = vmatpush1.msra.mxu0 0.0
      %1293 = vmatprep.subr.mxu0 0.0
      %1294 = vmatpush1.msra.mxu0 0.0
      %1295 = vmatprep.subr.mxu0 0.0
      %1296 = vmatpush1.msra.mxu0 0.0
      %1297 = vmatprep.subr.mxu0 0.0
      %1298 = vmatpush1.msra.mxu0 0.0
      %1299 = vmatprep.subr.mxu0 0.0
      %1300 = vmatpush1.msra.mxu0 0.0
      %1301 = vmatprep.subr.mxu0 0.0
      %1302 = vmatpush1.msra.mxu0 0.0
      %1303 = vmatprep.subr.mxu0 0.0
      %1304 = vmatpush1.msra.mxu0 0.0
      %1305 = vmatprep.subr.mxu0 0.0
      %1306 = vmatpush1.msra.mxu0 0.0
      %1307 = vmatprep.subr.mxu0 0.0
      %1308 = vmatpush1.msra.mxu0 0.0
      %1309 = vmatprep.subr.mxu0 0.0
      %1310 = vmatpush1.msra.mxu0 0.0
      %1311 = vmatprep.subr.mxu0 0.0
      %1312 = vmatpush1.msra.mxu0 0.0
      %1313 = vmatprep.subr.mxu0 0.0
      %1314 = vmatpush1.msra.mxu0 0.0
      %1315 = vmatprep.subr.mxu0 0.0
      %1316 = vmatpush1.msra.mxu0 0.0
      %1317 = vmatprep.subr.mxu0 0.0
      %1318 = vmatpush1.msra.mxu0 0.0
      %1319 = vmatprep.subr.mxu0 0.0
      %1320 = vmatpush1.msra.mxu0 0.0
      %1321 = vmatprep.subr.mxu0 0.0
      %1322 = vmatpush1.msra.mxu0 0.0
      %1323 = vmatprep.subr.mxu0 0.0
      %1324 = vmatpush1.msra.mxu0 0.0
      %1325 = vmatprep.subr.mxu0 0.0
      %1326 = vmatpush1.msra.mxu0 0.0
      %1327 = vmatprep.subr.mxu0 0.0
      %1328 = vmatpush1.msra.mxu0 0.0
      %1329 = vmatprep.subr.mxu0 0.0
      %1330 = vmatpush1.msra.mxu0 0.0
      %1331 = vmatprep.subr.mxu0 0.0
      %1332 = vmatpush1.msra.mxu0 0.0
      %1333 = vmatprep.mubr.f32.mxu0 0.0
      %1334 = vmatmul.mubr.f32.gmra.mrb[0].mxu0 %v1267
      %v1335 = vpop.f32.mrb[0].mxu0
      %v1336 = vadd.f32 0.0, %v1335
      %v1337 = vpop.f32.mrb[0].mxu0
      %v1338 = vadd.f32 0.0, %v1337
      %1339 = vdwg.mxu0
      %v1340 = vld [vmem:[%s11] sm:$0xf]
      %v1342 = vsel %vm1265, %v1340, 0
      %1344 = vmatprep.subr.mxu0 %v1263
      %1345 = vmatpush1.msra.mxu0 %v1262
      %1346 = vmatprep.subr.mxu0 0.0
      %1347 = vmatpush1.msra.mxu0 0.0
      %1348 = vmatprep.subr.mxu0 0.0
      %1349 = vmatpush1.msra.mxu0 0.0
      %1350 = vmatprep.subr.mxu0 0.0
      %1351 = vmatpush1.msra.mxu0 0.0
      %1352 = vmatprep.subr.mxu0 0.0
      %1353 = vmatpush1.msra.mxu0 0.0
      %1354 = vmatprep.subr.mxu0 0.0
      %1355 = vmatpush1.msra.mxu0 0.0
      %1356 = vmatprep.subr.mxu0 0.0
      %1357 = vmatpush1.msra.mxu0 0.0
      %1358 = vmatprep.subr.mxu0 0.0
      %1359 = vmatpush1.msra.mxu0 0.0
      %1360 = vmatprep.subr.mxu0 0.0
      %1361 = vmatpush1.msra.mxu0 0.0
      %1362 = vmatprep.subr.mxu0 0.0
      %1363 = vmatpush1.msra.mxu0 0.0
      %1364 = vmatprep.subr.mxu0 0.0
      %1365 = vmatpush1.msra.mxu0 0.0
      %1366 = vmatprep.subr.mxu0 0.0
      %1367 = vmatpush1.msra.mxu0 0.0
      %1368 = vmatprep.subr.mxu0 0.0
      %1369 = vmatpush1.msra.mxu0 0.0
      %1370 = vmatprep.subr.mxu0 0.0
      %1371 = vmatpush1.msra.mxu0 0.0
      %1372 = vmatprep.subr.mxu0 0.0
      %1373 = vmatpush1.msra.mxu0 0.0
      %1374 = vmatprep.subr.mxu0 0.0
      %1375 = vmatpush1.msra.mxu0 0.0
      %1376 = vmatprep.subr.mxu0 0.0
      %1377 = vmatpush1.msra.mxu0 0.0
      %1378 = vmatprep.subr.mxu0 0.0
      %1379 = vmatpush1.msra.mxu0 0.0
      %1380 = vmatprep.subr.mxu0 0.0
      %1381 = vmatpush1.msra.mxu0 0.0
      %1382 = vmatprep.subr.mxu0 0.0
      %1383 = vmatpush1.msra.mxu0 0.0
      %1384 = vmatprep.subr.mxu0 0.0
      %1385 = vmatpush1.msra.mxu0 0.0
      %1386 = vmatprep.subr.mxu0 0.0
      %1387 = vmatpush1.msra.mxu0 0.0
      %1388 = vmatprep.subr.mxu0 0.0
      %1389 = vmatpush1.msra.mxu0 0.0
      %1390 = vmatprep.subr.mxu0 0.0
      %1391 = vmatpush1.msra.mxu0 0.0
      %1392 = vmatprep.subr.mxu0 0.0
      %1393 = vmatpush1.msra.mxu0 0.0
      %1394 = vmatprep.subr.mxu0 0.0
      %1395 = vmatpush1.msra.mxu0 0.0
      %1396 = vmatprep.subr.mxu0 0.0
      %1397 = vmatpush1.msra.mxu0 0.0
      %1398 = vmatprep.subr.mxu0 0.0
      %1399 = vmatpush1.msra.mxu0 0.0
      %1400 = vmatprep.subr.mxu0 0.0
      %1401 = vmatpush1.msra.mxu0 0.0
      %1402 = vmatprep.subr.mxu0 0.0
      %1403 = vmatpush1.msra.mxu0 0.0
      %1404 = vmatprep.subr.mxu0 0.0
      %1405 = vmatpush1.msra.mxu0 0.0
      %1406 = vmatprep.subr.mxu0 0.0
      %1407 = vmatpush1.msra.mxu0 0.0
      %1408 = vmatprep.mubr.f32.mxu0 0.0
      %1409 = vmatmul.mubr.f32.gmra.mrb[0].mxu0 %v1342
      %v1410 = vpop.f32.mrb[0].mxu0
      %v1411 = vadd.f32 0.0, %v1410
      %v1412 = vpop.f32.mrb[0].mxu0
      %v1413 = vadd.f32 0.0, %v1412
      %1414 = vdwg.mxu0
      %1415 = vrot.lane.b32.xlu0 %v1336, 17
      %v1416 = vpop.permute.xlu0 %1415
      %1417 = vrot.lane.b32.xlu0 %v1338, 17
      %v1418 = vpop.permute.xlu0 %1417
      %v1419 = vsel %vm700, %v1416, %v1418
      %v1420 = vsel %vm700, %v1418, %v1416
      %v1421 = vmul.f32 %v1420, %v710
      %v1422 = vmul.f32 %v1419, %v714
      %1423 = vrot.lane.b32.xlu0 %v1336, 16
      %v1424 = vpop.permute.xlu0 %1423
      %1425 = vrot.lane.b32.xlu0 %v1338, 16
      %v1426 = vpop.permute.xlu0 %1425
      %v1427 = vsel %vm729, %v1424, %v1426
      %v1428 = vsel %vm729, %v1426, %v1424
      %v1429 = vmul.f32 %v1428, %v740
      %v1430 = vmul.f32 %v1427, %v744
      %1431 = vrot.lane.b32.xlu0 %v1336, 15
      %v1432 = vpop.permute.xlu0 %1431
      %1433 = vrot.lane.b32.xlu0 %v1338, 15
      %v1434 = vpop.permute.xlu0 %1433
      %v1435 = vsel %vm759, %v1432, %v1434
      %v1436 = vsel %vm759, %v1434, %v1432
      %v1437 = vmul.f32 %v1436, %v770
      %v1438 = vmul.f32 %v1435, %v774
      %1439 = vrot.lane.b32.xlu0 %v1336, 1
      %v1440 = vpop.permute.xlu0 %1439
      %1441 = vrot.lane.b32.xlu0 %v1338, 1
      %v1442 = vpop.permute.xlu0 %1441
      %v1443 = vsel %vm789, %v1440, %v1442
      %v1444 = vsel %vm789, %v1442, %v1440
      %v1445 = vmul.f32 %v1444, %v800
      %v1446 = vmul.f32 %v1443, %v804
      %1447 = vrot.lane.b32.xlu0 %v1336, 127
      %v1448 = vpop.permute.xlu0 %1447
      %1449 = vrot.lane.b32.xlu0 %v1338, 127
      %v1450 = vpop.permute.xlu0 %1449
      %v1451 = vsel %vm819, %v1448, %v1450
      %v1452 = vsel %vm819, %v1450, %v1448
      %v1453 = vmul.f32 %v1451, %v830
      %v1454 = vmul.f32 %v1452, %v834
      %1455 = vrot.lane.b32.xlu0 %v1336, 113
      %v1456 = vpop.permute.xlu0 %1455
      %1457 = vrot.lane.b32.xlu0 %v1338, 113
      %v1458 = vpop.permute.xlu0 %1457
      %v1459 = vsel %vm849, %v1456, %v1458
      %v1460 = vsel %vm849, %v1458, %v1456
      %v1461 = vmul.f32 %v1459, %v860
      %v1462 = vmul.f32 %v1460, %v864
      %1463 = vrot.lane.b32.xlu0 %v1336, 112
      %v1464 = vpop.permute.xlu0 %1463
      %1465 = vrot.lane.b32.xlu0 %v1338, 112
      %v1466 = vpop.permute.xlu0 %1465
      %v1467 = vsel %vm879, %v1464, %v1466
      %v1468 = vsel %vm879, %v1466, %v1464
      %v1469 = vmul.f32 %v1467, %v890
      %v1470 = vmul.f32 %v1468, %v894
      %1471 = vrot.lane.b32.xlu0 %v1336, 111
      %v1472 = vpop.permute.xlu0 %1471
      %1473 = vrot.lane.b32.xlu0 %v1338, 111
      %v1474 = vpop.permute.xlu0 %1473
      %v1475 = vsel %vm909, %v1472, %v1474
      %v1476 = vsel %vm909, %v1474, %v1472
      %v1477 = vmul.f32 %v1475, %v920
      %v1478 = vmul.f32 %v1476, %v924
      %v1479 = vld [vmem:[%s12] sm:$0xff]
      %v1480 = vld [vmem:[%s12 + $0x8] sm:$0xff]
      %1483 = vrot.lane.b32.xlu0 %v1479, 124
      %v1484 = vpop.permute.xlu0 %1483
      %1485 = vrot.lane.b32.xlu0 %v1480, 124
      %v1486 = vpop.permute.xlu0 %1485
      %vm1487 = vcmask 31744
      %v1488 = vsel %vm1487, %v1484, 0
      %v1490 = vsel %vm1487, %v1486, 0
      %vm1492 = vcmask 1043456
      %v1494 = vsel %vm1492, %v1429, 0
      %v1497 = vsel %vm1492, %v1430, 0
      %1499 = vmatprep.subr.mxu0 %v1497
      %1500 = vmatpush1.msra.mxu0 %v1494
      %1501 = vmatprep.subr.mxu0 0.0
      %1502 = vmatpush1.msra.mxu0 0.0
      %1503 = vmatprep.subr.mxu0 0.0
      %1504 = vmatpush1.msra.mxu0 0.0
      %1505 = vmatprep.subr.mxu0 0.0
      %1506 = vmatpush1.msra.mxu0 0.0
      %1507 = vmatprep.subr.mxu0 0.0
      %1508 = vmatpush1.msra.mxu0 0.0
      %1509 = vmatprep.subr.mxu0 0.0
      %1510 = vmatpush1.msra.mxu0 0.0
      %1511 = vmatprep.subr.mxu0 0.0
      %1512 = vmatpush1.msra.mxu0 0.0
      %1513 = vmatprep.subr.mxu0 0.0
      %1514 = vmatpush1.msra.mxu0 0.0
      %1515 = vmatprep.subr.mxu0 0.0
      %1516 = vmatpush1.msra.mxu0 0.0
      %1517 = vmatprep.subr.mxu0 0.0
      %1518 = vmatpush1.msra.mxu0 0.0
      %1519 = vmatprep.subr.mxu0 0.0
      %1520 = vmatpush1.msra.mxu0 0.0
      %1521 = vmatprep.subr.mxu0 0.0
      %1522 = vmatpush1.msra.mxu0 0.0
      %1523 = vmatprep.subr.mxu0 0.0
      %1524 = vmatpush1.msra.mxu0 0.0
      %1525 = vmatprep.subr.mxu0 0.0
      %1526 = vmatpush1.msra.mxu0 0.0
      %1527 = vmatprep.subr.mxu0 0.0
      %1528 = vmatpush1.msra.mxu0 0.0
      %1529 = vmatprep.subr.mxu0 0.0
      %1530 = vmatpush1.msra.mxu0 0.0
      %1531 = vmatprep.subr.mxu0 0.0
      %1532 = vmatpush1.msra.mxu0 0.0
      %1533 = vmatprep.subr.mxu0 0.0
      %1534 = vmatpush1.msra.mxu0 0.0
      %1535 = vmatprep.subr.mxu0 0.0
      %1536 = vmatpush1.msra.mxu0 0.0
      %1537 = vmatprep.subr.mxu0 0.0
      %1538 = vmatpush1.msra.mxu0 0.0
      %1539 = vmatprep.subr.mxu0 0.0
      %1540 = vmatpush1.msra.mxu0 0.0
      %1541 = vmatprep.subr.mxu0 0.0
      %1542 = vmatpush1.msra.mxu0 0.0
      %1543 = vmatprep.subr.mxu0 0.0
      %1544 = vmatpush1.msra.mxu0 0.0
      %1545 = vmatprep.subr.mxu0 0.0
      %1546 = vmatpush1.msra.mxu0 0.0
      %1547 = vmatprep.subr.mxu0 0.0
      %1548 = vmatpush1.msra.mxu0 0.0
      %1549 = vmatprep.subr.mxu0 0.0
      %1550 = vmatpush1.msra.mxu0 0.0
      %1551 = vmatprep.subr.mxu0 0.0
      %1552 = vmatpush1.msra.mxu0 0.0
      %1553 = vmatprep.subr.mxu0 0.0
      %1554 = vmatpush1.msra.mxu0 0.0
      %1555 = vmatprep.subr.mxu0 0.0
      %1556 = vmatpush1.msra.mxu0 0.0
      %1557 = vmatprep.subr.mxu0 0.0
      %1558 = vmatpush1.msra.mxu0 0.0
      %1559 = vmatprep.subr.mxu0 0.0
      %1560 = vmatpush1.msra.mxu0 0.0
      %1561 = vmatprep.subr.mxu0 0.0
      %1562 = vmatpush1.msra.mxu0 0.0
      %1563 = vmatprep.mubr.f32.mxu0 0.0
      %1564 = vmatmul.mubr.f32.gmra.mrb[0].mxu0 %v1488
      %v1565 = vpop.f32.mrb[0].mxu0
      %v1566 = vadd.f32 0.0, %v1565
      %v1567 = vpop.f32.mrb[0].mxu0
      %v1568 = vadd.f32 0.0, %v1567
      %1569 = vmatprep.mubr.f32.mxu0 0.0
      %1570 = vmatmul.mubr.f32.gmra.mrb[0].mxu0 %v1490
      %v1571 = vpop.f32.mrb[0].mxu0
      %v1572 = vadd.f32 0.0, %v1571
      %v1573 = vpop.f32.mrb[0].mxu0
      %v1574 = vadd.f32 0.0, %v1573
      %1575 = vdwg.mxu0
      %v1576 = vsel %vm1487, %v1479, 0
      %v1578 = vsel %vm1487, %v1480, 0
      %v1581 = vsel %vm1492, %v1421, 0
      %v1584 = vsel %vm1492, %v1422, 0
      %1586 = vmatprep.subr.mxu0 %v1584
      %1587 = vmatpush1.msra.mxu0 %v1581
      %1588 = vmatprep.subr.mxu0 0.0
      %1589 = vmatpush1.msra.mxu0 0.0
      %1590 = vmatprep.subr.mxu0 0.0
      %1591 = vmatpush1.msra.mxu0 0.0
      %1592 = vmatprep.subr.mxu0 0.0
      %1593 = vmatpush1.msra.mxu0 0.0
      %1594 = vmatprep.subr.mxu0 0.0
      %1595 = vmatpush1.msra.mxu0 0.0
      %1596 = vmatprep.subr.mxu0 0.0
      %1597 = vmatpush1.msra.mxu0 0.0
      %1598 = vmatprep.subr.mxu0 0.0
      %1599 = vmatpush1.msra.mxu0 0.0
      %1600 = vmatprep.subr.mxu0 0.0
      %1601 = vmatpush1.msra.mxu0 0.0
      %1602 = vmatprep.subr.mxu0 0.0
      %1603 = vmatpush1.msra.mxu0 0.0
      %1604 = vmatprep.subr.mxu0 0.0
      %1605 = vmatpush1.msra.mxu0 0.0
      %1606 = vmatprep.subr.mxu0 0.0
      %1607 = vmatpush1.msra.mxu0 0.0
      %1608 = vmatprep.subr.mxu0 0.0
      %1609 = vmatpush1.msra.mxu0 0.0
      %1610 = vmatprep.subr.mxu0 0.0
      %1611 = vmatpush1.msra.mxu0 0.0
      %1612 = vmatprep.subr.mxu0 0.0
      %1613 = vmatpush1.msra.mxu0 0.0
      %1614 = vmatprep.subr.mxu0 0.0
      %1615 = vmatpush1.msra.mxu0 0.0
      %1616 = vmatprep.subr.mxu0 0.0
      %1617 = vmatpush1.msra.mxu0 0.0
      %1618 = vmatprep.subr.mxu0 0.0
      %1619 = vmatpush1.msra.mxu0 0.0
      %1620 = vmatprep.subr.mxu0 0.0
      %1621 = vmatpush1.msra.mxu0 0.0
      %1622 = vmatprep.subr.mxu0 0.0
      %1623 = vmatpush1.msra.mxu0 0.0
      %1624 = vmatprep.subr.mxu0 0.0
      %1625 = vmatpush1.msra.mxu0 0.0
      %1626 = vmatprep.subr.mxu0 0.0
      %1627 = vmatpush1.msra.mxu0 0.0
      %1628 = vmatprep.subr.mxu0 0.0
      %1629 = vmatpush1.msra.mxu0 0.0
      %1630 = vmatprep.subr.mxu0 0.0
      %1631 = vmatpush1.msra.mxu0 0.0
      %1632 = vmatprep.subr.mxu0 0.0
      %1633 = vmatpush1.msra.mxu0 0.0
      %1634 = vmatprep.subr.mxu0 0.0
      %1635 = vmatpush1.msra.mxu0 0.0
      %1636 = vmatprep.subr.mxu0 0.0
      %1637 = vmatpush1.msra.mxu0 0.0
      %1638 = vmatprep.subr.mxu0 0.0
      %1639 = vmatpush1.msra.mxu0 0.0
      %1640 = vmatprep.subr.mxu0 0.0
      %1641 = vmatpush1.msra.mxu0 0.0
      %1642 = vmatprep.subr.mxu0 0.0
      %1643 = vmatpush1.msra.mxu0 0.0
      %1644 = vmatprep.subr.mxu0 0.0
      %1645 = vmatpush1.msra.mxu0 0.0
      %1646 = vmatprep.subr.mxu0 0.0
      %1647 = vmatpush1.msra.mxu0 0.0
      %1648 = vmatprep.subr.mxu0 0.0
      %1649 = vmatpush1.msra.mxu0 0.0
      %1650 = vmatprep.mubr.f32.mxu0 0.0
      %1651 = vmatmul.mubr.f32.gmra.mrb[0].mxu0 %v1576
      %v1652 = vpop.f32.mrb[0].mxu0
      %v1653 = vadd.f32 %v1566, %v1652
      %v1654 = vpop.f32.mrb[0].mxu0
      %v1655 = vadd.f32 %v1568, %v1654
      %1656 = vmatprep.mubr.f32.mxu0 0.0
      %1657 = vmatmul.mubr.f32.gmra.mrb[0].mxu0 %v1578
      %v1658 = vpop.f32.mrb[0].mxu0
      %v1659 = vadd.f32 %v1572, %v1658
      %v1660 = vpop.f32.mrb[0].mxu0
      %v1661 = vadd.f32 %v1574, %v1660
      %1662 = vdwg.mxu0
      %1663 = vrot.lane.b32.xlu0 %v1479, 120
      %v1664 = vpop.permute.xlu0 %1663
      %1665 = vrot.lane.b32.xlu0 %v1480, 120
      %v1666 = vpop.permute.xlu0 %1665
      %v1667 = vsel %vm1487, %v1664, 0
      %v1669 = vsel %vm1487, %v1666, 0
      %v1672 = vsel %vm1492, %v1437, 0
      %v1675 = vsel %vm1492, %v1438, 0
      %1677 = vmatprep.subr.mxu0 %v1675
      %1678 = vmatpush1.msra.mxu0 %v1672
      %1679 = vmatprep.subr.mxu0 0.0
      %1680 = vmatpush1.msra.mxu0 0.0
      %1681 = vmatprep.subr.mxu0 0.0
      %1682 = vmatpush1.msra.mxu0 0.0
      %1683 = vmatprep.subr.mxu0 0.0
      %1684 = vmatpush1.msra.mxu0 0.0
      %1685 = vmatprep.subr.mxu0 0.0
      %1686 = vmatpush1.msra.mxu0 0.0
      %1687 = vmatprep.subr.mxu0 0.0
      %1688 = vmatpush1.msra.mxu0 0.0
      %1689 = vmatprep.subr.mxu0 0.0
      %1690 = vmatpush1.msra.mxu0 0.0
      %1691 = vmatprep.subr.mxu0 0.0
      %1692 = vmatpush1.msra.mxu0 0.0
      %1693 = vmatprep.subr.mxu0 0.0
      %1694 = vmatpush1.msra.mxu0 0.0
      %1695 = vmatprep.subr.mxu0 0.0
      %1696 = vmatpush1.msra.mxu0 0.0
      %1697 = vmatprep.subr.mxu0 0.0
      %1698 = vmatpush1.msra.mxu0 0.0
      %1699 = vmatprep.subr.mxu0 0.0
      %1700 = vmatpush1.msra.mxu0 0.0
      %1701 = vmatprep.subr.mxu0 0.0
      %1702 = vmatpush1.msra.mxu0 0.0
      %1703 = vmatprep.subr.mxu0 0.0
      %1704 = vmatpush1.msra.mxu0 0.0
      %1705 = vmatprep.subr.mxu0 0.0
      %1706 = vmatpush1.msra.mxu0 0.0
      %1707 = vmatprep.subr.mxu0 0.0
      %1708 = vmatpush1.msra.mxu0 0.0
      %1709 = vmatprep.subr.mxu0 0.0
      %1710 = vmatpush1.msra.mxu0 0.0
      %1711 = vmatprep.subr.mxu0 0.0
      %1712 = vmatpush1.msra.mxu0 0.0
      %1713 = vmatprep.subr.mxu0 0.0
      %1714 = vmatpush1.msra.mxu0 0.0
      %1715 = vmatprep.subr.mxu0 0.0
      %1716 = vmatpush1.msra.mxu0 0.0
      %1717 = vmatprep.subr.mxu0 0.0
      %1718 = vmatpush1.msra.mxu0 0.0
      %1719 = vmatprep.subr.mxu0 0.0
      %1720 = vmatpush1.msra.mxu0 0.0
      %1721 = vmatprep.subr.mxu0 0.0
      %1722 = vmatpush1.msra.mxu0 0.0
      %1723 = vmatprep.subr.mxu0 0.0
      %1724 = vmatpush1.msra.mxu0 0.0
      %1725 = vmatprep.subr.mxu0 0.0
      %1726 = vmatpush1.msra.mxu0 0.0
      %1727 = vmatprep.subr.mxu0 0.0
      %1728 = vmatpush1.msra.mxu0 0.0
      %1729 = vmatprep.subr.mxu0 0.0
      %1730 = vmatpush1.msra.mxu0 0.0
      %1731 = vmatprep.subr.mxu0 0.0
      %1732 = vmatpush1.msra.mxu0 0.0
      %1733 = vmatprep.subr.mxu0 0.0
      %1734 = vmatpush1.msra.mxu0 0.0
      %1735 = vmatprep.subr.mxu0 0.0
      %1736 = vmatpush1.msra.mxu0 0.0
      %1737 = vmatprep.subr.mxu0 0.0
      %1738 = vmatpush1.msra.mxu0 0.0
      %1739 = vmatprep.subr.mxu0 0.0
      %1740 = vmatpush1.msra.mxu0 0.0
      %1741 = vmatprep.mubr.f32.mxu0 0.0
      %1742 = vmatmul.mubr.f32.gmra.mrb[0].mxu0 %v1667
      %v1743 = vpop.f32.mrb[0].mxu0
      %v1744 = vadd.f32 0.0, %v1743
      %v1745 = vpop.f32.mrb[0].mxu0
      %v1746 = vadd.f32 0.0, %v1745
      %1747 = vmatprep.mubr.f32.mxu0 0.0
      %1748 = vmatmul.mubr.f32.gmra.mrb[0].mxu0 %v1669
      %v1749 = vpop.f32.mrb[0].mxu0
      %v1750 = vadd.f32 0.0, %v1749
      %v1751 = vpop.f32.mrb[0].mxu0
      %v1752 = vadd.f32 0.0, %v1751
      %1753 = vdwg.mxu0
      %v1754 = vadd.f32 %v1653, %v1744
      %v1755 = vadd.f32 %v1655, %v1746
      %v1756 = vadd.f32 %v1659, %v1750
      %v1757 = vadd.f32 %v1661, %v1752
      %1758 = vrot.lane.b32.xlu0 %v1479, 116
      %v1759 = vpop.permute.xlu0 %1758
      %1760 = vrot.lane.b32.xlu0 %v1480, 116
      %v1761 = vpop.permute.xlu0 %1760
      %v1762 = vsel %vm1487, %v1759, 0
      %v1764 = vsel %vm1487, %v1761, 0
      %v1767 = vsel %vm1492, %v1445, 0
      %v1770 = vsel %vm1492, %v1446, 0
      %1772 = vmatprep.subr.mxu0 %v1770
      %1773 = vmatpush1.msra.mxu0 %v1767
      %1774 = vmatprep.subr.mxu0 0.0
      %1775 = vmatpush1.msra.mxu0 0.0
      %1776 = vmatprep.subr.mxu0 0.0
      %1777 = vmatpush1.msra.mxu0 0.0
      %1778 = vmatprep.subr.mxu0 0.0
      %1779 = vmatpush1.msra.mxu0 0.0
      %1780 = vmatprep.subr.mxu0 0.0
      %1781 = vmatpush1.msra.mxu0 0.0
      %1782 = vmatprep.subr.mxu0 0.0
      %1783 = vmatpush1.msra.mxu0 0.0
      %1784 = vmatprep.subr.mxu0 0.0
      %1785 = vmatpush1.msra.mxu0 0.0
      %1786 = vmatprep.subr.mxu0 0.0
      %1787 = vmatpush1.msra.mxu0 0.0
      %1788 = vmatprep.subr.mxu0 0.0
      %1789 = vmatpush1.msra.mxu0 0.0
      %1790 = vmatprep.subr.mxu0 0.0
      %1791 = vmatpush1.msra.mxu0 0.0
      %1792 = vmatprep.subr.mxu0 0.0
      %1793 = vmatpush1.msra.mxu0 0.0
      %1794 = vmatprep.subr.mxu0 0.0
      %1795 = vmatpush1.msra.mxu0 0.0
      %1796 = vmatprep.subr.mxu0 0.0
      %1797 = vmatpush1.msra.mxu0 0.0
      %1798 = vmatprep.subr.mxu0 0.0
      %1799 = vmatpush1.msra.mxu0 0.0
      %1800 = vmatprep.subr.mxu0 0.0
      %1801 = vmatpush1.msra.mxu0 0.0
      %1802 = vmatprep.subr.mxu0 0.0
      %1803 = vmatpush1.msra.mxu0 0.0
      %1804 = vmatprep.subr.mxu0 0.0
      %1805 = vmatpush1.msra.mxu0 0.0
      %1806 = vmatprep.subr.mxu0 0.0
      %1807 = vmatpush1.msra.mxu0 0.0
      %1808 = vmatprep.subr.mxu0 0.0
      %1809 = vmatpush1.msra.mxu0 0.0
      %1810 = vmatprep.subr.mxu0 0.0
      %1811 = vmatpush1.msra.mxu0 0.0
      %1812 = vmatprep.subr.mxu0 0.0
      %1813 = vmatpush1.msra.mxu0 0.0
      %1814 = vmatprep.subr.mxu0 0.0
      %1815 = vmatpush1.msra.mxu0 0.0
      %1816 = vmatprep.subr.mxu0 0.0
      %1817 = vmatpush1.msra.mxu0 0.0
      %1818 = vmatprep.subr.mxu0 0.0
      %1819 = vmatpush1.msra.mxu0 0.0
      %1820 = vmatprep.subr.mxu0 0.0
      %1821 = vmatpush1.msra.mxu0 0.0
      %1822 = vmatprep.subr.mxu0 0.0
      %1823 = vmatpush1.msra.mxu0 0.0
      %1824 = vmatprep.subr.mxu0 0.0
      %1825 = vmatpush1.msra.mxu0 0.0
      %1826 = vmatprep.subr.mxu0 0.0
      %1827 = vmatpush1.msra.mxu0 0.0
      %1828 = vmatprep.subr.mxu0 0.0
      %1829 = vmatpush1.msra.mxu0 0.0
      %1830 = vmatprep.subr.mxu0 0.0
      %1831 = vmatpush1.msra.mxu0 0.0
      %1832 = vmatprep.subr.mxu0 0.0
      %1833 = vmatpush1.msra.mxu0 0.0
      %1834 = vmatprep.subr.mxu0 0.0
      %1835 = vmatpush1.msra.mxu0 0.0
      %1836 = vmatprep.mubr.f32.mxu0 0.0
      %1837 = vmatmul.mubr.f32.gmra.mrb[0].mxu0 %v1762
      %v1838 = vpop.f32.mrb[0].mxu0
      %v1839 = vadd.f32 0.0, %v1838
      %v1840 = vpop.f32.mrb[0].mxu0
      %v1841 = vadd.f32 0.0, %v1840
      %1842 = vmatprep.mubr.f32.mxu0 0.0
      %1843 = vmatmul.mubr.f32.gmra.mrb[0].mxu0 %v1764
      %v1844 = vpop.f32.mrb[0].mxu0
      %v1845 = vadd.f32 0.0, %v1844
      %v1846 = vpop.f32.mrb[0].mxu0
      %v1847 = vadd.f32 0.0, %v1846
      %1848 = vdwg.mxu0
      %v1849 = vadd.f32 %v1754, %v1839
      %v1850 = vadd.f32 %v1755, %v1841
      %v1851 = vadd.f32 %v1756, %v1845
      %v1852 = vadd.f32 %v1757, %v1847
      %1853 = vrot.lane.b32.xlu0 %v1479, 112
      %v1854 = vpop.permute.xlu0 %1853
      %1855 = vrot.lane.b32.xlu0 %v1480, 112
      %v1856 = vpop.permute.xlu0 %1855
      %v1857 = vsel %vm1487, %v1854, 0
      %v1859 = vsel %vm1487, %v1856, 0
      %v1862 = vsel %vm1492, %v1336, 0
      %v1865 = vsel %vm1492, %v1338, 0
      %1867 = vmatprep.subr.mxu0 %v1865
      %1868 = vmatpush1.msra.mxu0 %v1862
      %1869 = vmatprep.subr.mxu0 0.0
      %1870 = vmatpush1.msra.mxu0 0.0
      %1871 = vmatprep.subr.mxu0 0.0
      %1872 = vmatpush1.msra.mxu0 0.0
      %1873 = vmatprep.subr.mxu0 0.0
      %1874 = vmatpush1.msra.mxu0 0.0
      %1875 = vmatprep.subr.mxu0 0.0
      %1876 = vmatpush1.msra.mxu0 0.0
      %1877 = vmatprep.subr.mxu0 0.0
      %1878 = vmatpush1.msra.mxu0 0.0
      %1879 = vmatprep.subr.mxu0 0.0
      %1880 = vmatpush1.msra.mxu0 0.0
      %1881 = vmatprep.subr.mxu0 0.0
      %1882 = vmatpush1.msra.mxu0 0.0
      %1883 = vmatprep.subr.mxu0 0.0
      %1884 = vmatpush1.msra.mxu0 0.0
      %1885 = vmatprep.subr.mxu0 0.0
      %1886 = vmatpush1.msra.mxu0 0.0
      %1887 = vmatprep.subr.mxu0 0.0
      %1888 = vmatpush1.msra.mxu0 0.0
      %1889 = vmatprep.subr.mxu0 0.0
      %1890 = vmatpush1.msra.mxu0 0.0
      %1891 = vmatprep.subr.mxu0 0.0
      %1892 = vmatpush1.msra.mxu0 0.0
      %1893 = vmatprep.subr.mxu0 0.0
      %1894 = vmatpush1.msra.mxu0 0.0
      %1895 = vmatprep.subr.mxu0 0.0
      %1896 = vmatpush1.msra.mxu0 0.0
      %1897 = vmatprep.subr.mxu0 0.0
      %1898 = vmatpush1.msra.mxu0 0.0
      %1899 = vmatprep.subr.mxu0 0.0
      %1900 = vmatpush1.msra.mxu0 0.0
      %1901 = vmatprep.subr.mxu0 0.0
      %1902 = vmatpush1.msra.mxu0 0.0
      %1903 = vmatprep.subr.mxu0 0.0
      %1904 = vmatpush1.msra.mxu0 0.0
      %1905 = vmatprep.subr.mxu0 0.0
      %1906 = vmatpush1.msra.mxu0 0.0
      %1907 = vmatprep.subr.mxu0 0.0
      %1908 = vmatpush1.msra.mxu0 0.0
      %1909 = vmatprep.subr.mxu0 0.0
      %1910 = vmatpush1.msra.mxu0 0.0
      %1911 = vmatprep.subr.mxu0 0.0
      %1912 = vmatpush1.msra.mxu0 0.0
      %1913 = vmatprep.subr.mxu0 0.0
      %1914 = vmatpush1.msra.mxu0 0.0
      %1915 = vmatprep.subr.mxu0 0.0
      %1916 = vmatpush1.msra.mxu0 0.0
      %1917 = vmatprep.subr.mxu0 0.0
      %1918 = vmatpush1.msra.mxu0 0.0
      %1919 = vmatprep.subr.mxu0 0.0
      %1920 = vmatpush1.msra.mxu0 0.0
      %1921 = vmatprep.subr.mxu0 0.0
      %1922 = vmatpush1.msra.mxu0 0.0
      %1923 = vmatprep.subr.mxu0 0.0
      %1924 = vmatpush1.msra.mxu0 0.0
      %1925 = vmatprep.subr.mxu0 0.0
      %1926 = vmatpush1.msra.mxu0 0.0
      %1927 = vmatprep.subr.mxu0 0.0
      %1928 = vmatpush1.msra.mxu0 0.0
      %1929 = vmatprep.subr.mxu0 0.0
      %1930 = vmatpush1.msra.mxu0 0.0
      %1931 = vmatprep.mubr.f32.mxu0 0.0
      %1932 = vmatmul.mubr.f32.gmra.mrb[0].mxu0 %v1857
      %v1933 = vpop.f32.mrb[0].mxu0
      %v1934 = vadd.f32 0.0, %v1933
      %v1935 = vpop.f32.mrb[0].mxu0
      %v1936 = vadd.f32 0.0, %v1935
      %1937 = vmatprep.mubr.f32.mxu0 0.0
      %1938 = vmatmul.mubr.f32.gmra.mrb[0].mxu0 %v1859
      %v1939 = vpop.f32.mrb[0].mxu0
      %v1940 = vadd.f32 0.0, %v1939
      %v1941 = vpop.f32.mrb[0].mxu0
      %v1942 = vadd.f32 0.0, %v1941
      %1943 = vdwg.mxu0
      %v1944 = vadd.f32 %v1849, %v1934
      %v1945 = vadd.f32 %v1850, %v1936
      %v1946 = vadd.f32 %v1851, %v1940
      %v1947 = vadd.f32 %v1852, %v1942
      %1948 = vrot.lane.b32.xlu0 %v1479, 108
      %v1949 = vpop.permute.xlu0 %1948
      %1950 = vrot.lane.b32.xlu0 %v1480, 108
      %v1951 = vpop.permute.xlu0 %1950
      %v1952 = vsel %vm1487, %v1949, 0
      %v1954 = vsel %vm1487, %v1951, 0
      %v1957 = vsel %vm1492, %v1453, 0
      %v1960 = vsel %vm1492, %v1454, 0
      %1962 = vmatprep.subr.mxu0 %v1960
      %1963 = vmatpush1.msra.mxu0 %v1957
      %1964 = vmatprep.subr.mxu0 0.0
      %1965 = vmatpush1.msra.mxu0 0.0
      %1966 = vmatprep.subr.mxu0 0.0
      %1967 = vmatpush1.msra.mxu0 0.0
      %1968 = vmatprep.subr.mxu0 0.0
      %1969 = vmatpush1.msra.mxu0 0.0
      %1970 = vmatprep.subr.mxu0 0.0
      %1971 = vmatpush1.msra.mxu0 0.0
      %1972 = vmatprep.subr.mxu0 0.0
      %1973 = vmatpush1.msra.mxu0 0.0
      %1974 = vmatprep.subr.mxu0 0.0
      %1975 = vmatpush1.msra.mxu0 0.0
      %1976 = vmatprep.subr.mxu0 0.0
      %1977 = vmatpush1.msra.mxu0 0.0
      %1978 = vmatprep.subr.mxu0 0.0
      %1979 = vmatpush1.msra.mxu0 0.0
      %1980 = vmatprep.subr.mxu0 0.0
      %1981 = vmatpush1.msra.mxu0 0.0
      %1982 = vmatprep.subr.mxu0 0.0
      %1983 = vmatpush1.msra.mxu0 0.0
      %1984 = vmatprep.subr.mxu0 0.0
      %1985 = vmatpush1.msra.mxu0 0.0
      %1986 = vmatprep.subr.mxu0 0.0
      %1987 = vmatpush1.msra.mxu0 0.0
      %1988 = vmatprep.subr.mxu0 0.0
      %1989 = vmatpush1.msra.mxu0 0.0
      %1990 = vmatprep.subr.mxu0 0.0
      %1991 = vmatpush1.msra.mxu0 0.0
      %1992 = vmatprep.subr.mxu0 0.0
      %1993 = vmatpush1.msra.mxu0 0.0
      %1994 = vmatprep.subr.mxu0 0.0
      %1995 = vmatpush1.msra.mxu0 0.0
      %1996 = vmatprep.subr.mxu0 0.0
      %1997 = vmatpush1.msra.mxu0 0.0
      %1998 = vmatprep.subr.mxu0 0.0
      %1999 = vmatpush1.msra.mxu0 0.0
      %2000 = vmatprep.subr.mxu0 0.0
      %2001 = vmatpush1.msra.mxu0 0.0
      %2002 = vmatprep.subr.mxu0 0.0
      %2003 = vmatpush1.msra.mxu0 0.0
      %2004 = vmatprep.subr.mxu0 0.0
      %2005 = vmatpush1.msra.mxu0 0.0
      %2006 = vmatprep.subr.mxu0 0.0
      %2007 = vmatpush1.msra.mxu0 0.0
      %2008 = vmatprep.subr.mxu0 0.0
      %2009 = vmatpush1.msra.mxu0 0.0
      %2010 = vmatprep.subr.mxu0 0.0
      %2011 = vmatpush1.msra.mxu0 0.0
      %2012 = vmatprep.subr.mxu0 0.0
      %2013 = vmatpush1.msra.mxu0 0.0
      %2014 = vmatprep.subr.mxu0 0.0
      %2015 = vmatpush1.msra.mxu0 0.0
      %2016 = vmatprep.subr.mxu0 0.0
      %2017 = vmatpush1.msra.mxu0 0.0
      %2018 = vmatprep.subr.mxu0 0.0
      %2019 = vmatpush1.msra.mxu0 0.0
      %2020 = vmatprep.subr.mxu0 0.0
      %2021 = vmatpush1.msra.mxu0 0.0
      %2022 = vmatprep.subr.mxu0 0.0
      %2023 = vmatpush1.msra.mxu0 0.0
      %2024 = vmatprep.subr.mxu0 0.0
      %2025 = vmatpush1.msra.mxu0 0.0
      %2026 = vmatprep.mubr.f32.mxu0 0.0
      %2027 = vmatmul.mubr.f32.gmra.mrb[0].mxu0 %v1952
      %v2028 = vpop.f32.mrb[0].mxu0
      %v2029 = vadd.f32 0.0, %v2028
      %v2030 = vpop.f32.mrb[0].mxu0
      %v2031 = vadd.f32 0.0, %v2030
      %2032 = vmatprep.mubr.f32.mxu0 0.0
      %2033 = vmatmul.mubr.f32.gmra.mrb[0].mxu0 %v1954
      %v2034 = vpop.f32.mrb[0].mxu0
      %v2035 = vadd.f32 0.0, %v2034
      %v2036 = vpop.f32.mrb[0].mxu0
      %v2037 = vadd.f32 0.0, %v2036
      %2038 = vdwg.mxu0
      %v2039 = vadd.f32 %v1944, %v2029
      %v2040 = vadd.f32 %v1945, %v2031
      %v2041 = vadd.f32 %v1946, %v2035
      %v2042 = vadd.f32 %v1947, %v2037
      %2043 = vrot.lane.b32.xlu0 %v1479, 104
      %v2044 = vpop.permute.xlu0 %2043
      %2045 = vrot.lane.b32.xlu0 %v1480, 104
      %v2046 = vpop.permute.xlu0 %2045
      %v2047 = vsel %vm1487, %v2044, 0
      %v2049 = vsel %vm1487, %v2046, 0
      %v2052 = vsel %vm1492, %v1461, 0
      %v2055 = vsel %vm1492, %v1462, 0
      %2057 = vmatprep.subr.mxu0 %v2055
      %2058 = vmatpush1.msra.mxu0 %v2052
      %2059 = vmatprep.subr.mxu0 0.0
      %2060 = vmatpush1.msra.mxu0 0.0
      %2061 = vmatprep.subr.mxu0 0.0
      %2062 = vmatpush1.msra.mxu0 0.0
      %2063 = vmatprep.subr.mxu0 0.0
      %2064 = vmatpush1.msra.mxu0 0.0
      %2065 = vmatprep.subr.mxu0 0.0
      %2066 = vmatpush1.msra.mxu0 0.0
      %2067 = vmatprep.subr.mxu0 0.0
      %2068 = vmatpush1.msra.mxu0 0.0
      %2069 = vmatprep.subr.mxu0 0.0
      %2070 = vmatpush1.msra.mxu0 0.0
      %2071 = vmatprep.subr.mxu0 0.0
      %2072 = vmatpush1.msra.mxu0 0.0
      %2073 = vmatprep.subr.mxu0 0.0
      %2074 = vmatpush1.msra.mxu0 0.0
      %2075 = vmatprep.subr.mxu0 0.0
      %2076 = vmatpush1.msra.mxu0 0.0
      %2077 = vmatprep.subr.mxu0 0.0
      %2078 = vmatpush1.msra.mxu0 0.0
      %2079 = vmatprep.subr.mxu0 0.0
      %2080 = vmatpush1.msra.mxu0 0.0
      %2081 = vmatprep.subr.mxu0 0.0
      %2082 = vmatpush1.msra.mxu0 0.0
      %2083 = vmatprep.subr.mxu0 0.0
      %2084 = vmatpush1.msra.mxu0 0.0
      %2085 = vmatprep.subr.mxu0 0.0
      %2086 = vmatpush1.msra.mxu0 0.0
      %2087 = vmatprep.subr.mxu0 0.0
      %2088 = vmatpush1.msra.mxu0 0.0
      %2089 = vmatprep.subr.mxu0 0.0
      %2090 = vmatpush1.msra.mxu0 0.0
      %2091 = vmatprep.subr.mxu0 0.0
      %2092 = vmatpush1.msra.mxu0 0.0
      %2093 = vmatprep.subr.mxu0 0.0
      %2094 = vmatpush1.msra.mxu0 0.0
      %2095 = vmatprep.subr.mxu0 0.0
      %2096 = vmatpush1.msra.mxu0 0.0
      %2097 = vmatprep.subr.mxu0 0.0
      %2098 = vmatpush1.msra.mxu0 0.0
      %2099 = vmatprep.subr.mxu0 0.0
      %2100 = vmatpush1.msra.mxu0 0.0
      %2101 = vmatprep.subr.mxu0 0.0
      %2102 = vmatpush1.msra.mxu0 0.0
      %2103 = vmatprep.subr.mxu0 0.0
      %2104 = vmatpush1.msra.mxu0 0.0
      %2105 = vmatprep.subr.mxu0 0.0
      %2106 = vmatpush1.msra.mxu0 0.0
      %2107 = vmatprep.subr.mxu0 0.0
      %2108 = vmatpush1.msra.mxu0 0.0
      %2109 = vmatprep.subr.mxu0 0.0
      %2110 = vmatpush1.msra.mxu0 0.0
      %2111 = vmatprep.subr.mxu0 0.0
      %2112 = vmatpush1.msra.mxu0 0.0
      %2113 = vmatprep.subr.mxu0 0.0
      %2114 = vmatpush1.msra.mxu0 0.0
      %2115 = vmatprep.subr.mxu0 0.0
      %2116 = vmatpush1.msra.mxu0 0.0
      %2117 = vmatprep.subr.mxu0 0.0
      %2118 = vmatpush1.msra.mxu0 0.0
      %2119 = vmatprep.subr.mxu0 0.0
      %2120 = vmatpush1.msra.mxu0 0.0
      %2121 = vmatprep.mubr.f32.mxu0 0.0
      %2122 = vmatmul.mubr.f32.gmra.mrb[0].mxu0 %v2047
      %v2123 = vpop.f32.mrb[0].mxu0
      %v2124 = vadd.f32 0.0, %v2123
      %v2125 = vpop.f32.mrb[0].mxu0
      %v2126 = vadd.f32 0.0, %v2125
      %2127 = vmatprep.mubr.f32.mxu0 0.0
      %2128 = vmatmul.mubr.f32.gmra.mrb[0].mxu0 %v2049
      %v2129 = vpop.f32.mrb[0].mxu0
      %v2130 = vadd.f32 0.0, %v2129
      %v2131 = vpop.f32.mrb[0].mxu0
      %v2132 = vadd.f32 0.0, %v2131
      %2133 = vdwg.mxu0
      %v2134 = vadd.f32 %v2039, %v2124
      %v2135 = vadd.f32 %v2040, %v2126
      %v2136 = vadd.f32 %v2041, %v2130
      %v2137 = vadd.f32 %v2042, %v2132
      %2138 = vrot.lane.b32.xlu0 %v1479, 100
      %v2139 = vpop.permute.xlu0 %2138
      %2140 = vrot.lane.b32.xlu0 %v1480, 100
      %v2141 = vpop.permute.xlu0 %2140
      %v2142 = vsel %vm1487, %v2139, 0
      %v2144 = vsel %vm1487, %v2141, 0
      %v2147 = vsel %vm1492, %v1469, 0
      %v2150 = vsel %vm1492, %v1470, 0
      %2152 = vmatprep.subr.mxu0 %v2150
      %2153 = vmatpush1.msra.mxu0 %v2147
      %2154 = vmatprep.subr.mxu0 0.0
      %2155 = vmatpush1.msra.mxu0 0.0
      %2156 = vmatprep.subr.mxu0 0.0
      %2157 = vmatpush1.msra.mxu0 0.0
      %2158 = vmatprep.subr.mxu0 0.0
      %2159 = vmatpush1.msra.mxu0 0.0
      %2160 = vmatprep.subr.mxu0 0.0
      %2161 = vmatpush1.msra.mxu0 0.0
      %2162 = vmatprep.subr.mxu0 0.0
      %2163 = vmatpush1.msra.mxu0 0.0
      %2164 = vmatprep.subr.mxu0 0.0
      %2165 = vmatpush1.msra.mxu0 0.0
      %2166 = vmatprep.subr.mxu0 0.0
      %2167 = vmatpush1.msra.mxu0 0.0
      %2168 = vmatprep.subr.mxu0 0.0
      %2169 = vmatpush1.msra.mxu0 0.0
      %2170 = vmatprep.subr.mxu0 0.0
      %2171 = vmatpush1.msra.mxu0 0.0
      %2172 = vmatprep.subr.mxu0 0.0
      %2173 = vmatpush1.msra.mxu0 0.0
      %2174 = vmatprep.subr.mxu0 0.0
      %2175 = vmatpush1.msra.mxu0 0.0
      %2176 = vmatprep.subr.mxu0 0.0
      %2177 = vmatpush1.msra.mxu0 0.0
      %2178 = vmatprep.subr.mxu0 0.0
      %2179 = vmatpush1.msra.mxu0 0.0
      %2180 = vmatprep.subr.mxu0 0.0
      %2181 = vmatpush1.msra.mxu0 0.0
      %2182 = vmatprep.subr.mxu0 0.0
      %2183 = vmatpush1.msra.mxu0 0.0
      %2184 = vmatprep.subr.mxu0 0.0
      %2185 = vmatpush1.msra.mxu0 0.0
      %2186 = vmatprep.subr.mxu0 0.0
      %2187 = vmatpush1.msra.mxu0 0.0
      %2188 = vmatprep.subr.mxu0 0.0
      %2189 = vmatpush1.msra.mxu0 0.0
      %2190 = vmatprep.subr.mxu0 0.0
      %2191 = vmatpush1.msra.mxu0 0.0
      %2192 = vmatprep.subr.mxu0 0.0
      %2193 = vmatpush1.msra.mxu0 0.0
      %2194 = vmatprep.subr.mxu0 0.0
      %2195 = vmatpush1.msra.mxu0 0.0
      %2196 = vmatprep.subr.mxu0 0.0
      %2197 = vmatpush1.msra.mxu0 0.0
      %2198 = vmatprep.subr.mxu0 0.0
      %2199 = vmatpush1.msra.mxu0 0.0
      %2200 = vmatprep.subr.mxu0 0.0
      %2201 = vmatpush1.msra.mxu0 0.0
      %2202 = vmatprep.subr.mxu0 0.0
      %2203 = vmatpush1.msra.mxu0 0.0
      %2204 = vmatprep.subr.mxu0 0.0
      %2205 = vmatpush1.msra.mxu0 0.0
      %2206 = vmatprep.subr.mxu0 0.0
      %2207 = vmatpush1.msra.mxu0 0.0
      %2208 = vmatprep.subr.mxu0 0.0
      %2209 = vmatpush1.msra.mxu0 0.0
      %2210 = vmatprep.subr.mxu0 0.0
      %2211 = vmatpush1.msra.mxu0 0.0
      %2212 = vmatprep.subr.mxu0 0.0
      %2213 = vmatpush1.msra.mxu0 0.0
      %2214 = vmatprep.subr.mxu0 0.0
      %2215 = vmatpush1.msra.mxu0 0.0
      %2216 = vmatprep.mubr.f32.mxu0 0.0
      %2217 = vmatmul.mubr.f32.gmra.mrb[0].mxu0 %v2142
      %v2218 = vpop.f32.mrb[0].mxu0
      %v2219 = vadd.f32 0.0, %v2218
      %v2220 = vpop.f32.mrb[0].mxu0
      %v2221 = vadd.f32 0.0, %v2220
      %2222 = vmatprep.mubr.f32.mxu0 0.0
      %2223 = vmatmul.mubr.f32.gmra.mrb[0].mxu0 %v2144
      %v2224 = vpop.f32.mrb[0].mxu0
      %v2225 = vadd.f32 0.0, %v2224
      %v2226 = vpop.f32.mrb[0].mxu0
      %v2227 = vadd.f32 0.0, %v2226
      %2228 = vdwg.mxu0
      %v2229 = vadd.f32 %v2134, %v2219
      %v2230 = vadd.f32 %v2135, %v2221
      %v2231 = vadd.f32 %v2136, %v2225
      %v2232 = vadd.f32 %v2137, %v2227
      %2233 = vrot.lane.b32.xlu0 %v1479, 96
      %v2234 = vpop.permute.xlu0 %2233
      %2235 = vrot.lane.b32.xlu0 %v1480, 96
      %v2236 = vpop.permute.xlu0 %2235
      %v2237 = vsel %vm1487, %v2234, 0
      %v2239 = vsel %vm1487, %v2236, 0
      %v2242 = vsel %vm1492, %v1477, 0
      %v2245 = vsel %vm1492, %v1478, 0
      %2247 = vmatprep.subr.mxu0 %v2245
      %2248 = vmatpush1.msra.mxu0 %v2242
      %2249 = vmatprep.subr.mxu0 0.0
      %2250 = vmatpush1.msra.mxu0 0.0
      %2251 = vmatprep.subr.mxu0 0.0
      %2252 = vmatpush1.msra.mxu0 0.0
      %2253 = vmatprep.subr.mxu0 0.0
      %2254 = vmatpush1.msra.mxu0 0.0
      %2255 = vmatprep.subr.mxu0 0.0
      %2256 = vmatpush1.msra.mxu0 0.0
      %2257 = vmatprep.subr.mxu0 0.0
      %2258 = vmatpush1.msra.mxu0 0.0
      %2259 = vmatprep.subr.mxu0 0.0
      %2260 = vmatpush1.msra.mxu0 0.0
      %2261 = vmatprep.subr.mxu0 0.0
      %2262 = vmatpush1.msra.mxu0 0.0
      %2263 = vmatprep.subr.mxu0 0.0
      %2264 = vmatpush1.msra.mxu0 0.0
      %2265 = vmatprep.subr.mxu0 0.0
      %2266 = vmatpush1.msra.mxu0 0.0
      %2267 = vmatprep.subr.mxu0 0.0
      %2268 = vmatpush1.msra.mxu0 0.0
      %2269 = vmatprep.subr.mxu0 0.0
      %2270 = vmatpush1.msra.mxu0 0.0
      %2271 = vmatprep.subr.mxu0 0.0
      %2272 = vmatpush1.msra.mxu0 0.0
      %2273 = vmatprep.subr.mxu0 0.0
      %2274 = vmatpush1.msra.mxu0 0.0
      %2275 = vmatprep.subr.mxu0 0.0
      %2276 = vmatpush1.msra.mxu0 0.0
      %2277 = vmatprep.subr.mxu0 0.0
      %2278 = vmatpush1.msra.mxu0 0.0
      %2279 = vmatprep.subr.mxu0 0.0
      %2280 = vmatpush1.msra.mxu0 0.0
      %2281 = vmatprep.subr.mxu0 0.0
      %2282 = vmatpush1.msra.mxu0 0.0
      %2283 = vmatprep.subr.mxu0 0.0
      %2284 = vmatpush1.msra.mxu0 0.0
      %2285 = vmatprep.subr.mxu0 0.0
      %2286 = vmatpush1.msra.mxu0 0.0
      %2287 = vmatprep.subr.mxu0 0.0
      %2288 = vmatpush1.msra.mxu0 0.0
      %2289 = vmatprep.subr.mxu0 0.0
      %2290 = vmatpush1.msra.mxu0 0.0
      %2291 = vmatprep.subr.mxu0 0.0
      %2292 = vmatpush1.msra.mxu0 0.0
      %2293 = vmatprep.subr.mxu0 0.0
      %2294 = vmatpush1.msra.mxu0 0.0
      %2295 = vmatprep.subr.mxu0 0.0
      %2296 = vmatpush1.msra.mxu0 0.0
      %2297 = vmatprep.subr.mxu0 0.0
      %2298 = vmatpush1.msra.mxu0 0.0
      %2299 = vmatprep.subr.mxu0 0.0
      %2300 = vmatpush1.msra.mxu0 0.0
      %2301 = vmatprep.subr.mxu0 0.0
      %2302 = vmatpush1.msra.mxu0 0.0
      %2303 = vmatprep.subr.mxu0 0.0
      %2304 = vmatpush1.msra.mxu0 0.0
      %2305 = vmatprep.subr.mxu0 0.0
      %2306 = vmatpush1.msra.mxu0 0.0
      %2307 = vmatprep.subr.mxu0 0.0
      %2308 = vmatpush1.msra.mxu0 0.0
      %2309 = vmatprep.subr.mxu0 0.0
      %2310 = vmatpush1.msra.mxu0 0.0
      %2311 = vmatprep.mubr.f32.mxu0 0.0
      %2312 = vmatmul.mubr.f32.gmra.mrb[0].mxu0 %v2237
      %v2313 = vpop.f32.mrb[0].mxu0
      %v2314 = vadd.f32 0.0, %v2313
      %v2315 = vpop.f32.mrb[0].mxu0
      %v2316 = vadd.f32 0.0, %v2315
      %2317 = vmatprep.mubr.f32.mxu0 0.0
      %2318 = vmatmul.mubr.f32.gmra.mrb[0].mxu0 %v2239
      %v2319 = vpop.f32.mrb[0].mxu0
      %v2320 = vadd.f32 0.0, %v2319
      %v2321 = vpop.f32.mrb[0].mxu0
      %v2322 = vadd.f32 0.0, %v2321
      %2323 = vdwg.mxu0
      %v2324 = vadd.f32 %v2229, %v2314
      %v2325 = vadd.f32 %v2230, %v2316
      %v2326 = vadd.f32 %v2231, %v2320
      %v2327 = vadd.f32 %v2232, %v2322
      %v2328 = vld [vmem:[%s13] sm:$0xff]
      %v2329 = vld [vmem:[%s13 + $0x8] sm:$0xff]
      %2331 = vset.pattern.permute.xlu0 0
      %2332 = vperm.xlu0 %2331, %v2328
      %v2333 = vpop.permute.xlu0 %2332
      %2336 = vset.pattern.permute.xlu0 0
      %2337 = vperm.xlu0 %2336, %v2329
      %v2338 = vpop.permute.xlu0 %2337
      %v2340 = vadd.f32 %v2324, %v2333
      %v2341 = vadd.f32 %v2325, %v2333
      %v2342 = vadd.f32 %v2326, %v2338
      %v2343 = vadd.f32 %v2327, %v2338
      %v2344 = vld [vmem:[%s14] sm:$0xff]
      %v2345 = vld [vmem:[%s14 + $0x8] sm:$0xff]
      %v2347 = vsel %vm1487, %v2344, 0
      %v2350 = vsel %vm1487, %v2345, 0
      %v2353 = vsel %vm1492, %v1411, 0
      %v2356 = vsel %vm1492, %v1413, 0
      %2358 = vmatprep.subr.mxu0 %v2356
      %2359 = vmatpush1.msra.mxu0 %v2353
      %2360 = vmatprep.subr.mxu0 0.0
      %2361 = vmatpush1.msra.mxu0 0.0
      %2362 = vmatprep.subr.mxu0 0.0
      %2363 = vmatpush1.msra.mxu0 0.0
      %2364 = vmatprep.subr.mxu0 0.0
      %2365 = vmatpush1.msra.mxu0 0.0
      %2366 = vmatprep.subr.mxu0 0.0
      %2367 = vmatpush1.msra.mxu0 0.0
      %2368 = vmatprep.subr.mxu0 0.0
      %2369 = vmatpush1.msra.mxu0 0.0
      %2370 = vmatprep.subr.mxu0 0.0
      %2371 = vmatpush1.msra.mxu0 0.0
      %2372 = vmatprep.subr.mxu0 0.0
      %2373 = vmatpush1.msra.mxu0 0.0
      %2374 = vmatprep.subr.mxu0 0.0
      %2375 = vmatpush1.msra.mxu0 0.0
      %2376 = vmatprep.subr.mxu0 0.0
      %2377 = vmatpush1.msra.mxu0 0.0
      %2378 = vmatprep.subr.mxu0 0.0
      %2379 = vmatpush1.msra.mxu0 0.0
      %2380 = vmatprep.subr.mxu0 0.0
      %2381 = vmatpush1.msra.mxu0 0.0
      %2382 = vmatprep.subr.mxu0 0.0
      %2383 = vmatpush1.msra.mxu0 0.0
      %2384 = vmatprep.subr.mxu0 0.0
      %2385 = vmatpush1.msra.mxu0 0.0
      %2386 = vmatprep.subr.mxu0 0.0
      %2387 = vmatpush1.msra.mxu0 0.0
      %2388 = vmatprep.subr.mxu0 0.0
      %2389 = vmatpush1.msra.mxu0 0.0
      %2390 = vmatprep.subr.mxu0 0.0
      %2391 = vmatpush1.msra.mxu0 0.0
      %2392 = vmatprep.subr.mxu0 0.0
      %2393 = vmatpush1.msra.mxu0 0.0
      %2394 = vmatprep.subr.mxu0 0.0
      %2395 = vmatpush1.msra.mxu0 0.0
      %2396 = vmatprep.subr.mxu0 0.0
      %2397 = vmatpush1.msra.mxu0 0.0
      %2398 = vmatprep.subr.mxu0 0.0
      %2399 = vmatpush1.msra.mxu0 0.0
      %2400 = vmatprep.subr.mxu0 0.0
      %2401 = vmatpush1.msra.mxu0 0.0
      %2402 = vmatprep.subr.mxu0 0.0
      %2403 = vmatpush1.msra.mxu0 0.0
      %2404 = vmatprep.subr.mxu0 0.0
      %2405 = vmatpush1.msra.mxu0 0.0
      %2406 = vmatprep.subr.mxu0 0.0
      %2407 = vmatpush1.msra.mxu0 0.0
      %2408 = vmatprep.subr.mxu0 0.0
      %2409 = vmatpush1.msra.mxu0 0.0
      %2410 = vmatprep.subr.mxu0 0.0
      %2411 = vmatpush1.msra.mxu0 0.0
      %2412 = vmatprep.subr.mxu0 0.0
      %2413 = vmatpush1.msra.mxu0 0.0
      %2414 = vmatprep.subr.mxu0 0.0
      %2415 = vmatpush1.msra.mxu0 0.0
      %2416 = vmatprep.subr.mxu0 0.0
      %2417 = vmatpush1.msra.mxu0 0.0
      %2418 = vmatprep.subr.mxu0 0.0
      %2419 = vmatpush1.msra.mxu0 0.0
      %2420 = vmatprep.subr.mxu0 0.0
      %2421 = vmatpush1.msra.mxu0 0.0
      %2422 = vmatprep.mubr.f32.mxu0 0.0
      %2423 = vmatmul.mubr.f32.gmra.mrb[0].mxu0 %v2347
      %v2424 = vpop.f32.mrb[0].mxu0
      %v2425 = vadd.f32 0.0, %v2424
      %v2426 = vpop.f32.mrb[0].mxu0
      %v2427 = vadd.f32 0.0, %v2426
      %2428 = vmatprep.mubr.f32.mxu0 0.0
      %2429 = vmatmul.mubr.f32.gmra.mrb[0].mxu0 %v2350
      %v2430 = vpop.f32.mrb[0].mxu0
      %v2431 = vadd.f32 0.0, %v2430
      %v2432 = vpop.f32.mrb[0].mxu0
      %v2433 = vadd.f32 0.0, %v2432
      %2434 = vdwg.mxu0
      %v2435 = vadd.f32 %v2340, %v2341
      %2436 = vadd.xlane.f32.xlu0 %v2435
      %v2437 = vpop.xlane.xlu0 %2436
      %v2438 = vadd.f32 %v2342, %v2343
      %2439 = vadd.xlane.f32.xlu0 %v2438
      %v2440 = vpop.xlane.xlu0 %2439
      %v2441 = vmul.f32 %v2437, %v1041
      %v2442 = vmul.f32 %v2440, %v1041
      %v2443 = vadd.f32 %v2425, %v2427
      %2444 = vadd.xlane.f32.xlu0 %v2443
      %v2445 = vpop.xlane.xlu0 %2444
      %v2446 = vadd.f32 %v2431, %v2433
      %2447 = vadd.xlane.f32.xlu0 %v2446
      %v2448 = vpop.xlane.xlu0 %2447
      %v2449 = vmul.f32 %v2445, %v1041
      %v2450 = vmul.f32 %v2448, %v1041
      %v2451 = vmax.f32 %v2441, %v2442
      %v2452 = vrot.slane %v2451, 4
      %v2453 = vmax.f32 %v2451, %v2452
      %v2454 = vrot.slane %v2453, 2
      %v2455 = vmax.f32 %v2453, %v2454
      %v2456 = vrot.slane %v2455, 1
      %v2457 = vmax.f32 %v2455, %v2456
      %v2458 = vmax.f32 %v2449, %v2450
      %v2459 = vrot.slane %v2458, 4
      %v2460 = vmax.f32 %v2458, %v2459
      %v2461 = vrot.slane %v2460, 2
      %v2462 = vmax.f32 %v2460, %v2461
      %v2463 = vrot.slane %v2462, 1
      %v2464 = vmax.f32 %v2462, %v2463
      %v2465 = vmax.f32 %v2457, %v2464
      %v2466 = vsub.f32 %v2441, %v2465
      %v2467 = vsub.f32 %v2442, %v2465
      %v2468 = vmul.f32 %v2466, 1.442695
      %v2469 = vpow.pop %v2468
      %v2470 = vmul.f32 %v2467, 1.442695
      %v2471 = vpow.pop %v2470
      %v2472 = vsub.f32 %v2449, %v2465
      %v2473 = vsub.f32 %v2450, %v2465
      %v2474 = vmul.f32 %v2472, 1.442695
      %v2475 = vpow.pop %v2474
      %v2476 = vmul.f32 %v2473, 1.442695
      %v2477 = vpow.pop %v2476
      %v2478 = vadd.f32 %v2469, %v2471
      %v2479 = vrot.slane %v2478, 4
      %v2480 = vadd.f32 %v2478, %v2479
      %v2481 = vrot.slane %v2480, 2
      %v2482 = vadd.f32 %v2480, %v2481
      %v2483 = vrot.slane %v2482, 1
      %v2484 = vadd.f32 %v2482, %v2483
      %v2485 = vadd.f32 %v2475, %v2477
      %v2486 = vrot.slane %v2485, 4
      %v2487 = vadd.f32 %v2485, %v2486
      %v2488 = vrot.slane %v2487, 2
      %v2489 = vadd.f32 %v2487, %v2488
      %v2490 = vrot.slane %v2489, 1
      %v2491 = vadd.f32 %v2489, %v2490
      %v2492 = vadd.f32 %v2484, %v2491
      %v2493 = vrcp.pop %v2492
      %v2494 = vmul.f32 1.0, %v2493
      %v2495 = vmul.f32 %v2469, %v2494
      %v2496 = vmul.f32 %v2471, %v2494
      %v2497 = vmul.f32 %v2340, %v2495
      %v2498 = vmul.f32 %v2341, %v2495
      %v2499 = vmul.f32 %v2342, %v2496
      %v2500 = vmul.f32 %v2343, %v2496
      %v2501 = vmul.f32 %v2475, %v2494
      %v2502 = vmul.f32 %v2477, %v2494
      %v2503 = vmul.f32 %v2425, %v2501
      %v2504 = vmul.f32 %v2427, %v2501
      %v2505 = vmul.f32 %v2431, %v2502
      %v2506 = vmul.f32 %v2433, %v2502
      %v2507 = vadd.f32 %v2497, %v2503
      %v2508 = vadd.f32 %v2498, %v2504
      %v2509 = vadd.f32 %v2499, %v2505
      %v2510 = vadd.f32 %v2500, %v2506
      %2511 = vrot.lane.b32.xlu0 %v2507, 17
      %v2512 = vpop.permute.xlu0 %2511
      %2513 = vrot.lane.b32.xlu0 %v2509, 17
      %v2514 = vpop.permute.xlu0 %2513
      %2515 = vrot.lane.b32.xlu0 %v2508, 17
      %v2516 = vpop.permute.xlu0 %2515
      %2517 = vrot.lane.b32.xlu0 %v2510, 17
      %v2518 = vpop.permute.xlu0 %2517
      %v2519 = vsel %vm700, %v2512, %v2516
      %v2520 = vsel %vm700, %v2514, %v2518
      %v2521 = vsel %vm700, %v2516, %v2512
      %v2522 = vsel %vm700, %v2518, %v2514
      %v2523 = vmul.f32 %v2521, %v710
      %v2524 = vmul.f32 %v2519, %v714
      %v2525 = vmul.f32 %v2522, %v710
      %v2526 = vmul.f32 %v2520, %v714
      %2527 = vrot.lane.b32.xlu0 %v2507, 16
      %v2528 = vpop.permute.xlu0 %2527
      %2529 = vrot.lane.b32.xlu0 %v2509, 16
      %v2530 = vpop.permute.xlu0 %2529
      %2531 = vrot.lane.b32.xlu0 %v2508, 16
      %v2532 = vpop.permute.xlu0 %2531
      %2533 = vrot.lane.b32.xlu0 %v2510, 16
      %v2534 = vpop.permute.xlu0 %2533
      %v2535 = vsel %vm729, %v2528, %v2532
      %v2536 = vsel %vm729, %v2530, %v2534
      %v2537 = vsel %vm729, %v2532, %v2528
      %v2538 = vsel %vm729, %v2534, %v2530
      %v2539 = vmul.f32 %v2537, %v740
      %v2540 = vmul.f32 %v2535, %v744
      %v2541 = vmul.f32 %v2538, %v740
      %v2542 = vmul.f32 %v2536, %v744
      %2543 = vrot.lane.b32.xlu0 %v2507, 15
      %v2544 = vpop.permute.xlu0 %2543
      %2545 = vrot.lane.b32.xlu0 %v2509, 15
      %v2546 = vpop.permute.xlu0 %2545
      %2547 = vrot.lane.b32.xlu0 %v2508, 15
      %v2548 = vpop.permute.xlu0 %2547
      %2549 = vrot.lane.b32.xlu0 %v2510, 15
      %v2550 = vpop.permute.xlu0 %2549
      %v2551 = vsel %vm759, %v2544, %v2548
      %v2552 = vsel %vm759, %v2546, %v2550
      %v2553 = vsel %vm759, %v2548, %v2544
      %v2554 = vsel %vm759, %v2550, %v2546
      %v2555 = vmul.f32 %v2553, %v770
      %v2556 = vmul.f32 %v2551, %v774
      %v2557 = vmul.f32 %v2554, %v770
      %v2558 = vmul.f32 %v2552, %v774
      %2559 = vrot.lane.b32.xlu0 %v2507, 1
      %v2560 = vpop.permute.xlu0 %2559
      %2561 = vrot.lane.b32.xlu0 %v2509, 1
      %v2562 = vpop.permute.xlu0 %2561
      %2563 = vrot.lane.b32.xlu0 %v2508, 1
      %v2564 = vpop.permute.xlu0 %2563
      %2565 = vrot.lane.b32.xlu0 %v2510, 1
      %v2566 = vpop.permute.xlu0 %2565
      %v2567 = vsel %vm789, %v2560, %v2564
      %v2568 = vsel %vm789, %v2562, %v2566
      %v2569 = vsel %vm789, %v2564, %v2560
      %v2570 = vsel %vm789, %v2566, %v2562
      %v2571 = vmul.f32 %v2569, %v800
      %v2572 = vmul.f32 %v2567, %v804
      %v2573 = vmul.f32 %v2570, %v800
      %v2574 = vmul.f32 %v2568, %v804
      %2575 = vrot.lane.b32.xlu0 %v2507, 127
      %v2576 = vpop.permute.xlu0 %2575
      %2577 = vrot.lane.b32.xlu0 %v2509, 127
      %v2578 = vpop.permute.xlu0 %2577
      %2579 = vrot.lane.b32.xlu0 %v2508, 127
      %v2580 = vpop.permute.xlu0 %2579
      %2581 = vrot.lane.b32.xlu0 %v2510, 127
      %v2582 = vpop.permute.xlu0 %2581
      %v2583 = vsel %vm819, %v2576, %v2580
      %v2584 = vsel %vm819, %v2578, %v2582
      %v2585 = vsel %vm819, %v2580, %v2576
      %v2586 = vsel %vm819, %v2582, %v2578
      %v2587 = vmul.f32 %v2583, %v830
      %v2588 = vmul.f32 %v2585, %v834
      %v2589 = vmul.f32 %v2584, %v830
      %v2590 = vmul.f32 %v2586, %v834
      %2591 = vrot.lane.b32.xlu0 %v2507, 113
      %v2592 = vpop.permute.xlu0 %2591
      %2593 = vrot.lane.b32.xlu0 %v2509, 113
      %v2594 = vpop.permute.xlu0 %2593
      %2595 = vrot.lane.b32.xlu0 %v2508, 113
      %v2596 = vpop.permute.xlu0 %2595
      %2597 = vrot.lane.b32.xlu0 %v2510, 113
      %v2598 = vpop.permute.xlu0 %2597
      %v2599 = vsel %vm849, %v2592, %v2596
      %v2600 = vsel %vm849, %v2594, %v2598
      %v2601 = vsel %vm849, %v2596, %v2592
      %v2602 = vsel %vm849, %v2598, %v2594
      %v2603 = vmul.f32 %v2599, %v860
      %v2604 = vmul.f32 %v2601, %v864
      %v2605 = vmul.f32 %v2600, %v860
      %v2606 = vmul.f32 %v2602, %v864
      %2607 = vrot.lane.b32.xlu0 %v2507, 112
      %v2608 = vpop.permute.xlu0 %2607
      %2609 = vrot.lane.b32.xlu0 %v2509, 112
      %v2610 = vpop.permute.xlu0 %2609
      %2611 = vrot.lane.b32.xlu0 %v2508, 112
      %v2612 = vpop.permute.xlu0 %2611
      %2613 = vrot.lane.b32.xlu0 %v2510, 112
      %v2614 = vpop.permute.xlu0 %2613
      %v2615 = vsel %vm879, %v2608, %v2612
      %v2616 = vsel %vm879, %v2610, %v2614
      %v2617 = vsel %vm879, %v2612, %v2608
      %v2618 = vsel %vm879, %v2614, %v2610
      %v2619 = vmul.f32 %v2615, %v890
      %v2620 = vmul.f32 %v2617, %v894
      %v2621 = vmul.f32 %v2616, %v890
      %v2622 = vmul.f32 %v2618, %v894
      %2623 = vrot.lane.b32.xlu0 %v2507, 111
      %v2624 = vpop.permute.xlu0 %2623
      %2625 = vrot.lane.b32.xlu0 %v2509, 111
      %v2626 = vpop.permute.xlu0 %2625
      %2627 = vrot.lane.b32.xlu0 %v2508, 111
      %v2628 = vpop.permute.xlu0 %2627
      %2629 = vrot.lane.b32.xlu0 %v2510, 111
      %v2630 = vpop.permute.xlu0 %2629
      %v2631 = vsel %vm909, %v2624, %v2628
      %v2632 = vsel %vm909, %v2626, %v2630
      %v2633 = vsel %vm909, %v2628, %v2624
      %v2634 = vsel %vm909, %v2630, %v2626
      %v2635 = vmul.f32 %v2631, %v920
      %v2636 = vmul.f32 %v2633, %v924
      %v2637 = vmul.f32 %v2632, %v920
      %v2638 = vmul.f32 %v2634, %v924
      %v2639 = vld [vmem:[%s5] sm:$0xff]
      %v2640 = vld [vmem:[%s5 + $0x8] sm:$0xff]
      %v2641 = vld [vmem:[%s5 + $0x10] sm:$0xff]
      %v2642 = vld [vmem:[%s5 + $0x18] sm:$0xff]
      %v2643 = vld [vmem:[%s6] sm:$0xff]
      %v2644 = vld [vmem:[%s6 + $0x8] sm:$0xff]
      %2646 = vset.pattern.permute.xlu0 0
      %2647 = vperm.xlu0 %2646, %v2643
      %v2648 = vpop.permute.xlu0 %2647
      %2651 = vset.pattern.permute.xlu0 0
      %2652 = vperm.xlu0 %2651, %v2644
      %v2653 = vpop.permute.xlu0 %2652
      %v2656 = vsel %vm947, %v2640, 0
      %v2659 = vsel %vm947, %v2642, 0
      %2661 = vmatprep.subr.mxu0 %v2524
      %2662 = vmatpush1.msra.mxu0 %v2523
      %2663 = vmatprep.subr.mxu0 %v2526
      %2664 = vmatpush1.msra.mxu0 %v2525
      %2665 = vmatprep.subr.mxu0 %v2540
      %2666 = vmatpush1.msra.mxu0 %v2539
      %2667 = vmatprep.subr.mxu0 %v2542
      %2668 = vmatpush1.msra.mxu0 %v2541
      %2669 = vmatprep.subr.mxu0 %v2556
      %2670 = vmatpush1.msra.mxu0 %v2555
      %2671 = vmatprep.subr.mxu0 %v2558
      %2672 = vmatpush1.msra.mxu0 %v2557
      %2673 = vmatprep.subr.mxu0 %v2572
      %2674 = vmatpush1.msra.mxu0 %v2571
      %2675 = vmatprep.subr.mxu0 %v2574
      %2676 = vmatpush1.msra.mxu0 %v2573
      %2677 = vmatprep.subr.mxu0 %v2508
      %2678 = vmatpush1.msra.mxu0 %v2507
      %2679 = vmatprep.subr.mxu0 %v2510
      %2680 = vmatpush1.msra.mxu0 %v2509
      %2681 = vmatprep.subr.mxu0 %v2588
      %2682 = vmatpush1.msra.mxu0 %v2587
      %2683 = vmatprep.subr.mxu0 %v2590
      %2684 = vmatpush1.msra.mxu0 %v2589
      %2685 = vmatprep.subr.mxu0 %v2604
      %2686 = vmatpush1.msra.mxu0 %v2603
      %2687 = vmatprep.subr.mxu0 %v2606
      %2688 = vmatpush1.msra.mxu0 %v2605
      %2689 = vmatprep.subr.mxu0 %v2620
      %2690 = vmatpush1.msra.mxu0 %v2619
      %2691 = vmatprep.subr.mxu0 %v2622
      %2692 = vmatpush1.msra.mxu0 %v2621
      %2693 = vmatprep.subr.mxu0 %v2636
      %2694 = vmatpush1.msra.mxu0 %v2635
      %2695 = vmatprep.subr.mxu0 %v2638
      %2696 = vmatpush1.msra.mxu0 %v2637
      %2697 = vmatprep.subr.mxu0 0.0
      %2698 = vmatpush1.msra.mxu0 0.0
      %2699 = vmatprep.subr.mxu0 0.0
      %2700 = vmatpush1.msra.mxu0 0.0
      %2701 = vmatprep.subr.mxu0 0.0
      %2702 = vmatpush1.msra.mxu0 0.0
      %2703 = vmatprep.subr.mxu0 0.0
      %2704 = vmatpush1.msra.mxu0 0.0
      %2705 = vmatprep.subr.mxu0 0.0
      %2706 = vmatpush1.msra.mxu0 0.0
      %2707 = vmatprep.subr.mxu0 0.0
      %2708 = vmatpush1.msra.mxu0 0.0
      %2709 = vmatprep.subr.mxu0 0.0
      %2710 = vmatpush1.msra.mxu0 0.0
      %2711 = vmatprep.subr.mxu0 0.0
      %2712 = vmatpush1.msra.mxu0 0.0
      %2713 = vmatprep.subr.mxu0 0.0
      %2714 = vmatpush1.msra.mxu0 0.0
      %2715 = vmatprep.subr.mxu0 0.0
      %2716 = vmatpush1.msra.mxu0 0.0
      %2717 = vmatprep.subr.mxu0 0.0
      %2718 = vmatpush1.msra.mxu0 0.0
      %2719 = vmatprep.subr.mxu0 0.0
      %2720 = vmatpush1.msra.mxu0 0.0
      %2721 = vmatprep.subr.mxu0 0.0
      %2722 = vmatpush1.msra.mxu0 0.0
      %2723 = vmatprep.subr.mxu0 0.0
      %2724 = vmatpush1.msra.mxu0 0.0
      %2725 = vmatprep.mubr.f32.mxu0 %v2656
      %2726 = vmatmul.mubr.f32.gmra.mrb[0].mxu0 %v2639
      %v2727 = vpop.f32.mrb[0].mxu0
      %v2728 = vadd.f32 %v2648, %v2727
      %v2729 = vpop.f32.mrb[0].mxu0
      %v2730 = vadd.f32 %v2648, %v2729
      %2731 = vmatprep.mubr.f32.mxu0 %v2659
      %2732 = vmatmul.mubr.f32.gmra.mrb[0].mxu0 %v2641
      %v2733 = vpop.f32.mrb[0].mxu0
      %v2734 = vadd.f32 %v2653, %v2733
      %v2735 = vpop.f32.mrb[0].mxu0
      %v2736 = vadd.f32 %v2653, %v2735
      %2737 = vdwg.mxu0
      %v2738 = vadd.f32 %v2728, %v2730
      %2739 = vadd.xlane.f32.xlu0 %v2738
      %v2740 = vpop.xlane.xlu0 %2739
      %v2741 = vadd.f32 %v2734, %v2736
      %2742 = vadd.xlane.f32.xlu0 %v2741
      %v2743 = vpop.xlane.xlu0 %2742
      %v2744 = vmul.f32 %v2740, %v1041
      %v2745 = vmul.f32 %v2743, %v1041
      %v2746 = vmul.f32 %v2728, %v2728
      %v2747 = vmul.f32 %v2730, %v2730
      %v2748 = vmul.f32 %v2734, %v2734
      %v2749 = vmul.f32 %v2736, %v2736
      %v2750 = vadd.f32 %v2746, %v2747
      %2751 = vadd.xlane.f32.xlu0 %v2750
      %v2752 = vpop.xlane.xlu0 %2751
      %v2753 = vadd.f32 %v2748, %v2749
      %2754 = vadd.xlane.f32.xlu0 %v2753
      %v2755 = vpop.xlane.xlu0 %2754
      %v2756 = vmul.f32 %v2752, %v1041
      %v2757 = vmul.f32 %v2755, %v1041
      %v2758 = vsel %vm1058, %v2744, %v2756
      %v2759 = vsel %vm1058, %v2745, %v2757
      %2760 = vmatprep.subr.mxu0 0.0
      %2761 = vmatpush1.msra.mxu0 %v2758
      %2762 = vmatprep.subr.mxu0 0.0
      %2763 = vmatpush1.msra.mxu0 %v2759
      %2764 = vmatprep.subr.mxu0 0.0
      %2765 = vmatpush1.msra.mxu0 0.0
      %2766 = vmatprep.subr.mxu0 0.0
      %2767 = vmatpush1.msra.mxu0 0.0
      %2768 = vmatprep.subr.mxu0 0.0
      %2769 = vmatpush1.msra.mxu0 0.0
      %2770 = vmatprep.subr.mxu0 0.0
      %2771 = vmatpush1.msra.mxu0 0.0
      %2772 = vmatprep.subr.mxu0 0.0
      %2773 = vmatpush1.msra.mxu0 0.0
      %2774 = vmatprep.subr.mxu0 0.0
      %2775 = vmatpush1.msra.mxu0 0.0
      %2776 = vmatprep.subr.mxu0 0.0
      %2777 = vmatpush1.msra.mxu0 0.0
      %2778 = vmatprep.subr.mxu0 0.0
      %2779 = vmatpush1.msra.mxu0 0.0
      %2780 = vmatprep.subr.mxu0 0.0
      %2781 = vmatpush1.msra.mxu0 0.0
      %2782 = vmatprep.subr.mxu0 0.0
      %2783 = vmatpush1.msra.mxu0 0.0
      %2784 = vmatprep.subr.mxu0 0.0
      %2785 = vmatpush1.msra.mxu0 0.0
      %2786 = vmatprep.subr.mxu0 0.0
      %2787 = vmatpush1.msra.mxu0 0.0
      %2788 = vmatprep.subr.mxu0 0.0
      %2789 = vmatpush1.msra.mxu0 0.0
      %2790 = vmatprep.subr.mxu0 0.0
      %2791 = vmatpush1.msra.mxu0 0.0
      %2792 = vmatprep.subr.mxu0 0.0
      %2793 = vmatpush1.msra.mxu0 0.0
      %2794 = vmatprep.subr.mxu0 0.0
      %2795 = vmatpush1.msra.mxu0 0.0
      %2796 = vmatprep.subr.mxu0 0.0
      %2797 = vmatpush1.msra.mxu0 0.0
      %2798 = vmatprep.subr.mxu0 0.0
      %2799 = vmatpush1.msra.mxu0 0.0
      %2800 = vmatprep.subr.mxu0 0.0
      %2801 = vmatpush1.msra.mxu0 0.0
      %2802 = vmatprep.subr.mxu0 0.0
      %2803 = vmatpush1.msra.mxu0 0.0
      %2804 = vmatprep.subr.mxu0 0.0
      %2805 = vmatpush1.msra.mxu0 0.0
      %2806 = vmatprep.subr.mxu0 0.0
      %2807 = vmatpush1.msra.mxu0 0.0
      %2808 = vmatprep.subr.mxu0 0.0
      %2809 = vmatpush1.msra.mxu0 0.0
      %2810 = vmatprep.subr.mxu0 0.0
      %2811 = vmatpush1.msra.mxu0 0.0
      %2812 = vmatprep.subr.mxu0 0.0
      %2813 = vmatpush1.msra.mxu0 0.0
      %2814 = vmatprep.subr.mxu0 0.0
      %2815 = vmatpush1.msra.mxu0 0.0
      %2816 = vmatprep.subr.mxu0 0.0
      %2817 = vmatpush1.msra.mxu0 0.0
      %2818 = vmatprep.subr.mxu0 0.0
      %2819 = vmatpush1.msra.mxu0 0.0
      %2820 = vmatprep.subr.mxu0 0.0
      %2821 = vmatpush1.msra.mxu0 0.0
      %2822 = vmatprep.subr.mxu0 0.0
      %2823 = vmatpush1.msra.mxu0 0.0
      %2824 = vmatprep.mubr.f32.mxu0 0.0
      %2825 = vmatmul.mubr.f32.gmra.mrb[0].mxu0 %v1062
      %v2826 = vpop.f32.mrb[0].mxu0
      %v2827 = vadd.f32 0.0, %v2826
      %v2828 = vpop.f32.mrb[0].mxu0
      %2829 = vmatprep.mubr.f32.mxu0 0.0
      %2830 = vmatmul.mubr.f32.gmra.mrb[0].mxu0 %v1065
      %v2831 = vpop.f32.mrb[0].mxu0
      %v2832 = vadd.f32 0.0, %v2831
      %v2833 = vpop.f32.mrb[0].mxu0
      %2834 = vdwg.mxu0
      %v2835 = vmul.f32 %v2827, %v2827
      %v2836 = vmul.f32 %v2832, %v2832
      %2839 = vrot.lane.b32.xlu0 %v2835, 1
      %v2840 = vpop.permute.xlu0 %2839
      %2841 = vrot.lane.b32.xlu0 %v2836, 1
      %v2842 = vpop.permute.xlu0 %2841
      %v2845 = vsub.f32 %v2827, %v2840
      %v2846 = vsub.f32 %v2832, %v2842
      %v2847 = vmax.f32 %v2845, 0.0
      %v2848 = vmax.f32 %v2846, 0.0
      %2850 = vset.pattern.permute.xlu0 0
      %2851 = vperm.xlu0 %2850, %v2827
      %v2852 = vpop.permute.xlu0 %2851
      %2855 = vset.pattern.permute.xlu0 0
      %2856 = vperm.xlu0 %2855, %v2832
      %v2857 = vpop.permute.xlu0 %2856
      %v2859 = vsub.f32 %v2728, %v2852
      %v2860 = vsub.f32 %v2730, %v2852
      %v2861 = vsub.f32 %v2734, %v2857
      %v2862 = vsub.f32 %v2736, %v2857
      %v2863 = vadd.f32 %v2847, 1e-05
      %v2864 = vadd.f32 %v2848, 1e-05
      %v2865 = vrsqrt.pop %v2863
      %v2866 = vrsqrt.pop %v2864
      %2868 = vset.pattern.permute.xlu0 1
      %2869 = vperm.xlu0 %2868, %v2865
      %v2870 = vpop.permute.xlu0 %2869
      %2873 = vset.pattern.permute.xlu0 1
      %2874 = vperm.xlu0 %2873, %v2866
      %v2875 = vpop.permute.xlu0 %2874
      %v2877 = vmul.f32 %v2859, %v2870
      %v2878 = vmul.f32 %v2860, %v2870
      %v2879 = vmul.f32 %v2861, %v2875
      %v2880 = vmul.f32 %v2862, %v2875
      %v2881 = vld [vmem:[%s15] sm:$0xff]
      %v2882 = vld [vmem:[%s15 + $0x8] sm:$0xff]
      %2884 = vset.pattern.permute.xlu0 0
      %2885 = vperm.xlu0 %2884, %v2881
      %v2886 = vpop.permute.xlu0 %2885
      %2889 = vset.pattern.permute.xlu0 0
      %2890 = vperm.xlu0 %2889, %v2882
      %v2891 = vpop.permute.xlu0 %2890
      %v2893 = vmul.f32 %v2877, %v2886
      %v2894 = vmul.f32 %v2878, %v2886
      %v2895 = vmul.f32 %v2879, %v2891
      %v2896 = vmul.f32 %v2880, %v2891
      %v2897 = vld [vmem:[%s16] sm:$0xff]
      %v2898 = vld [vmem:[%s16 + $0x8] sm:$0xff]
      %2900 = vset.pattern.permute.xlu0 0
      %2901 = vperm.xlu0 %2900, %v2897
      %v2902 = vpop.permute.xlu0 %2901
      %2905 = vset.pattern.permute.xlu0 0
      %2906 = vperm.xlu0 %2905, %v2898
      %v2907 = vpop.permute.xlu0 %2906
      %v2909 = vadd.f32 %v2893, %v2902
      %v2910 = vadd.f32 %v2894, %v2902
      %v2911 = vadd.f32 %v2895, %v2907
      %v2912 = vadd.f32 %v2896, %v2907
      %v2913 = vsub.f32 0.0, %v2909
      %v2914 = vsub.f32 0.0, %v2910
      %v2915 = vsub.f32 0.0, %v2911
      %v2916 = vsub.f32 0.0, %v2912
      %v2917 = vmul.f32 %v2913, 1.442695
      %v2918 = vpow.pop %v2917
      %v2919 = vmul.f32 %v2914, 1.442695
      %v2920 = vpow.pop %v2919
      %v2921 = vmul.f32 %v2915, 1.442695
      %v2922 = vpow.pop %v2921
      %v2923 = vmul.f32 %v2916, 1.442695
      %v2924 = vpow.pop %v2923
      %v2925 = vadd.f32 %v2918, 1.0
      %v2926 = vadd.f32 %v2920, 1.0
      %v2927 = vadd.f32 %v2922, 1.0
      %v2928 = vadd.f32 %v2924, 1.0
      %v2929 = vrcp.pop %v2925
      %v2930 = vmul.f32 1.0, %v2929
      %v2931 = vrcp.pop %v2926
      %v2932 = vmul.f32 1.0, %v2931
      %v2933 = vrcp.pop %v2927
      %v2934 = vmul.f32 1.0, %v2933
      %v2935 = vrcp.pop %v2928
      %v2936 = vmul.f32 1.0, %v2935
      %v2937 = vmul.f32 %v2930, %v2728
      %v2938 = vmul.f32 %v2932, %v2730
      %v2939 = vmul.f32 %v2934, %v2734
      %v2940 = vmul.f32 %v2936, %v2736
      %vm2941 = vcmp.gt.f32.partialorder %v2930, 0.5
      %vm2942 = vcmp.gt.f32.partialorder %v2932, 0.5
      %vm2943 = vcmp.gt.f32.partialorder %v2934, 0.5
      %vm2944 = vcmp.gt.f32.partialorder %v2936, 0.5
      %v2945 = vsel %vm2941, %v2728, %v2937
      %v2946 = vsel %vm2942, %v2730, %v2938
      %v2947 = vsel %vm2943, %v2734, %v2939
      %v2948 = vsel %vm2944, %v2736, %v2940
      %v2949 = vsel %vm2941, 0.0, %v2937
      %v2950 = vsel %vm2942, 0.0, %v2938
      %v2951 = vsel %vm2943, 0.0, %v2939
      %v2952 = vsel %vm2944, 0.0, %v2940
      %v2953 = vadd.f32 %v2945, %v2951
      %v2954 = vadd.f32 %v2946, %v2952
      %v2955 = vadd.f32 %v2947, %v2949
      %v2956 = vadd.f32 %v2948, %v2950
      %v2957 = vld [vmem:[%s17] sm:$0xf]
      %v2959 = vsel %vm1265, %v2957, 0
      %2961 = vmatprep.subr.mxu0 %v2954
      %2962 = vmatpush1.msra.mxu0 %v2953
      %2963 = vmatprep.subr.mxu0 0.0
      %2964 = vmatpush1.msra.mxu0 0.0
      %2965 = vmatprep.subr.mxu0 0.0
      %2966 = vmatpush1.msra.mxu0 0.0
      %2967 = vmatprep.subr.mxu0 0.0
      %2968 = vmatpush1.msra.mxu0 0.0
      %2969 = vmatprep.subr.mxu0 0.0
      %2970 = vmatpush1.msra.mxu0 0.0
      %2971 = vmatprep.subr.mxu0 0.0
      %2972 = vmatpush1.msra.mxu0 0.0
      %2973 = vmatprep.subr.mxu0 0.0
      %2974 = vmatpush1.msra.mxu0 0.0
      %2975 = vmatprep.subr.mxu0 0.0
      %2976 = vmatpush1.msra.mxu0 0.0
      %2977 = vmatprep.subr.mxu0 0.0
      %2978 = vmatpush1.msra.mxu0 0.0
      %2979 = vmatprep.subr.mxu0 0.0
      %2980 = vmatpush1.msra.mxu0 0.0
      %2981 = vmatprep.subr.mxu0 0.0
      %2982 = vmatpush1.msra.mxu0 0.0
      %2983 = vmatprep.subr.mxu0 0.0
      %2984 = vmatpush1.msra.mxu0 0.0
      %2985 = vmatprep.subr.mxu0 0.0
      %2986 = vmatpush1.msra.mxu0 0.0
      %2987 = vmatprep.subr.mxu0 0.0
      %2988 = vmatpush1.msra.mxu0 0.0
      %2989 = vmatprep.subr.mxu0 0.0
      %2990 = vmatpush1.msra.mxu0 0.0
      %2991 = vmatprep.subr.mxu0 0.0
      %2992 = vmatpush1.msra.mxu0 0.0
      %2993 = vmatprep.subr.mxu0 0.0
      %2994 = vmatpush1.msra.mxu0 0.0
      %2995 = vmatprep.subr.mxu0 0.0
      %2996 = vmatpush1.msra.mxu0 0.0
      %2997 = vmatprep.subr.mxu0 0.0
      %2998 = vmatpush1.msra.mxu0 0.0
      %2999 = vmatprep.subr.mxu0 0.0
      %3000 = vmatpush1.msra.mxu0 0.0
      %3001 = vmatprep.subr.mxu0 0.0
      %3002 = vmatpush1.msra.mxu0 0.0
      %3003 = vmatprep.subr.mxu0 0.0
      %3004 = vmatpush1.msra.mxu0 0.0
      %3005 = vmatprep.subr.mxu0 0.0
      %3006 = vmatpush1.msra.mxu0 0.0
      %3007 = vmatprep.subr.mxu0 0.0
      %3008 = vmatpush1.msra.mxu0 0.0
      %3009 = vmatprep.subr.mxu0 0.0
      %3010 = vmatpush1.msra.mxu0 0.0
      %3011 = vmatprep.subr.mxu0 0.0
      %3012 = vmatpush1.msra.mxu0 0.0
      %3013 = vmatprep.subr.mxu0 0.0
      %3014 = vmatpush1.msra.mxu0 0.0
      %3015 = vmatprep.subr.mxu0 0.0
      %3016 = vmatpush1.msra.mxu0 0.0
      %3017 = vmatprep.subr.mxu0 0.0
      %3018 = vmatpush1.msra.mxu0 0.0
      %3019 = vmatprep.subr.mxu0 0.0
      %3020 = vmatpush1.msra.mxu0 0.0
      %3021 = vmatprep.subr.mxu0 0.0
      %3022 = vmatpush1.msra.mxu0 0.0
      %3023 = vmatprep.subr.mxu0 0.0
      %3024 = vmatpush1.msra.mxu0 0.0
      %3025 = vmatprep.mubr.f32.mxu0 0.0
      %3026 = vmatmul.mubr.f32.gmra.mrb[0].mxu0 %v2959
      %v3027 = vpop.f32.mrb[0].mxu0
      %v3028 = vadd.f32 0.0, %v3027
      %v3029 = vpop.f32.mrb[0].mxu0
      %v3030 = vadd.f32 0.0, %v3029
      %3031 = vdwg.mxu0
      %v3032 = vld [vmem:[%s18] sm:$0xf]
      %v3034 = vsel %vm1265, %v3032, 0
      %3036 = vmatprep.subr.mxu0 %v2956
      %3037 = vmatpush1.msra.mxu0 %v2955
      %3038 = vmatprep.subr.mxu0 0.0
      %3039 = vmatpush1.msra.mxu0 0.0
      %3040 = vmatprep.subr.mxu0 0.0
      %3041 = vmatpush1.msra.mxu0 0.0
      %3042 = vmatprep.subr.mxu0 0.0
      %3043 = vmatpush1.msra.mxu0 0.0
      %3044 = vmatprep.subr.mxu0 0.0
      %3045 = vmatpush1.msra.mxu0 0.0
      %3046 = vmatprep.subr.mxu0 0.0
      %3047 = vmatpush1.msra.mxu0 0.0
      %3048 = vmatprep.subr.mxu0 0.0
      %3049 = vmatpush1.msra.mxu0 0.0
      %3050 = vmatprep.subr.mxu0 0.0
      %3051 = vmatpush1.msra.mxu0 0.0
      %3052 = vmatprep.subr.mxu0 0.0
      %3053 = vmatpush1.msra.mxu0 0.0
      %3054 = vmatprep.subr.mxu0 0.0
      %3055 = vmatpush1.msra.mxu0 0.0
      %3056 = vmatprep.subr.mxu0 0.0
      %3057 = vmatpush1.msra.mxu0 0.0
      %3058 = vmatprep.subr.mxu0 0.0
      %3059 = vmatpush1.msra.mxu0 0.0
      %3060 = vmatprep.subr.mxu0 0.0
      %3061 = vmatpush1.msra.mxu0 0.0
      %3062 = vmatprep.subr.mxu0 0.0
      %3063 = vmatpush1.msra.mxu0 0.0
      %3064 = vmatprep.subr.mxu0 0.0
      %3065 = vmatpush1.msra.mxu0 0.0
      %3066 = vmatprep.subr.mxu0 0.0
      %3067 = vmatpush1.msra.mxu0 0.0
      %3068 = vmatprep.subr.mxu0 0.0
      %3069 = vmatpush1.msra.mxu0 0.0
      %3070 = vmatprep.subr.mxu0 0.0
      %3071 = vmatpush1.msra.mxu0 0.0
      %3072 = vmatprep.subr.mxu0 0.0
      %3073 = vmatpush1.msra.mxu0 0.0
      %3074 = vmatprep.subr.mxu0 0.0
      %3075 = vmatpush1.msra.mxu0 0.0
      %3076 = vmatprep.subr.mxu0 0.0
      %3077 = vmatpush1.msra.mxu0 0.0
      %3078 = vmatprep.subr.mxu0 0.0
      %3079 = vmatpush1.msra.mxu0 0.0
      %3080 = vmatprep.subr.mxu0 0.0
      %3081 = vmatpush1.msra.mxu0 0.0
      %3082 = vmatprep.subr.mxu0 0.0
      %3083 = vmatpush1.msra.mxu0 0.0
      %3084 = vmatprep.subr.mxu0 0.0
      %3085 = vmatpush1.msra.mxu0 0.0
      %3086 = vmatprep.subr.mxu0 0.0
      %3087 = vmatpush1.msra.mxu0 0.0
      %3088 = vmatprep.subr.mxu0 0.0
      %3089 = vmatpush1.msra.mxu0 0.0
      %3090 = vmatprep.subr.mxu0 0.0
      %3091 = vmatpush1.msra.mxu0 0.0
      %3092 = vmatprep.subr.mxu0 0.0
      %3093 = vmatpush1.msra.mxu0 0.0
      %3094 = vmatprep.subr.mxu0 0.0
      %3095 = vmatpush1.msra.mxu0 0.0
      %3096 = vmatprep.subr.mxu0 0.0
      %3097 = vmatpush1.msra.mxu0 0.0
      %3098 = vmatprep.subr.mxu0 0.0
      %3099 = vmatpush1.msra.mxu0 0.0
      %3100 = vmatprep.mubr.f32.mxu0 0.0
      %3101 = vmatmul.mubr.f32.gmra.mrb[0].mxu0 %v3034
      %v3102 = vpop.f32.mrb[0].mxu0
      %v3103 = vadd.f32 0.0, %v3102
      %v3104 = vpop.f32.mrb[0].mxu0
      %v3105 = vadd.f32 0.0, %v3104
      %3106 = vdwg.mxu0
      %3107 = vrot.lane.b32.xlu0 %v3028, 17
      %v3108 = vpop.permute.xlu0 %3107
      %3109 = vrot.lane.b32.xlu0 %v3030, 17
      %v3110 = vpop.permute.xlu0 %3109
      %v3111 = vsel %vm700, %v3108, %v3110
      %v3112 = vsel %vm700, %v3110, %v3108
      %v3113 = vmul.f32 %v3112, %v710
      %v3114 = vmul.f32 %v3111, %v714
      %3115 = vrot.lane.b32.xlu0 %v3028, 16
      %v3116 = vpop.permute.xlu0 %3115
      %3117 = vrot.lane.b32.xlu0 %v3030, 16
      %v3118 = vpop.permute.xlu0 %3117
      %v3119 = vsel %vm729, %v3116, %v3118
      %v3120 = vsel %vm729, %v3118, %v3116
      %v3121 = vmul.f32 %v3120, %v740
      %v3122 = vmul.f32 %v3119, %v744
      %3123 = vrot.lane.b32.xlu0 %v3028, 15
      %v3124 = vpop.permute.xlu0 %3123
      %3125 = vrot.lane.b32.xlu0 %v3030, 15
      %v3126 = vpop.permute.xlu0 %3125
      %v3127 = vsel %vm759, %v3124, %v3126
      %v3128 = vsel %vm759, %v3126, %v3124
      %v3129 = vmul.f32 %v3128, %v770
      %v3130 = vmul.f32 %v3127, %v774
      %3131 = vrot.lane.b32.xlu0 %v3028, 1
      %v3132 = vpop.permute.xlu0 %3131
      %3133 = vrot.lane.b32.xlu0 %v3030, 1
      %v3134 = vpop.permute.xlu0 %3133
      %v3135 = vsel %vm789, %v3132, %v3134
      %v3136 = vsel %vm789, %v3134, %v3132
      %v3137 = vmul.f32 %v3136, %v800
      %v3138 = vmul.f32 %v3135, %v804
      %3139 = vrot.lane.b32.xlu0 %v3028, 127
      %v3140 = vpop.permute.xlu0 %3139
      %3141 = vrot.lane.b32.xlu0 %v3030, 127
      %v3142 = vpop.permute.xlu0 %3141
      %v3143 = vsel %vm819, %v3140, %v3142
      %v3144 = vsel %vm819, %v3142, %v3140
      %v3145 = vmul.f32 %v3143, %v830
      %v3146 = vmul.f32 %v3144, %v834
      %3147 = vrot.lane.b32.xlu0 %v3028, 113
      %v3148 = vpop.permute.xlu0 %3147
      %3149 = vrot.lane.b32.xlu0 %v3030, 113
      %v3150 = vpop.permute.xlu0 %3149
      %v3151 = vsel %vm849, %v3148, %v3150
      %v3152 = vsel %vm849, %v3150, %v3148
      %v3153 = vmul.f32 %v3151, %v860
      %v3154 = vmul.f32 %v3152, %v864
      %3155 = vrot.lane.b32.xlu0 %v3028, 112
      %v3156 = vpop.permute.xlu0 %3155
      %3157 = vrot.lane.b32.xlu0 %v3030, 112
      %v3158 = vpop.permute.xlu0 %3157
      %v3159 = vsel %vm879, %v3156, %v3158
      %v3160 = vsel %vm879, %v3158, %v3156
      %v3161 = vmul.f32 %v3159, %v890
      %v3162 = vmul.f32 %v3160, %v894
      %3163 = vrot.lane.b32.xlu0 %v3028, 111
      %v3164 = vpop.permute.xlu0 %3163
      %3165 = vrot.lane.b32.xlu0 %v3030, 111
      %v3166 = vpop.permute.xlu0 %3165
      %v3167 = vsel %vm909, %v3164, %v3166
      %v3168 = vsel %vm909, %v3166, %v3164
      %v3169 = vmul.f32 %v3167, %v920
      %v3170 = vmul.f32 %v3168, %v924
      %v3171 = vld [vmem:[%s19] sm:$0xff]
      %v3172 = vld [vmem:[%s19 + $0x8] sm:$0xff]
      %3175 = vrot.lane.b32.xlu0 %v3171, 124
      %v3176 = vpop.permute.xlu0 %3175
      %3177 = vrot.lane.b32.xlu0 %v3172, 124
      %v3178 = vpop.permute.xlu0 %3177
      %v3179 = vsel %vm1487, %v3176, 0
      %v3181 = vsel %vm1487, %v3178, 0
      %v3184 = vsel %vm1492, %v3121, 0
      %v3187 = vsel %vm1492, %v3122, 0
      %3189 = vmatprep.subr.mxu0 %v3187
      %3190 = vmatpush1.msra.mxu0 %v3184
      %3191 = vmatprep.subr.mxu0 0.0
      %3192 = vmatpush1.msra.mxu0 0.0
      %3193 = vmatprep.subr.mxu0 0.0
      %3194 = vmatpush1.msra.mxu0 0.0
      %3195 = vmatprep.subr.mxu0 0.0
      %3196 = vmatpush1.msra.mxu0 0.0
      %3197 = vmatprep.subr.mxu0 0.0
      %3198 = vmatpush1.msra.mxu0 0.0
      %3199 = vmatprep.subr.mxu0 0.0
      %3200 = vmatpush1.msra.mxu0 0.0
      %3201 = vmatprep.subr.mxu0 0.0
      %3202 = vmatpush1.msra.mxu0 0.0
      %3203 = vmatprep.subr.mxu0 0.0
      %3204 = vmatpush1.msra.mxu0 0.0
      %3205 = vmatprep.subr.mxu0 0.0
      %3206 = vmatpush1.msra.mxu0 0.0
      %3207 = vmatprep.subr.mxu0 0.0
      %3208 = vmatpush1.msra.mxu0 0.0
      %3209 = vmatprep.subr.mxu0 0.0
      %3210 = vmatpush1.msra.mxu0 0.0
      %3211 = vmatprep.subr.mxu0 0.0
      %3212 = vmatpush1.msra.mxu0 0.0
      %3213 = vmatprep.subr.mxu0 0.0
      %3214 = vmatpush1.msra.mxu0 0.0
      %3215 = vmatprep.subr.mxu0 0.0
      %3216 = vmatpush1.msra.mxu0 0.0
      %3217 = vmatprep.subr.mxu0 0.0
      %3218 = vmatpush1.msra.mxu0 0.0
      %3219 = vmatprep.subr.mxu0 0.0
      %3220 = vmatpush1.msra.mxu0 0.0
      %3221 = vmatprep.subr.mxu0 0.0
      %3222 = vmatpush1.msra.mxu0 0.0
      %3223 = vmatprep.subr.mxu0 0.0
      %3224 = vmatpush1.msra.mxu0 0.0
      %3225 = vmatprep.subr.mxu0 0.0
      %3226 = vmatpush1.msra.mxu0 0.0
      %3227 = vmatprep.subr.mxu0 0.0
      %3228 = vmatpush1.msra.mxu0 0.0
      %3229 = vmatprep.subr.mxu0 0.0
      %3230 = vmatpush1.msra.mxu0 0.0
      %3231 = vmatprep.subr.mxu0 0.0
      %3232 = vmatpush1.msra.mxu0 0.0
      %3233 = vmatprep.subr.mxu0 0.0
      %3234 = vmatpush1.msra.mxu0 0.0
      %3235 = vmatprep.subr.mxu0 0.0
      %3236 = vmatpush1.msra.mxu0 0.0
      %3237 = vmatprep.subr.mxu0 0.0
      %3238 = vmatpush1.msra.mxu0 0.0
      %3239 = vmatprep.subr.mxu0 0.0
      %3240 = vmatpush1.msra.mxu0 0.0
      %3241 = vmatprep.subr.mxu0 0.0
      %3242 = vmatpush1.msra.mxu0 0.0
      %3243 = vmatprep.subr.mxu0 0.0
      %3244 = vmatpush1.msra.mxu0 0.0
      %3245 = vmatprep.subr.mxu0 0.0
      %3246 = vmatpush1.msra.mxu0 0.0
      %3247 = vmatprep.subr.mxu0 0.0
      %3248 = vmatpush1.msra.mxu0 0.0
      %3249 = vmatprep.subr.mxu0 0.0
      %3250 = vmatpush1.msra.mxu0 0.0
      %3251 = vmatprep.subr.mxu0 0.0
      %3252 = vmatpush1.msra.mxu0 0.0
      %3253 = vmatprep.mubr.f32.mxu0 0.0
      %3254 = vmatmul.mubr.f32.gmra.mrb[0].mxu0 %v3179
      %v3255 = vpop.f32.mrb[0].mxu0
      %v3256 = vadd.f32 0.0, %v3255
      %v3257 = vpop.f32.mrb[0].mxu0
      %v3258 = vadd.f32 0.0, %v3257
      %3259 = vmatprep.mubr.f32.mxu0 0.0
      %3260 = vmatmul.mubr.f32.gmra.mrb[0].mxu0 %v3181
      %v3261 = vpop.f32.mrb[0].mxu0
      %v3262 = vadd.f32 0.0, %v3261
      %v3263 = vpop.f32.mrb[0].mxu0
      %v3264 = vadd.f32 0.0, %v3263
      %3265 = vdwg.mxu0
      %v3266 = vsel %vm1487, %v3171, 0
      %v3268 = vsel %vm1487, %v3172, 0
      %v3271 = vsel %vm1492, %v3113, 0
      %v3274 = vsel %vm1492, %v3114, 0
      %3276 = vmatprep.subr.mxu0 %v3274
      %3277 = vmatpush1.msra.mxu0 %v3271
      %3278 = vmatprep.subr.mxu0 0.0
      %3279 = vmatpush1.msra.mxu0 0.0
      %3280 = vmatprep.subr.mxu0 0.0
      %3281 = vmatpush1.msra.mxu0 0.0
      %3282 = vmatprep.subr.mxu0 0.0
      %3283 = vmatpush1.msra.mxu0 0.0
      %3284 = vmatprep.subr.mxu0 0.0
      %3285 = vmatpush1.msra.mxu0 0.0
      %3286 = vmatprep.subr.mxu0 0.0
      %3287 = vmatpush1.msra.mxu0 0.0
      %3288 = vmatprep.subr.mxu0 0.0
      %3289 = vmatpush1.msra.mxu0 0.0
      %3290 = vmatprep.subr.mxu0 0.0
      %3291 = vmatpush1.msra.mxu0 0.0
      %3292 = vmatprep.subr.mxu0 0.0
      %3293 = vmatpush1.msra.mxu0 0.0
      %3294 = vmatprep.subr.mxu0 0.0
      %3295 = vmatpush1.msra.mxu0 0.0
      %3296 = vmatprep.subr.mxu0 0.0
      %3297 = vmatpush1.msra.mxu0 0.0
      %3298 = vmatprep.subr.mxu0 0.0
      %3299 = vmatpush1.msra.mxu0 0.0
      %3300 = vmatprep.subr.mxu0 0.0
      %3301 = vmatpush1.msra.mxu0 0.0
      %3302 = vmatprep.subr.mxu0 0.0
      %3303 = vmatpush1.msra.mxu0 0.0
      %3304 = vmatprep.subr.mxu0 0.0
      %3305 = vmatpush1.msra.mxu0 0.0
      %3306 = vmatprep.subr.mxu0 0.0
      %3307 = vmatpush1.msra.mxu0 0.0
      %3308 = vmatprep.subr.mxu0 0.0
      %3309 = vmatpush1.msra.mxu0 0.0
      %3310 = vmatprep.subr.mxu0 0.0
      %3311 = vmatpush1.msra.mxu0 0.0
      %3312 = vmatprep.subr.mxu0 0.0
      %3313 = vmatpush1.msra.mxu0 0.0
      %3314 = vmatprep.subr.mxu0 0.0
      %3315 = vmatpush1.msra.mxu0 0.0
      %3316 = vmatprep.subr.mxu0 0.0
      %3317 = vmatpush1.msra.mxu0 0.0
      %3318 = vmatprep.subr.mxu0 0.0
      %3319 = vmatpush1.msra.mxu0 0.0
      %3320 = vmatprep.subr.mxu0 0.0
      %3321 = vmatpush1.msra.mxu0 0.0
      %3322 = vmatprep.subr.mxu0 0.0
      %3323 = vmatpush1.msra.mxu0 0.0
      %3324 = vmatprep.subr.mxu0 0.0
      %3325 = vmatpush1.msra.mxu0 0.0
      %3326 = vmatprep.subr.mxu0 0.0
      %3327 = vmatpush1.msra.mxu0 0.0
      %3328 = vmatprep.subr.mxu0 0.0
      %3329 = vmatpush1.msra.mxu0 0.0
      %3330 = vmatprep.subr.mxu0 0.0
      %3331 = vmatpush1.msra.mxu0 0.0
      %3332 = vmatprep.subr.mxu0 0.0
      %3333 = vmatpush1.msra.mxu0 0.0
      %3334 = vmatprep.subr.mxu0 0.0
      %3335 = vmatpush1.msra.mxu0 0.0
      %3336 = vmatprep.subr.mxu0 0.0
      %3337 = vmatpush1.msra.mxu0 0.0
      %3338 = vmatprep.subr.mxu0 0.0
      %3339 = vmatpush1.msra.mxu0 0.0
      %3340 = vmatprep.mubr.f32.mxu0 0.0
      %3341 = vmatmul.mubr.f32.gmra.mrb[0].mxu0 %v3266
      %v3342 = vpop.f32.mrb[0].mxu0
      %v3343 = vadd.f32 %v3256, %v3342
      %v3344 = vpop.f32.mrb[0].mxu0
      %v3345 = vadd.f32 %v3258, %v3344
      %3346 = vmatprep.mubr.f32.mxu0 0.0
      %3347 = vmatmul.mubr.f32.gmra.mrb[0].mxu0 %v3268
      %v3348 = vpop.f32.mrb[0].mxu0
      %v3349 = vadd.f32 %v3262, %v3348
      %v3350 = vpop.f32.mrb[0].mxu0
      %v3351 = vadd.f32 %v3264, %v3350
      %3352 = vdwg.mxu0
      %3353 = vrot.lane.b32.xlu0 %v3171, 120
      %v3354 = vpop.permute.xlu0 %3353
      %3355 = vrot.lane.b32.xlu0 %v3172, 120
      %v3356 = vpop.permute.xlu0 %3355
      %v3357 = vsel %vm1487, %v3354, 0
      %v3359 = vsel %vm1487, %v3356, 0
      %v3362 = vsel %vm1492, %v3129, 0
      %v3365 = vsel %vm1492, %v3130, 0
      %3367 = vmatprep.subr.mxu0 %v3365
      %3368 = vmatpush1.msra.mxu0 %v3362
      %3369 = vmatprep.subr.mxu0 0.0
      %3370 = vmatpush1.msra.mxu0 0.0
      %3371 = vmatprep.subr.mxu0 0.0
      %3372 = vmatpush1.msra.mxu0 0.0
      %3373 = vmatprep.subr.mxu0 0.0
      %3374 = vmatpush1.msra.mxu0 0.0
      %3375 = vmatprep.subr.mxu0 0.0
      %3376 = vmatpush1.msra.mxu0 0.0
      %3377 = vmatprep.subr.mxu0 0.0
      %3378 = vmatpush1.msra.mxu0 0.0
      %3379 = vmatprep.subr.mxu0 0.0
      %3380 = vmatpush1.msra.mxu0 0.0
      %3381 = vmatprep.subr.mxu0 0.0
      %3382 = vmatpush1.msra.mxu0 0.0
      %3383 = vmatprep.subr.mxu0 0.0
      %3384 = vmatpush1.msra.mxu0 0.0
      %3385 = vmatprep.subr.mxu0 0.0
      %3386 = vmatpush1.msra.mxu0 0.0
      %3387 = vmatprep.subr.mxu0 0.0
      %3388 = vmatpush1.msra.mxu0 0.0
      %3389 = vmatprep.subr.mxu0 0.0
      %3390 = vmatpush1.msra.mxu0 0.0
      %3391 = vmatprep.subr.mxu0 0.0
      %3392 = vmatpush1.msra.mxu0 0.0
      %3393 = vmatprep.subr.mxu0 0.0
      %3394 = vmatpush1.msra.mxu0 0.0
      %3395 = vmatprep.subr.mxu0 0.0
      %3396 = vmatpush1.msra.mxu0 0.0
      %3397 = vmatprep.subr.mxu0 0.0
      %3398 = vmatpush1.msra.mxu0 0.0
      %3399 = vmatprep.subr.mxu0 0.0
      %3400 = vmatpush1.msra.mxu0 0.0
      %3401 = vmatprep.subr.mxu0 0.0
      %3402 = vmatpush1.msra.mxu0 0.0
      %3403 = vmatprep.subr.mxu0 0.0
      %3404 = vmatpush1.msra.mxu0 0.0
      %3405 = vmatprep.subr.mxu0 0.0
      %3406 = vmatpush1.msra.mxu0 0.0
      %3407 = vmatprep.subr.mxu0 0.0
      %3408 = vmatpush1.msra.mxu0 0.0
      %3409 = vmatprep.subr.mxu0 0.0
      %3410 = vmatpush1.msra.mxu0 0.0
      %3411 = vmatprep.subr.mxu0 0.0
      %3412 = vmatpush1.msra.mxu0 0.0
      %3413 = vmatprep.subr.mxu0 0.0
      %3414 = vmatpush1.msra.mxu0 0.0
      %3415 = vmatprep.subr.mxu0 0.0
      %3416 = vmatpush1.msra.mxu0 0.0
      %3417 = vmatprep.subr.mxu0 0.0
      %3418 = vmatpush1.msra.mxu0 0.0
      %3419 = vmatprep.subr.mxu0 0.0
      %3420 = vmatpush1.msra.mxu0 0.0
      %3421 = vmatprep.subr.mxu0 0.0
      %3422 = vmatpush1.msra.mxu0 0.0
      %3423 = vmatprep.subr.mxu0 0.0
      %3424 = vmatpush1.msra.mxu0 0.0
      %3425 = vmatprep.subr.mxu0 0.0
      %3426 = vmatpush1.msra.mxu0 0.0
      %3427 = vmatprep.subr.mxu0 0.0
      %3428 = vmatpush1.msra.mxu0 0.0
      %3429 = vmatprep.subr.mxu0 0.0
      %3430 = vmatpush1.msra.mxu0 0.0
      %3431 = vmatprep.mubr.f32.mxu0 0.0
      %3432 = vmatmul.mubr.f32.gmra.mrb[0].mxu0 %v3357
      %v3433 = vpop.f32.mrb[0].mxu0
      %v3434 = vadd.f32 0.0, %v3433
      %v3435 = vpop.f32.mrb[0].mxu0
      %v3436 = vadd.f32 0.0, %v3435
      %3437 = vmatprep.mubr.f32.mxu0 0.0
      %3438 = vmatmul.mubr.f32.gmra.mrb[0].mxu0 %v3359
      %v3439 = vpop.f32.mrb[0].mxu0
      %v3440 = vadd.f32 0.0, %v3439
      %v3441 = vpop.f32.mrb[0].mxu0
      %v3442 = vadd.f32 0.0, %v3441
      %3443 = vdwg.mxu0
      %v3444 = vadd.f32 %v3343, %v3434
      %v3445 = vadd.f32 %v3345, %v3436
      %v3446 = vadd.f32 %v3349, %v3440
      %v3447 = vadd.f32 %v3351, %v3442
      %3448 = vrot.lane.b32.xlu0 %v3171, 116
      %v3449 = vpop.permute.xlu0 %3448
      %3450 = vrot.lane.b32.xlu0 %v3172, 116
      %v3451 = vpop.permute.xlu0 %3450
      %v3452 = vsel %vm1487, %v3449, 0
      %v3454 = vsel %vm1487, %v3451, 0
      %v3457 = vsel %vm1492, %v3137, 0
      %v3460 = vsel %vm1492, %v3138, 0
      %3462 = vmatprep.subr.mxu0 %v3460
      %3463 = vmatpush1.msra.mxu0 %v3457
      %3464 = vmatprep.subr.mxu0 0.0
      %3465 = vmatpush1.msra.mxu0 0.0
      %3466 = vmatprep.subr.mxu0 0.0
      %3467 = vmatpush1.msra.mxu0 0.0
      %3468 = vmatprep.subr.mxu0 0.0
      %3469 = vmatpush1.msra.mxu0 0.0
      %3470 = vmatprep.subr.mxu0 0.0
      %3471 = vmatpush1.msra.mxu0 0.0
      %3472 = vmatprep.subr.mxu0 0.0
      %3473 = vmatpush1.msra.mxu0 0.0
      %3474 = vmatprep.subr.mxu0 0.0
      %3475 = vmatpush1.msra.mxu0 0.0
      %3476 = vmatprep.subr.mxu0 0.0
      %3477 = vmatpush1.msra.mxu0 0.0
      %3478 = vmatprep.subr.mxu0 0.0
      %3479 = vmatpush1.msra.mxu0 0.0
      %3480 = vmatprep.subr.mxu0 0.0
      %3481 = vmatpush1.msra.mxu0 0.0
      %3482 = vmatprep.subr.mxu0 0.0
      %3483 = vmatpush1.msra.mxu0 0.0
      %3484 = vmatprep.subr.mxu0 0.0
      %3485 = vmatpush1.msra.mxu0 0.0
      %3486 = vmatprep.subr.mxu0 0.0
      %3487 = vmatpush1.msra.mxu0 0.0
      %3488 = vmatprep.subr.mxu0 0.0
      %3489 = vmatpush1.msra.mxu0 0.0
      %3490 = vmatprep.subr.mxu0 0.0
      %3491 = vmatpush1.msra.mxu0 0.0
      %3492 = vmatprep.subr.mxu0 0.0
      %3493 = vmatpush1.msra.mxu0 0.0
      %3494 = vmatprep.subr.mxu0 0.0
      %3495 = vmatpush1.msra.mxu0 0.0
      %3496 = vmatprep.subr.mxu0 0.0
      %3497 = vmatpush1.msra.mxu0 0.0
      %3498 = vmatprep.subr.mxu0 0.0
      %3499 = vmatpush1.msra.mxu0 0.0
      %3500 = vmatprep.subr.mxu0 0.0
      %3501 = vmatpush1.msra.mxu0 0.0
      %3502 = vmatprep.subr.mxu0 0.0
      %3503 = vmatpush1.msra.mxu0 0.0
      %3504 = vmatprep.subr.mxu0 0.0
      %3505 = vmatpush1.msra.mxu0 0.0
      %3506 = vmatprep.subr.mxu0 0.0
      %3507 = vmatpush1.msra.mxu0 0.0
      %3508 = vmatprep.subr.mxu0 0.0
      %3509 = vmatpush1.msra.mxu0 0.0
      %3510 = vmatprep.subr.mxu0 0.0
      %3511 = vmatpush1.msra.mxu0 0.0
      %3512 = vmatprep.subr.mxu0 0.0
      %3513 = vmatpush1.msra.mxu0 0.0
      %3514 = vmatprep.subr.mxu0 0.0
      %3515 = vmatpush1.msra.mxu0 0.0
      %3516 = vmatprep.subr.mxu0 0.0
      %3517 = vmatpush1.msra.mxu0 0.0
      %3518 = vmatprep.subr.mxu0 0.0
      %3519 = vmatpush1.msra.mxu0 0.0
      %3520 = vmatprep.subr.mxu0 0.0
      %3521 = vmatpush1.msra.mxu0 0.0
      %3522 = vmatprep.subr.mxu0 0.0
      %3523 = vmatpush1.msra.mxu0 0.0
      %3524 = vmatprep.subr.mxu0 0.0
      %3525 = vmatpush1.msra.mxu0 0.0
      %3526 = vmatprep.mubr.f32.mxu0 0.0
      %3527 = vmatmul.mubr.f32.gmra.mrb[0].mxu0 %v3452
      %v3528 = vpop.f32.mrb[0].mxu0
      %v3529 = vadd.f32 0.0, %v3528
      %v3530 = vpop.f32.mrb[0].mxu0
      %v3531 = vadd.f32 0.0, %v3530
      %3532 = vmatprep.mubr.f32.mxu0 0.0
      %3533 = vmatmul.mubr.f32.gmra.mrb[0].mxu0 %v3454
      %v3534 = vpop.f32.mrb[0].mxu0
      %v3535 = vadd.f32 0.0, %v3534
      %v3536 = vpop.f32.mrb[0].mxu0
      %v3537 = vadd.f32 0.0, %v3536
      %3538 = vdwg.mxu0
      %v3539 = vadd.f32 %v3444, %v3529
      %v3540 = vadd.f32 %v3445, %v3531
      %v3541 = vadd.f32 %v3446, %v3535
      %v3542 = vadd.f32 %v3447, %v3537
      %3543 = vrot.lane.b32.xlu0 %v3171, 112
      %v3544 = vpop.permute.xlu0 %3543
      %3545 = vrot.lane.b32.xlu0 %v3172, 112
      %v3546 = vpop.permute.xlu0 %3545
      %v3547 = vsel %vm1487, %v3544, 0
      %v3549 = vsel %vm1487, %v3546, 0
      %v3552 = vsel %vm1492, %v3028, 0
      %v3555 = vsel %vm1492, %v3030, 0
      %3557 = vmatprep.subr.mxu0 %v3555
      %3558 = vmatpush1.msra.mxu0 %v3552
      %3559 = vmatprep.subr.mxu0 0.0
      %3560 = vmatpush1.msra.mxu0 0.0
      %3561 = vmatprep.subr.mxu0 0.0
      %3562 = vmatpush1.msra.mxu0 0.0
      %3563 = vmatprep.subr.mxu0 0.0
      %3564 = vmatpush1.msra.mxu0 0.0
      %3565 = vmatprep.subr.mxu0 0.0
      %3566 = vmatpush1.msra.mxu0 0.0
      %3567 = vmatprep.subr.mxu0 0.0
      %3568 = vmatpush1.msra.mxu0 0.0
      %3569 = vmatprep.subr.mxu0 0.0
      %3570 = vmatpush1.msra.mxu0 0.0
      %3571 = vmatprep.subr.mxu0 0.0
      %3572 = vmatpush1.msra.mxu0 0.0
      %3573 = vmatprep.subr.mxu0 0.0
      %3574 = vmatpush1.msra.mxu0 0.0
      %3575 = vmatprep.subr.mxu0 0.0
      %3576 = vmatpush1.msra.mxu0 0.0
      %3577 = vmatprep.subr.mxu0 0.0
      %3578 = vmatpush1.msra.mxu0 0.0
      %3579 = vmatprep.subr.mxu0 0.0
      %3580 = vmatpush1.msra.mxu0 0.0
      %3581 = vmatprep.subr.mxu0 0.0
      %3582 = vmatpush1.msra.mxu0 0.0
      %3583 = vmatprep.subr.mxu0 0.0
      %3584 = vmatpush1.msra.mxu0 0.0
      %3585 = vmatprep.subr.mxu0 0.0
      %3586 = vmatpush1.msra.mxu0 0.0
      %3587 = vmatprep.subr.mxu0 0.0
      %3588 = vmatpush1.msra.mxu0 0.0
      %3589 = vmatprep.subr.mxu0 0.0
      %3590 = vmatpush1.msra.mxu0 0.0
      %3591 = vmatprep.subr.mxu0 0.0
      %3592 = vmatpush1.msra.mxu0 0.0
      %3593 = vmatprep.subr.mxu0 0.0
      %3594 = vmatpush1.msra.mxu0 0.0
      %3595 = vmatprep.subr.mxu0 0.0
      %3596 = vmatpush1.msra.mxu0 0.0
      %3597 = vmatprep.subr.mxu0 0.0
      %3598 = vmatpush1.msra.mxu0 0.0
      %3599 = vmatprep.subr.mxu0 0.0
      %3600 = vmatpush1.msra.mxu0 0.0
      %3601 = vmatprep.subr.mxu0 0.0
      %3602 = vmatpush1.msra.mxu0 0.0
      %3603 = vmatprep.subr.mxu0 0.0
      %3604 = vmatpush1.msra.mxu0 0.0
      %3605 = vmatprep.subr.mxu0 0.0
      %3606 = vmatpush1.msra.mxu0 0.0
      %3607 = vmatprep.subr.mxu0 0.0
      %3608 = vmatpush1.msra.mxu0 0.0
      %3609 = vmatprep.subr.mxu0 0.0
      %3610 = vmatpush1.msra.mxu0 0.0
      %3611 = vmatprep.subr.mxu0 0.0
      %3612 = vmatpush1.msra.mxu0 0.0
      %3613 = vmatprep.subr.mxu0 0.0
      %3614 = vmatpush1.msra.mxu0 0.0
      %3615 = vmatprep.subr.mxu0 0.0
      %3616 = vmatpush1.msra.mxu0 0.0
      %3617 = vmatprep.subr.mxu0 0.0
      %3618 = vmatpush1.msra.mxu0 0.0
      %3619 = vmatprep.subr.mxu0 0.0
      %3620 = vmatpush1.msra.mxu0 0.0
      %3621 = vmatprep.mubr.f32.mxu0 0.0
      %3622 = vmatmul.mubr.f32.gmra.mrb[0].mxu0 %v3547
      %v3623 = vpop.f32.mrb[0].mxu0
      %v3624 = vadd.f32 0.0, %v3623
      %v3625 = vpop.f32.mrb[0].mxu0
      %v3626 = vadd.f32 0.0, %v3625
      %3627 = vmatprep.mubr.f32.mxu0 0.0
      %3628 = vmatmul.mubr.f32.gmra.mrb[0].mxu0 %v3549
      %v3629 = vpop.f32.mrb[0].mxu0
      %v3630 = vadd.f32 0.0, %v3629
      %v3631 = vpop.f32.mrb[0].mxu0
      %v3632 = vadd.f32 0.0, %v3631
      %3633 = vdwg.mxu0
      %v3634 = vadd.f32 %v3539, %v3624
      %v3635 = vadd.f32 %v3540, %v3626
      %v3636 = vadd.f32 %v3541, %v3630
      %v3637 = vadd.f32 %v3542, %v3632
      %3638 = vrot.lane.b32.xlu0 %v3171, 108
      %v3639 = vpop.permute.xlu0 %3638
      %3640 = vrot.lane.b32.xlu0 %v3172, 108
      %v3641 = vpop.permute.xlu0 %3640
      %v3642 = vsel %vm1487, %v3639, 0
      %v3644 = vsel %vm1487, %v3641, 0
      %v3647 = vsel %vm1492, %v3145, 0
      %v3650 = vsel %vm1492, %v3146, 0
      %3652 = vmatprep.subr.mxu0 %v3650
      %3653 = vmatpush1.msra.mxu0 %v3647
      %3654 = vmatprep.subr.mxu0 0.0
      %3655 = vmatpush1.msra.mxu0 0.0
      %3656 = vmatprep.subr.mxu0 0.0
      %3657 = vmatpush1.msra.mxu0 0.0
      %3658 = vmatprep.subr.mxu0 0.0
      %3659 = vmatpush1.msra.mxu0 0.0
      %3660 = vmatprep.subr.mxu0 0.0
      %3661 = vmatpush1.msra.mxu0 0.0
      %3662 = vmatprep.subr.mxu0 0.0
      %3663 = vmatpush1.msra.mxu0 0.0
      %3664 = vmatprep.subr.mxu0 0.0
      %3665 = vmatpush1.msra.mxu0 0.0
      %3666 = vmatprep.subr.mxu0 0.0
      %3667 = vmatpush1.msra.mxu0 0.0
      %3668 = vmatprep.subr.mxu0 0.0
      %3669 = vmatpush1.msra.mxu0 0.0
      %3670 = vmatprep.subr.mxu0 0.0
      %3671 = vmatpush1.msra.mxu0 0.0
      %3672 = vmatprep.subr.mxu0 0.0
      %3673 = vmatpush1.msra.mxu0 0.0
      %3674 = vmatprep.subr.mxu0 0.0
      %3675 = vmatpush1.msra.mxu0 0.0
      %3676 = vmatprep.subr.mxu0 0.0
      %3677 = vmatpush1.msra.mxu0 0.0
      %3678 = vmatprep.subr.mxu0 0.0
      %3679 = vmatpush1.msra.mxu0 0.0
      %3680 = vmatprep.subr.mxu0 0.0
      %3681 = vmatpush1.msra.mxu0 0.0
      %3682 = vmatprep.subr.mxu0 0.0
      %3683 = vmatpush1.msra.mxu0 0.0
      %3684 = vmatprep.subr.mxu0 0.0
      %3685 = vmatpush1.msra.mxu0 0.0
      %3686 = vmatprep.subr.mxu0 0.0
      %3687 = vmatpush1.msra.mxu0 0.0
      %3688 = vmatprep.subr.mxu0 0.0
      %3689 = vmatpush1.msra.mxu0 0.0
      %3690 = vmatprep.subr.mxu0 0.0
      %3691 = vmatpush1.msra.mxu0 0.0
      %3692 = vmatprep.subr.mxu0 0.0
      %3693 = vmatpush1.msra.mxu0 0.0
      %3694 = vmatprep.subr.mxu0 0.0
      %3695 = vmatpush1.msra.mxu0 0.0
      %3696 = vmatprep.subr.mxu0 0.0
      %3697 = vmatpush1.msra.mxu0 0.0
      %3698 = vmatprep.subr.mxu0 0.0
      %3699 = vmatpush1.msra.mxu0 0.0
      %3700 = vmatprep.subr.mxu0 0.0
      %3701 = vmatpush1.msra.mxu0 0.0
      %3702 = vmatprep.subr.mxu0 0.0
      %3703 = vmatpush1.msra.mxu0 0.0
      %3704 = vmatprep.subr.mxu0 0.0
      %3705 = vmatpush1.msra.mxu0 0.0
      %3706 = vmatprep.subr.mxu0 0.0
      %3707 = vmatpush1.msra.mxu0 0.0
      %3708 = vmatprep.subr.mxu0 0.0
      %3709 = vmatpush1.msra.mxu0 0.0
      %3710 = vmatprep.subr.mxu0 0.0
      %3711 = vmatpush1.msra.mxu0 0.0
      %3712 = vmatprep.subr.mxu0 0.0
      %3713 = vmatpush1.msra.mxu0 0.0
      %3714 = vmatprep.subr.mxu0 0.0
      %3715 = vmatpush1.msra.mxu0 0.0
      %3716 = vmatprep.mubr.f32.mxu0 0.0
      %3717 = vmatmul.mubr.f32.gmra.mrb[0].mxu0 %v3642
      %v3718 = vpop.f32.mrb[0].mxu0
      %v3719 = vadd.f32 0.0, %v3718
      %v3720 = vpop.f32.mrb[0].mxu0
      %v3721 = vadd.f32 0.0, %v3720
      %3722 = vmatprep.mubr.f32.mxu0 0.0
      %3723 = vmatmul.mubr.f32.gmra.mrb[0].mxu0 %v3644
      %v3724 = vpop.f32.mrb[0].mxu0
      %v3725 = vadd.f32 0.0, %v3724
      %v3726 = vpop.f32.mrb[0].mxu0
      %v3727 = vadd.f32 0.0, %v3726
      %3728 = vdwg.mxu0
      %v3729 = vadd.f32 %v3634, %v3719
      %v3730 = vadd.f32 %v3635, %v3721
      %v3731 = vadd.f32 %v3636, %v3725
      %v3732 = vadd.f32 %v3637, %v3727
      %3733 = vrot.lane.b32.xlu0 %v3171, 104
      %v3734 = vpop.permute.xlu0 %3733
      %3735 = vrot.lane.b32.xlu0 %v3172, 104
      %v3736 = vpop.permute.xlu0 %3735
      %v3737 = vsel %vm1487, %v3734, 0
      %v3739 = vsel %vm1487, %v3736, 0
      %v3742 = vsel %vm1492, %v3153, 0
      %v3745 = vsel %vm1492, %v3154, 0
      %3747 = vmatprep.subr.mxu0 %v3745
      %3748 = vmatpush1.msra.mxu0 %v3742
      %3749 = vmatprep.subr.mxu0 0.0
      %3750 = vmatpush1.msra.mxu0 0.0
      %3751 = vmatprep.subr.mxu0 0.0
      %3752 = vmatpush1.msra.mxu0 0.0
      %3753 = vmatprep.subr.mxu0 0.0
      %3754 = vmatpush1.msra.mxu0 0.0
      %3755 = vmatprep.subr.mxu0 0.0
      %3756 = vmatpush1.msra.mxu0 0.0
      %3757 = vmatprep.subr.mxu0 0.0
      %3758 = vmatpush1.msra.mxu0 0.0
      %3759 = vmatprep.subr.mxu0 0.0
      %3760 = vmatpush1.msra.mxu0 0.0
      %3761 = vmatprep.subr.mxu0 0.0
      %3762 = vmatpush1.msra.mxu0 0.0
      %3763 = vmatprep.subr.mxu0 0.0
      %3764 = vmatpush1.msra.mxu0 0.0
      %3765 = vmatprep.subr.mxu0 0.0
      %3766 = vmatpush1.msra.mxu0 0.0
      %3767 = vmatprep.subr.mxu0 0.0
      %3768 = vmatpush1.msra.mxu0 0.0
      %3769 = vmatprep.subr.mxu0 0.0
      %3770 = vmatpush1.msra.mxu0 0.0
      %3771 = vmatprep.subr.mxu0 0.0
      %3772 = vmatpush1.msra.mxu0 0.0
      %3773 = vmatprep.subr.mxu0 0.0
      %3774 = vmatpush1.msra.mxu0 0.0
      %3775 = vmatprep.subr.mxu0 0.0
      %3776 = vmatpush1.msra.mxu0 0.0
      %3777 = vmatprep.subr.mxu0 0.0
      %3778 = vmatpush1.msra.mxu0 0.0
      %3779 = vmatprep.subr.mxu0 0.0
      %3780 = vmatpush1.msra.mxu0 0.0
      %3781 = vmatprep.subr.mxu0 0.0
      %3782 = vmatpush1.msra.mxu0 0.0
      %3783 = vmatprep.subr.mxu0 0.0
      %3784 = vmatpush1.msra.mxu0 0.0
      %3785 = vmatprep.subr.mxu0 0.0
      %3786 = vmatpush1.msra.mxu0 0.0
      %3787 = vmatprep.subr.mxu0 0.0
      %3788 = vmatpush1.msra.mxu0 0.0
      %3789 = vmatprep.subr.mxu0 0.0
      %3790 = vmatpush1.msra.mxu0 0.0
      %3791 = vmatprep.subr.mxu0 0.0
      %3792 = vmatpush1.msra.mxu0 0.0
      %3793 = vmatprep.subr.mxu0 0.0
      %3794 = vmatpush1.msra.mxu0 0.0
      %3795 = vmatprep.subr.mxu0 0.0
      %3796 = vmatpush1.msra.mxu0 0.0
      %3797 = vmatprep.subr.mxu0 0.0
      %3798 = vmatpush1.msra.mxu0 0.0
      %3799 = vmatprep.subr.mxu0 0.0
      %3800 = vmatpush1.msra.mxu0 0.0
      %3801 = vmatprep.subr.mxu0 0.0
      %3802 = vmatpush1.msra.mxu0 0.0
      %3803 = vmatprep.subr.mxu0 0.0
      %3804 = vmatpush1.msra.mxu0 0.0
      %3805 = vmatprep.subr.mxu0 0.0
      %3806 = vmatpush1.msra.mxu0 0.0
      %3807 = vmatprep.subr.mxu0 0.0
      %3808 = vmatpush1.msra.mxu0 0.0
      %3809 = vmatprep.subr.mxu0 0.0
      %3810 = vmatpush1.msra.mxu0 0.0
      %3811 = vmatprep.mubr.f32.mxu0 0.0
      %3812 = vmatmul.mubr.f32.gmra.mrb[0].mxu0 %v3737
      %v3813 = vpop.f32.mrb[0].mxu0
      %v3814 = vadd.f32 0.0, %v3813
      %v3815 = vpop.f32.mrb[0].mxu0
      %v3816 = vadd.f32 0.0, %v3815
      %3817 = vmatprep.mubr.f32.mxu0 0.0
      %3818 = vmatmul.mubr.f32.gmra.mrb[0].mxu0 %v3739
      %v3819 = vpop.f32.mrb[0].mxu0
      %v3820 = vadd.f32 0.0, %v3819
      %v3821 = vpop.f32.mrb[0].mxu0
      %v3822 = vadd.f32 0.0, %v3821
      %3823 = vdwg.mxu0
      %v3824 = vadd.f32 %v3729, %v3814
      %v3825 = vadd.f32 %v3730, %v3816
      %v3826 = vadd.f32 %v3731, %v3820
      %v3827 = vadd.f32 %v3732, %v3822
      %3828 = vrot.lane.b32.xlu0 %v3171, 100
      %v3829 = vpop.permute.xlu0 %3828
      %3830 = vrot.lane.b32.xlu0 %v3172, 100
      %v3831 = vpop.permute.xlu0 %3830
      %v3832 = vsel %vm1487, %v3829, 0
      %v3834 = vsel %vm1487, %v3831, 0
      %v3837 = vsel %vm1492, %v3161, 0
      %v3840 = vsel %vm1492, %v3162, 0
      %3842 = vmatprep.subr.mxu0 %v3840
      %3843 = vmatpush1.msra.mxu0 %v3837
      %3844 = vmatprep.subr.mxu0 0.0
      %3845 = vmatpush1.msra.mxu0 0.0
      %3846 = vmatprep.subr.mxu0 0.0
      %3847 = vmatpush1.msra.mxu0 0.0
      %3848 = vmatprep.subr.mxu0 0.0
      %3849 = vmatpush1.msra.mxu0 0.0
      %3850 = vmatprep.subr.mxu0 0.0
      %3851 = vmatpush1.msra.mxu0 0.0
      %3852 = vmatprep.subr.mxu0 0.0
      %3853 = vmatpush1.msra.mxu0 0.0
      %3854 = vmatprep.subr.mxu0 0.0
      %3855 = vmatpush1.msra.mxu0 0.0
      %3856 = vmatprep.subr.mxu0 0.0
      %3857 = vmatpush1.msra.mxu0 0.0
      %3858 = vmatprep.subr.mxu0 0.0
      %3859 = vmatpush1.msra.mxu0 0.0
      %3860 = vmatprep.subr.mxu0 0.0
      %3861 = vmatpush1.msra.mxu0 0.0
      %3862 = vmatprep.subr.mxu0 0.0
      %3863 = vmatpush1.msra.mxu0 0.0
      %3864 = vmatprep.subr.mxu0 0.0
      %3865 = vmatpush1.msra.mxu0 0.0
      %3866 = vmatprep.subr.mxu0 0.0
      %3867 = vmatpush1.msra.mxu0 0.0
      %3868 = vmatprep.subr.mxu0 0.0
      %3869 = vmatpush1.msra.mxu0 0.0
      %3870 = vmatprep.subr.mxu0 0.0
      %3871 = vmatpush1.msra.mxu0 0.0
      %3872 = vmatprep.subr.mxu0 0.0
      %3873 = vmatpush1.msra.mxu0 0.0
      %3874 = vmatprep.subr.mxu0 0.0
      %3875 = vmatpush1.msra.mxu0 0.0
      %3876 = vmatprep.subr.mxu0 0.0
      %3877 = vmatpush1.msra.mxu0 0.0
      %3878 = vmatprep.subr.mxu0 0.0
      %3879 = vmatpush1.msra.mxu0 0.0
      %3880 = vmatprep.subr.mxu0 0.0
      %3881 = vmatpush1.msra.mxu0 0.0
      %3882 = vmatprep.subr.mxu0 0.0
      %3883 = vmatpush1.msra.mxu0 0.0
      %3884 = vmatprep.subr.mxu0 0.0
      %3885 = vmatpush1.msra.mxu0 0.0
      %3886 = vmatprep.subr.mxu0 0.0
      %3887 = vmatpush1.msra.mxu0 0.0
      %3888 = vmatprep.subr.mxu0 0.0
      %3889 = vmatpush1.msra.mxu0 0.0
      %3890 = vmatprep.subr.mxu0 0.0
      %3891 = vmatpush1.msra.mxu0 0.0
      %3892 = vmatprep.subr.mxu0 0.0
      %3893 = vmatpush1.msra.mxu0 0.0
      %3894 = vmatprep.subr.mxu0 0.0
      %3895 = vmatpush1.msra.mxu0 0.0
      %3896 = vmatprep.subr.mxu0 0.0
      %3897 = vmatpush1.msra.mxu0 0.0
      %3898 = vmatprep.subr.mxu0 0.0
      %3899 = vmatpush1.msra.mxu0 0.0
      %3900 = vmatprep.subr.mxu0 0.0
      %3901 = vmatpush1.msra.mxu0 0.0
      %3902 = vmatprep.subr.mxu0 0.0
      %3903 = vmatpush1.msra.mxu0 0.0
      %3904 = vmatprep.subr.mxu0 0.0
      %3905 = vmatpush1.msra.mxu0 0.0
      %3906 = vmatprep.mubr.f32.mxu0 0.0
      %3907 = vmatmul.mubr.f32.gmra.mrb[0].mxu0 %v3832
      %v3908 = vpop.f32.mrb[0].mxu0
      %v3909 = vadd.f32 0.0, %v3908
      %v3910 = vpop.f32.mrb[0].mxu0
      %v3911 = vadd.f32 0.0, %v3910
      %3912 = vmatprep.mubr.f32.mxu0 0.0
      %3913 = vmatmul.mubr.f32.gmra.mrb[0].mxu0 %v3834
      %v3914 = vpop.f32.mrb[0].mxu0
      %v3915 = vadd.f32 0.0, %v3914
      %v3916 = vpop.f32.mrb[0].mxu0
      %v3917 = vadd.f32 0.0, %v3916
      %3918 = vdwg.mxu0
      %v3919 = vadd.f32 %v3824, %v3909
      %v3920 = vadd.f32 %v3825, %v3911
      %v3921 = vadd.f32 %v3826, %v3915
      %v3922 = vadd.f32 %v3827, %v3917
      %3923 = vrot.lane.b32.xlu0 %v3171, 96
      %v3924 = vpop.permute.xlu0 %3923
      %3925 = vrot.lane.b32.xlu0 %v3172, 96
      %v3926 = vpop.permute.xlu0 %3925
      %v3927 = vsel %vm1487, %v3924, 0
      %v3929 = vsel %vm1487, %v3926, 0
      %v3932 = vsel %vm1492, %v3169, 0
      %v3935 = vsel %vm1492, %v3170, 0
      %3937 = vmatprep.subr.mxu0 %v3935
      %3938 = vmatpush1.msra.mxu0 %v3932
      %3939 = vmatprep.subr.mxu0 0.0
      %3940 = vmatpush1.msra.mxu0 0.0
      %3941 = vmatprep.subr.mxu0 0.0
      %3942 = vmatpush1.msra.mxu0 0.0
      %3943 = vmatprep.subr.mxu0 0.0
      %3944 = vmatpush1.msra.mxu0 0.0
      %3945 = vmatprep.subr.mxu0 0.0
      %3946 = vmatpush1.msra.mxu0 0.0
      %3947 = vmatprep.subr.mxu0 0.0
      %3948 = vmatpush1.msra.mxu0 0.0
      %3949 = vmatprep.subr.mxu0 0.0
      %3950 = vmatpush1.msra.mxu0 0.0
      %3951 = vmatprep.subr.mxu0 0.0
      %3952 = vmatpush1.msra.mxu0 0.0
      %3953 = vmatprep.subr.mxu0 0.0
      %3954 = vmatpush1.msra.mxu0 0.0
      %3955 = vmatprep.subr.mxu0 0.0
      %3956 = vmatpush1.msra.mxu0 0.0
      %3957 = vmatprep.subr.mxu0 0.0
      %3958 = vmatpush1.msra.mxu0 0.0
      %3959 = vmatprep.subr.mxu0 0.0
      %3960 = vmatpush1.msra.mxu0 0.0
      %3961 = vmatprep.subr.mxu0 0.0
      %3962 = vmatpush1.msra.mxu0 0.0
      %3963 = vmatprep.subr.mxu0 0.0
      %3964 = vmatpush1.msra.mxu0 0.0
      %3965 = vmatprep.subr.mxu0 0.0
      %3966 = vmatpush1.msra.mxu0 0.0
      %3967 = vmatprep.subr.mxu0 0.0
      %3968 = vmatpush1.msra.mxu0 0.0
      %3969 = vmatprep.subr.mxu0 0.0
      %3970 = vmatpush1.msra.mxu0 0.0
      %3971 = vmatprep.subr.mxu0 0.0
      %3972 = vmatpush1.msra.mxu0 0.0
      %3973 = vmatprep.subr.mxu0 0.0
      %3974 = vmatpush1.msra.mxu0 0.0
      %3975 = vmatprep.subr.mxu0 0.0
      %3976 = vmatpush1.msra.mxu0 0.0
      %3977 = vmatprep.subr.mxu0 0.0
      %3978 = vmatpush1.msra.mxu0 0.0
      %3979 = vmatprep.subr.mxu0 0.0
      %3980 = vmatpush1.msra.mxu0 0.0
      %3981 = vmatprep.subr.mxu0 0.0
      %3982 = vmatpush1.msra.mxu0 0.0
      %3983 = vmatprep.subr.mxu0 0.0
      %3984 = vmatpush1.msra.mxu0 0.0
      %3985 = vmatprep.subr.mxu0 0.0
      %3986 = vmatpush1.msra.mxu0 0.0
      %3987 = vmatprep.subr.mxu0 0.0
      %3988 = vmatpush1.msra.mxu0 0.0
      %3989 = vmatprep.subr.mxu0 0.0
      %3990 = vmatpush1.msra.mxu0 0.0
      %3991 = vmatprep.subr.mxu0 0.0
      %3992 = vmatpush1.msra.mxu0 0.0
      %3993 = vmatprep.subr.mxu0 0.0
      %3994 = vmatpush1.msra.mxu0 0.0
      %3995 = vmatprep.subr.mxu0 0.0
      %3996 = vmatpush1.msra.mxu0 0.0
      %3997 = vmatprep.subr.mxu0 0.0
      %3998 = vmatpush1.msra.mxu0 0.0
      %3999 = vmatprep.subr.mxu0 0.0
      %4000 = vmatpush1.msra.mxu0 0.0
      %4001 = vmatprep.mubr.f32.mxu0 0.0
      %4002 = vmatmul.mubr.f32.gmra.mrb[0].mxu0 %v3927
      %v4003 = vpop.f32.mrb[0].mxu0
      %v4004 = vadd.f32 0.0, %v4003
      %v4005 = vpop.f32.mrb[0].mxu0
      %v4006 = vadd.f32 0.0, %v4005
      %4007 = vmatprep.mubr.f32.mxu0 0.0
      %4008 = vmatmul.mubr.f32.gmra.mrb[0].mxu0 %v3929
      %v4009 = vpop.f32.mrb[0].mxu0
      %v4010 = vadd.f32 0.0, %v4009
      %v4011 = vpop.f32.mrb[0].mxu0
      %v4012 = vadd.f32 0.0, %v4011
      %4013 = vdwg.mxu0
      %v4014 = vadd.f32 %v3919, %v4004
      %v4015 = vadd.f32 %v3920, %v4006
      %v4016 = vadd.f32 %v3921, %v4010
      %v4017 = vadd.f32 %v3922, %v4012
      %v4018 = vld [vmem:[%s20] sm:$0xff]
      %v4019 = vld [vmem:[%s20 + $0x8] sm:$0xff]
      %4021 = vset.pattern.permute.xlu0 0
      %4022 = vperm.xlu0 %4021, %v4018
      %v4023 = vpop.permute.xlu0 %4022
      %4026 = vset.pattern.permute.xlu0 0
      %4027 = vperm.xlu0 %4026, %v4019
      %v4028 = vpop.permute.xlu0 %4027
      %v4030 = vadd.f32 %v4014, %v4023
      %v4031 = vadd.f32 %v4015, %v4023
      %v4032 = vadd.f32 %v4016, %v4028
      %v4033 = vadd.f32 %v4017, %v4028
      %v4034 = vld [vmem:[%s21] sm:$0xff]
      %v4035 = vld [vmem:[%s21 + $0x8] sm:$0xff]
      %v4037 = vsel %vm1487, %v4034, 0
      %v4040 = vsel %vm1487, %v4035, 0
      %v4043 = vsel %vm1492, %v3103, 0
      %v4046 = vsel %vm1492, %v3105, 0
      %4048 = vmatprep.subr.mxu0 %v4046
      %4049 = vmatpush1.msra.mxu0 %v4043
      %4050 = vmatprep.subr.mxu0 0.0
      %4051 = vmatpush1.msra.mxu0 0.0
      %4052 = vmatprep.subr.mxu0 0.0
      %4053 = vmatpush1.msra.mxu0 0.0
      %4054 = vmatprep.subr.mxu0 0.0
      %4055 = vmatpush1.msra.mxu0 0.0
      %4056 = vmatprep.subr.mxu0 0.0
      %4057 = vmatpush1.msra.mxu0 0.0
      %4058 = vmatprep.subr.mxu0 0.0
      %4059 = vmatpush1.msra.mxu0 0.0
      %4060 = vmatprep.subr.mxu0 0.0
      %4061 = vmatpush1.msra.mxu0 0.0
      %4062 = vmatprep.subr.mxu0 0.0
      %4063 = vmatpush1.msra.mxu0 0.0
      %4064 = vmatprep.subr.mxu0 0.0
      %4065 = vmatpush1.msra.mxu0 0.0
      %4066 = vmatprep.subr.mxu0 0.0
      %4067 = vmatpush1.msra.mxu0 0.0
      %4068 = vmatprep.subr.mxu0 0.0
      %4069 = vmatpush1.msra.mxu0 0.0
      %4070 = vmatprep.subr.mxu0 0.0
      %4071 = vmatpush1.msra.mxu0 0.0
      %4072 = vmatprep.subr.mxu0 0.0
      %4073 = vmatpush1.msra.mxu0 0.0
      %4074 = vmatprep.subr.mxu0 0.0
      %4075 = vmatpush1.msra.mxu0 0.0
      %4076 = vmatprep.subr.mxu0 0.0
      %4077 = vmatpush1.msra.mxu0 0.0
      %4078 = vmatprep.subr.mxu0 0.0
      %4079 = vmatpush1.msra.mxu0 0.0
      %4080 = vmatprep.subr.mxu0 0.0
      %4081 = vmatpush1.msra.mxu0 0.0
      %4082 = vmatprep.subr.mxu0 0.0
      %4083 = vmatpush1.msra.mxu0 0.0
      %4084 = vmatprep.subr.mxu0 0.0
      %4085 = vmatpush1.msra.mxu0 0.0
      %4086 = vmatprep.subr.mxu0 0.0
      %4087 = vmatpush1.msra.mxu0 0.0
      %4088 = vmatprep.subr.mxu0 0.0
      %4089 = vmatpush1.msra.mxu0 0.0
      %4090 = vmatprep.subr.mxu0 0.0
      %4091 = vmatpush1.msra.mxu0 0.0
      %4092 = vmatprep.subr.mxu0 0.0
      %4093 = vmatpush1.msra.mxu0 0.0
      %4094 = vmatprep.subr.mxu0 0.0
      %4095 = vmatpush1.msra.mxu0 0.0
      %4096 = vmatprep.subr.mxu0 0.0
      %4097 = vmatpush1.msra.mxu0 0.0
      %4098 = vmatprep.subr.mxu0 0.0
      %4099 = vmatpush1.msra.mxu0 0.0
      %4100 = vmatprep.subr.mxu0 0.0
      %4101 = vmatpush1.msra.mxu0 0.0
      %4102 = vmatprep.subr.mxu0 0.0
      %4103 = vmatpush1.msra.mxu0 0.0
      %4104 = vmatprep.subr.mxu0 0.0
      %4105 = vmatpush1.msra.mxu0 0.0
      %4106 = vmatprep.subr.mxu0 0.0
      %4107 = vmatpush1.msra.mxu0 0.0
      %4108 = vmatprep.subr.mxu0 0.0
      %4109 = vmatpush1.msra.mxu0 0.0
      %4110 = vmatprep.subr.mxu0 0.0
      %4111 = vmatpush1.msra.mxu0 0.0
      %4112 = vmatprep.mubr.f32.mxu0 0.0
      %4113 = vmatmul.mubr.f32.gmra.mrb[0].mxu0 %v4037
      %v4114 = vpop.f32.mrb[0].mxu0
      %v4115 = vadd.f32 0.0, %v4114
      %v4116 = vpop.f32.mrb[0].mxu0
      %v4117 = vadd.f32 0.0, %v4116
      %4118 = vmatprep.mubr.f32.mxu0 0.0
      %4119 = vmatmul.mubr.f32.gmra.mrb[0].mxu0 %v4040
      %v4120 = vpop.f32.mrb[0].mxu0
      %v4121 = vadd.f32 0.0, %v4120
      %v4122 = vpop.f32.mrb[0].mxu0
      %v4123 = vadd.f32 0.0, %v4122
      %4124 = vdwg.mxu0
      %v4125 = vadd.f32 %v4030, %v4031
      %4126 = vadd.xlane.f32.xlu0 %v4125
      %v4127 = vpop.xlane.xlu0 %4126
      %v4128 = vadd.f32 %v4032, %v4033
      %4129 = vadd.xlane.f32.xlu0 %v4128
      %v4130 = vpop.xlane.xlu0 %4129
      %v4131 = vmul.f32 %v4127, %v1041
      %v4132 = vmul.f32 %v4130, %v1041
      %v4133 = vadd.f32 %v4115, %v4117
      %4134 = vadd.xlane.f32.xlu0 %v4133
      %v4135 = vpop.xlane.xlu0 %4134
      %v4136 = vadd.f32 %v4121, %v4123
      %4137 = vadd.xlane.f32.xlu0 %v4136
      %v4138 = vpop.xlane.xlu0 %4137
      %v4139 = vmul.f32 %v4135, %v1041
      %v4140 = vmul.f32 %v4138, %v1041
      %v4141 = vmax.f32 %v4131, %v4132
      %v4142 = vrot.slane %v4141, 4
      %v4143 = vmax.f32 %v4141, %v4142
      %v4144 = vrot.slane %v4143, 2
      %v4145 = vmax.f32 %v4143, %v4144
      %v4146 = vrot.slane %v4145, 1
      %v4147 = vmax.f32 %v4145, %v4146
      %v4148 = vmax.f32 %v4139, %v4140
      %v4149 = vrot.slane %v4148, 4
      %v4150 = vmax.f32 %v4148, %v4149
      %v4151 = vrot.slane %v4150, 2
      %v4152 = vmax.f32 %v4150, %v4151
      %v4153 = vrot.slane %v4152, 1
      %v4154 = vmax.f32 %v4152, %v4153
      %v4155 = vmax.f32 %v4147, %v4154
      %v4156 = vsub.f32 %v4131, %v4155
      %v4157 = vsub.f32 %v4132, %v4155
      %v4158 = vmul.f32 %v4156, 1.442695
      %v4159 = vpow.pop %v4158
      %v4160 = vmul.f32 %v4157, 1.442695
      %v4161 = vpow.pop %v4160
      %v4162 = vsub.f32 %v4139, %v4155
      %v4163 = vsub.f32 %v4140, %v4155
      %v4164 = vmul.f32 %v4162, 1.442695
      %v4165 = vpow.pop %v4164
      %v4166 = vmul.f32 %v4163, 1.442695
      %v4167 = vpow.pop %v4166
      %v4168 = vadd.f32 %v4159, %v4161
      %v4169 = vrot.slane %v4168, 4
      %v4170 = vadd.f32 %v4168, %v4169
      %v4171 = vrot.slane %v4170, 2
      %v4172 = vadd.f32 %v4170, %v4171
      %v4173 = vrot.slane %v4172, 1
      %v4174 = vadd.f32 %v4172, %v4173
      %v4175 = vadd.f32 %v4165, %v4167
      %v4176 = vrot.slane %v4175, 4
      %v4177 = vadd.f32 %v4175, %v4176
      %v4178 = vrot.slane %v4177, 2
      %v4179 = vadd.f32 %v4177, %v4178
      %v4180 = vrot.slane %v4179, 1
      %v4181 = vadd.f32 %v4179, %v4180
      %v4182 = vadd.f32 %v4174, %v4181
      %v4183 = vrcp.pop %v4182
      %v4184 = vmul.f32 1.0, %v4183
      %v4185 = vmul.f32 %v4159, %v4184
      %v4186 = vmul.f32 %v4161, %v4184
      %v4187 = vmul.f32 %v4030, %v4185
      %v4188 = vmul.f32 %v4031, %v4185
      %v4189 = vmul.f32 %v4032, %v4186
      %v4190 = vmul.f32 %v4033, %v4186
      %v4191 = vmul.f32 %v4165, %v4184
      %v4192 = vmul.f32 %v4167, %v4184
      %v4193 = vmul.f32 %v4115, %v4191
      %v4194 = vmul.f32 %v4117, %v4191
      %v4195 = vmul.f32 %v4121, %v4192
      %v4196 = vmul.f32 %v4123, %v4192
      %v4197 = vadd.f32 %v4187, %v4193
      %v4198 = vadd.f32 %v4188, %v4194
      %v4199 = vadd.f32 %v4189, %v4195
      %v4200 = vadd.f32 %v4190, %v4196
      %v4201 = vld [vmem:[#allocation2] sm:$0x1]
      %v4203 = vlaneseq
      %v4204 = vshrl.u32 %v4203, 7
      %v4205 = vsub.s32 0, %v4204
      %v4206 = vrot.slane %v4201, %v4205
      %4207 = vset.pattern.permute.xlu0 0
      %4208 = vperm.xlu0 %4207, %v4206
      %v4209 = vpop.permute.xlu0 %4208
      %v4211 = vmul.f32 %v4197, %v4209
      %v4212 = vmul.f32 %v4198, %v4209
      %v4213 = vmul.f32 %v4199, %v4209
      %v4214 = vmul.f32 %v4200, %v4209
      %v4215 = vadd.f32 %v686, %v4211
      %v4216 = vadd.f32 %v687, %v4212
      %v4217 = vadd.f32 %v688, %v4213
      %v4218 = vadd.f32 %v689, %v4214
      %4219 = vst [vmem:[%s685] sm:$0xff] %v4215
      %4220 = vst [vmem:[%s685 + $0x8] sm:$0xff] %v4216
      %4221 = vst [vmem:[%s685 + $0x10] sm:$0xff] %v4217
      %4222 = vst [vmem:[%s685 + $0x18] sm:$0xff] %v4218
      %p4223 = scmp.lt.s32.totalorder %s35, 1
      %s4224 = scalar_select %p4223, %s35, 1
      %s4225 = smul.addr %s4224, 4
      %s4226 = smul.addr %s4225, 8
      %s4227 = scalar_lea.vmem %s22, %s4226
      // Predicated region
      $region109: #{residual_block_no_bn2.1} parent=107 // pred_check
        %p4228 = pneg %p520
      $region110: #{residual_block_no_bn2.1} parent=107 // pred_check_branch
        %4230 = sbr.rel (%p4228) target = $region112
      $region111: #{residual_block_no_bn2.1} parent=107 // pred_region
        _
      $region112: #{residual_block_no_bn2.1} parent=107 // pred_fallthru
        _
    $region108: #{residual_block_no_bn2.1} parent=5 // pred_fallthru
      _
    %p4231 = scmp.le.s32.totalorder 2, %s30
    // Predicated region
    $region113: #{residual_block_no_bn2.1} parent=5 // pred_check
      %p4232 = pneg %p4231
    $region114: #{residual_block_no_bn2.1} parent=5 // pred_check_branch
      %4234 = sbr.rel (%p4232) target = $region116
    $region115: #{residual_block_no_bn2.1} parent=5 // pred_region
      %s4235 = ssub.s32 %s30, 2
      // Predicated region
      $region117: #{residual_block_no_bn2.1} parent=115 // pred_check
        %p4236 = pneg %p526
      $region118: #{residual_block_no_bn2.1} parent=115 // pred_check_branch
        %4238 = sbr.rel (%p4236) target = $region120
      $region119: #{residual_block_no_bn2.1} parent=115 // pred_region
        %p4239 = scmp.lt.s32.totalorder %s36, 1
        %s4240 = scalar_select %p4239, %s36, 1
        %s4241 = smul.addr %s4240, 4
        %s4242 = smul.addr %s4241, 8
        %s4243 = scalar_lea.vmem %s22, %s4242
      $region120: #{residual_block_no_bn2.1} parent=115 // pred_fallthru
        _
    $region116: #{residual_block_no_bn2.1} parent=5 // pred_fallthru
      _
  $region6: #{residual_block_no_bn2.1} parent=0 // loop_footer
    %s34 = sadd.s32 1, %s30
  $region7: #{residual_block_no_bn2.1} parent=0 // loop_footer_branch
    %29 = sbr.rel target = $region3
  $region8: #{residual_block_no_bn2.1} parent=0 // loop_exit
    _

</llo_original>
